<compile_context>
chip_gen: v6e
topology: v6e:2x2x1
jax: 0.10.0
libtpu: 0.0.40
codegen_flags: <defaults>
</compile_context>

<pallas_src>
import functools

import jax
import jax.numpy as jnp
from jax.experimental import pallas as pl
from jax.experimental.pallas import tpu as pltpu

# ---- scaled-down (but structurally faithful) dimensions -------------------
NUM_NODE_FEAT = 16           # num_node_features
D_GNN = 128                  # per-encoder graph embedding (real: 256)
D_COMB = 3 * D_GNN           # cat(x_attfp, x_neufp, x_gin)          (real: 768)
C1_GLOBAL = 256              # global_protein_features dim           (real: 1562)
C2_LOCAL = 512               # local_protein_features dim            (real: 15599)
H_PROT = 128                 # protein_encoder LRBP hidden           (real: 1000)
D_PROT_OUT = D_COMB          # protein_encoder out_channels = 256*3  (real: 768)
H_FC1 = 256                  # fc1 LRBP hidden                       (real: 2448)
D_FC1 = 512                  # fc1 out_channels                      (real: 2048)
D_FC2 = 256                  # real: 1024
D_FC3 = 128                  # real: 256
D_FC4 = 64                   # logical fc4 width (real: 64)
D_FC4_PAD = 128              # fc4 padded to a full lane tile (zero cols/rows)
D_FC5 = 1                    # real: 1
D_OUT_PAD = 128              # fc5 output padded to a full lane tile


# ---------------------------------------------------------------------------
# Pallas kernel: protein LRBP encoder -> fc1 LRBP -> fc2..fc4 -> fc5+sigmoid.
# Grid axis 0 = batch tiles ("parallel"), axis 1 = optional K-streaming of
# lpf @ wp2 ("arbitrary", reduction).
# ---------------------------------------------------------------------------
def _head_kernel(xcomb_ref, gpf_ref, lpf_ref,
                 wp1_ref, wp2_ref, wp_ref, bp_ref,
                 wc1_ref, wc2_ref, wc_ref, bc_ref,
                 w2_ref, b2_ref, w3_ref, b3_ref,
                 w4_ref, b4_ref, w5_ref, b5_ref,
                 out_ref, p2_acc_ref):
    bf16 = jnp.bfloat16
    relu = lambda v: jnp.maximum(v, 0.0)
    dot = functools.partial(jnp.dot, preferred_element_type=jnp.float32)
    k = pl.program_id(1)

    @pl.when(k == 0)
    def _():
        p2_acc_ref[...] = jnp.zeros_like(p2_acc_ref)

    # protein_encoder.proj2: lpf @ wp2, K-streamed across grid axis 1 (one
    # chunk per step; a single step when the weight set is fully resident).
    p2_acc_ref[...] += dot(lpf_ref[...], wp2_ref[...])              # [tb, H_PROT] f32

    @pl.when(k == pl.num_programs(1) - 1)
    def _():
        # protein_encoder = LowRankBilinearPooling(C1, C2, H_PROT, D_PROT_OUT)
        #   lrbp = proj(relu(proj1(x1)) * relu(proj2(x2))); then F.relu(...)
        p1 = relu(dot(gpf_ref[...], wp1_ref[...]))                  # [tb, H_PROT] f32
        p2 = relu(p2_acc_ref[...])                                  # [tb, H_PROT] f32
        enc = relu(dot((p1 * p2).astype(bf16), wp_ref[...])
                   + bp_ref[...]).astype(bf16)                      # [tb, D_PROT_OUT]

        # fc1 = LowRankBilinearPooling(D_COMB, D_PROT_OUT, H_FC1, D_FC1); F.relu
        # combined = cat(x_attfp, x_neufp, x_gin) is pre-concatenated in the
        # wrapper -> one K=D_COMB contraction against the full wc1.
        c1 = relu(dot(xcomb_ref[...], wc1_ref[...]))                # [tb, H_FC1] f32
        c2 = relu(dot(enc, wc2_ref[...]))                           # [tb, H_FC1] f32
        h = relu(dot((c1 * c2).astype(bf16), wc_ref[...])
                 + bc_ref[...]).astype(bf16)                        # [tb, D_FC1]

        # fc2..fc4 + relu (bf16 right after relu: half the store traffic),
        # fc5 (padded to 128 lanes) + sigmoid.
        h = relu(dot(h, w2_ref[...]) + b2_ref[...]).astype(bf16)    # [tb, D_FC2]
        h = relu(dot(h, w3_ref[...]) + b3_ref[...]).astype(bf16)    # [tb, D_FC3]
        h = relu(dot(h, w4_ref[...]) + b4_ref[...]).astype(bf16)    # [tb, D_FC4_PAD]
        out_ref[...] = jax.nn.sigmoid(dot(h, w5_ref[...]) + b5_ref[...])


_WEIGHT_KEYS = ('wp1', 'wp2', 'wp', 'bp',
                'wc1', 'wc2', 'wc', 'bc',
                'w2', 'b2', 'w3', 'b3', 'w4', 'b4', 'w5', 'b5')


def _buffered_single_supported():
    """Narrow capability check for pipeline_mode=pl.Buffered(1) (no broad
    except around pallas_call, so genuine OOM/lowering errors still surface)."""
    if not hasattr(pl, "Buffered"):
        return False
    try:
        pl.BlockSpec((8, 128), lambda i: (0, 0), pipeline_mode=pl.Buffered(1))
    except TypeError:
        return False
    return True


_HAS_BUFFERED = _buffered_single_supported()


def _vmem_limit_bytes():
    # Use most of physical VMEM (128 MiB on v5e/v6e, 64 MiB on v7x), leaving
    # ~25% headroom for Mosaic internals and double-buffered activation tiles.
    cap = None
    try:
        cap = getattr(pltpu.get_tpu_info(), "vmem_capacity_bytes", None)
    except Exception:          # hardware query unavailable; fall back
        cap = None
    if not cap:
        cap = 64 * 1024 * 1024
    return min(100 * 1024 * 1024,
               max(32 * 1024 * 1024, (int(cap) * 3) // 4))


def _head_call(xcomb, gpf, lpf, params, *, force_stream_k=False):
    B = xcomb.shape[0]
    bf16 = jnp.bfloat16

    # v6e/v7x MXUs are 256-wide: prefer 256-row batch tiles, but only if the
    # grid keeps >=2 batch steps so v7x's two TensorCores both get work.
    tile_b = 256 if int(pl.cdiv(B, 256)) >= 2 else 128
    Bp = int(pl.cdiv(B, tile_b)) * tile_b

    def prep(x, d):
        # bf16 cast + pad in the wrapper (halves the activation DMA bytes;
        # fuses into the producer in practice).
        x = x.astype(bf16)
        if Bp != B:
            x = jnp.pad(x, ((0, Bp - B), (0, 0)))
        assert x.shape == (Bp, d)
        return x

    xcomb = prep(xcomb, D_COMB)
    gpf = prep(gpf, C1_GLOBAL)
    lpf = prep(lpf, C2_LOCAL)

    weights = [params[k] for k in _WEIGHT_KEYS]
    vmem_limit = _vmem_limit_bytes()

    weight_bytes = sum(int(w.size) * w.dtype.itemsize for w in weights)
    act_tile_bytes = tile_b * (D_COMB + C1_GLOBAL + C2_LOCAL) * 2
    resident_bytes = (weight_bytes + 2 * act_tile_bytes
                      + 2 * tile_b * D_OUT_PAD * 4 + tile_b * H_PROT * 4)
    # K-stream wp2 (the one huge weight at real dims) when the resident set
    # would not fit the VMEM budget (v7x: 64 MiB physical).
    stream_k = bool(force_stream_k) or resident_bytes > int(0.8 * vmem_limit)

    tk = C2_LOCAL
    if stream_k:
        for cand in (1024, 512, 256, 128):
            if cand < C2_LOCAL and C2_LOCAL % cand == 0:
                tk = cand
                break
    k_steps = C2_LOCAL // tk

    grid = (Bp // tile_b, k_steps)

    def act_spec(d):
        return pl.BlockSpec((tile_b, d), lambda i, k: (i, 0))

    def w_spec(shape):
        if _HAS_BUFFERED:
            # Grid-invariant weights: single VMEM buffer instead of the default
            # double buffer (halves the resident weight footprint; the
            # difference between fitting and OOM at real dims on v7x/v5e).
            return pl.BlockSpec(shape, lambda i, k: (0, 0),
                                pipeline_mode=pl.Buffered(1))
        return pl.BlockSpec(shape, lambda i, k: (0, 0))

    lpf_spec = pl.BlockSpec((tile_b, tk), lambda i, k: (i, k))
    if stream_k:
        # wp2 streamed over K: default double-buffering hides the chunk DMA.
        wp2_spec = pl.BlockSpec((tk, H_PROT), lambda i, k: (k, 0))
        # TODO(synk): if profiling at real dims shows the lpf tile DMA exposed,
        # raise lpf_spec to pipeline_mode=pl.Buffered(3).
    else:
        wp2_spec = w_spec((C2_LOCAL, H_PROT))

    in_specs = ([act_spec(D_COMB), act_spec(C1_GLOBAL), lpf_spec,
                 w_spec(weights[0].shape), wp2_spec]
                + [w_spec(w.shape) for w in weights[2:]])

    flops = 2 * Bp * (C1_GLOBAL * H_PROT + C2_LOCAL * H_PROT
                      + H_PROT * D_PROT_OUT
                      + D_COMB * H_FC1 + D_PROT_OUT * H_FC1 + H_FC1 * D_FC1
                      + D_FC1 * D_FC2 + D_FC2 * D_FC3 + D_FC3 * D_FC4_PAD
                      + D_FC4_PAD * D_OUT_PAD)
    bytes_accessed = (weight_bytes
                      + sum(int(a.size) * a.dtype.itemsize
                            for a in (xcomb, gpf, lpf))
                      + Bp * D_OUT_PAD * 4)
    cost = pl.CostEstimate(flops=int(flops),
                           transcendentals=int(Bp * D_OUT_PAD),
                           bytes_accessed=int(bytes_accessed))

    out = pl.pallas_call(
        _head_kernel,
        out_shape=jax.ShapeDtypeStruct((Bp, D_OUT_PAD), jnp.float32),
        grid=grid,
        in_specs=in_specs,
        out_specs=pl.BlockSpec((tile_b, D_OUT_PAD), lambda i, k: (i, 0)),
        scratch_shapes=[pltpu.VMEM((tile_b, H_PROT), jnp.float32)],
        compiler_params=pltpu.CompilerParams(
            dimension_semantics=("parallel", "arbitrary"),
            vmem_limit_bytes=int(vmem_limit)),
        cost_estimate=cost,
    )(xcomb, gpf, lpf, *weights)

    return out[:B, :D_FC5]


def multi_model_gnn_bind_head(x_attfp, x_neufp, x_gin, gpf, lpf, params,
                              *, force_stream_k=False):
    # combined = torch.cat((x_attfp, x_neufp, x_gin), dim=1)
    xcomb = jnp.concatenate([x_attfp, x_neufp, x_gin], axis=1)
    return _head_call(xcomb, gpf, lpf, params, force_stream_k=force_stream_k)


# ---------------------------------------------------------------------------
# Plain-JAX glue: deterministic params + GNN-encoder stand-ins + reference.
# ---------------------------------------------------------------------------
def _kaiming_uniform(key, shape, fan_in):
    bound = (6.0 / fan_in) ** 0.5
    return jax.random.uniform(key, shape, jnp.float32, -bound, bound)


def init_params(key):
    ks = jax.random.split(key, 16)
    bf16 = jnp.bfloat16
    p = {}
    # protein_encoder LRBP (proj1/proj2 bias-free, proj has a bias)
    p['wp1'] = _kaiming_uniform(ks[0], (C1_GLOBAL, H_PROT), C1_GLOBAL).astype(bf16)
    p['wp2'] = _kaiming_uniform(ks[1], (C2_LOCAL, H_PROT), C2_LOCAL).astype(bf16)
    p['wp'] = _kaiming_uniform(ks[2], (H_PROT, D_PROT_OUT), H_PROT).astype(bf16)
    p['bp'] = jnp.zeros((1, D_PROT_OUT), jnp.float32)
    # fc1 LRBP
    p['wc1'] = _kaiming_uniform(ks[3], (D_COMB, H_FC1), D_COMB).astype(bf16)
    p['wc2'] = _kaiming_uniform(ks[4], (D_PROT_OUT, H_FC1), D_PROT_OUT).astype(bf16)
    p['wc'] = _kaiming_uniform(ks[5], (H_FC1, D_FC1), H_FC1).astype(bf16)
    p['bc'] = jnp.zeros((1, D_FC1), jnp.float32)
    # fc2..fc3
    p['w2'] = _kaiming_uniform(ks[6], (D_FC1, D_FC2), D_FC1).astype(bf16)
    p['b2'] = jnp.zeros((1, D_FC2), jnp.float32)
    p['w3'] = _kaiming_uniform(ks[7], (D_FC2, D_FC3), D_FC2).astype(bf16)
    p['b3'] = jnp.zeros((1, D_FC3), jnp.float32)
    # fc4: output zero-padded 64 -> 128 lanes (lane-dense tail matmuls).
    w4 = _kaiming_uniform(ks[8], (D_FC3, D_FC4), D_FC3)
    p['w4'] = jnp.pad(w4, ((0, 0), (0, D_FC4_PAD - D_FC4))).astype(bf16)
    p['b4'] = jnp.zeros((1, D_FC4_PAD), jnp.float32)
    # fc5: rows padded 64 -> 128 (zero; matching fc4's zero lanes), output
    # zero-padded to 128 lanes so the final store is lane-dense.
    w5 = _kaiming_uniform(ks[9], (D_FC4, D_FC5), D_FC4)
    w5 = jnp.pad(w5, ((0, D_FC4_PAD - D_FC4), (0, D_OUT_PAD - D_FC5)))
    p['w5'] = w5.astype(bf16)
    p['b5'] = jnp.zeros((1, D_OUT_PAD), jnp.float32)
    # stand-in projections for the three graph encoders (plain-JAX path, f32)
    p['w_attfp'] = _kaiming_uniform(ks[10], (NUM_NODE_FEAT, D_GNN), NUM_NODE_FEAT)
    p['w_neufp'] = _kaiming_uniform(ks[11], (NUM_NODE_FEAT, D_GNN), NUM_NODE_FEAT)
    p['w_gin'] = _kaiming_uniform(ks[12], (NUM_NODE_FEAT, D_GNN), NUM_NODE_FEAT)
    return p


def gnn_standins(x_nodes, batch, num_graphs, params):
    # TODO(synk): AttentiveFP / NeuralFingerprint / GIN(jk='lstm') message passing
    # (edge_attr usage / dropout) has no clean Pallas equivalent here; replaced
    # with global_add_pool + linear stand-ins producing the same [B, 256-analogue] shapes.
    pooled = jax.ops.segment_sum(x_nodes, batch, num_segments=num_graphs)  # global_add_pool
    x_attfp = jax.nn.relu(pooled @ params['w_attfp'])
    x_neufp = jax.nn.relu(pooled @ params['w_neufp'])
    x_gin = jax.nn.relu(pooled @ params['w_gin'])
    return x_attfp, x_neufp, x_gin


def head_reference(xa, xn, xg, gpf, lpf, p):
    """Pure-JAX reference with the same bf16-operand / f32-accumulate recipe."""
    bf16 = jnp.bfloat16
    relu = jax.nn.relu
    dot = functools.partial(jnp.dot, preferred_element_type=jnp.float32)
    xcomb = jnp.concatenate([xa, xn, xg], axis=1).astype(bf16)
    p1 = relu(dot(gpf.astype(bf16), p['wp1']))
    p2 = relu(dot(lpf.astype(bf16), p['wp2']))
    enc = relu(dot((p1 * p2).astype(bf16), p['wp']) + p['bp'])
    c1 = relu(dot(xcomb, p['wc1']))
    c2 = relu(dot(enc.astype(bf16), p['wc2']))
    h = relu(dot((c1 * c2).astype(bf16), p['wc']) + p['bc'])
    h = relu(dot(h.astype(bf16), p['w2']) + p['b2'])
    h = relu(dot(h.astype(bf16), p['w3']) + p['b3'])
    h = relu(dot(h.astype(bf16), p['w4']) + p['b4'])
    out = jax.nn.sigmoid(dot(h.astype(bf16), p['w5']) + p['b5'])
    return out[:, :D_FC5]


if __name__ == "__main__":
    key = jax.random.PRNGKey(0)
    kp, kx, kg, kl = jax.random.split(key, 4)
    params = init_params(kp)

    B = 256                       # 2 grid steps of TILE_B=128 (keeps both v7x TCs busy)
    NODES_PER_GRAPH = 4
    N_NODES = B * NODES_PER_GRAPH
    x_nodes = jax.random.normal(kx, (N_NODES, NUM_NODE_FEAT), jnp.float32)   # data.x
    batch = jnp.repeat(jnp.arange(B, dtype=jnp.int32), NODES_PER_GRAPH)      # data.batch
    global_protein_features = jax.random.normal(kg, (B, C1_GLOBAL), jnp.float32)
    local_protein_features = jax.random.normal(kl, (B, C2_LOCAL), jnp.float32)

    x_attfp, x_neufp, x_gin = gnn_standins(x_nodes, batch, B, params)

    # Default (fully-resident weights) path.
    out = multi_model_gnn_bind_head(x_attfp, x_neufp, x_gin,
                                    global_protein_features,
                                    local_protein_features,
                                    params)
    out = jax.block_until_ready(out)

    # Also exercise the v7x-targeted K-streaming path (wp2 streamed over grid
    # axis 1 into the f32 accumulator) so it stays compiling and correct.
    out_stream = multi_model_gnn_bind_head(x_attfp, x_neufp, x_gin,
                                           global_protein_features,
                                           local_protein_features,
                                           params, force_stream_k=True)
    out_stream = jax.block_until_ready(out_stream)

    ref = head_reference(x_attfp, x_neufp, x_gin,
                         global_protein_features, local_protein_features, params)
    assert out.shape == (B, D_FC5) and out.dtype == jnp.float32
    assert bool(jnp.all((out >= 0.0) & (out <= 1.0)))        # sigmoid range
    assert bool(jnp.allclose(out, ref, atol=5e-3, rtol=5e-3))
    assert bool(jnp.allclose(out_stream, ref, atol=5e-3, rtol=5e-3))
    print("KERNEL_OK")
</pallas_src>

<mosaic_0001>
module attributes {stable_mosaic.version = 11 : i64} {
  func.func @_head_kernel(%arg0: i32, %arg1: i32, %arg2: memref<128x384xbf16, #tpu.memory_space<vmem>>, %arg3: memref<128x256xbf16, #tpu.memory_space<vmem>>, %arg4: memref<128x512xbf16, #tpu.memory_space<vmem>>, %arg5: memref<256x128xbf16, #tpu.memory_space<vmem>>, %arg6: memref<512x128xbf16, #tpu.memory_space<vmem>>, %arg7: memref<128x384xbf16, #tpu.memory_space<vmem>>, %arg8: memref<1x384xf32, #tpu.memory_space<vmem>>, %arg9: memref<384x256xbf16, #tpu.memory_space<vmem>>, %arg10: memref<384x256xbf16, #tpu.memory_space<vmem>>, %arg11: memref<256x512xbf16, #tpu.memory_space<vmem>>, %arg12: memref<1x512xf32, #tpu.memory_space<vmem>>, %arg13: memref<512x256xbf16, #tpu.memory_space<vmem>>, %arg14: memref<1x256xf32, #tpu.memory_space<vmem>>, %arg15: memref<256x128xbf16, #tpu.memory_space<vmem>>, %arg16: memref<1x128xf32, #tpu.memory_space<vmem>>, %arg17: memref<128x128xbf16, #tpu.memory_space<vmem>>, %arg18: memref<1x128xf32, #tpu.memory_space<vmem>>, %arg19: memref<128x128xbf16, #tpu.memory_space<vmem>>, %arg20: memref<1x128xf32, #tpu.memory_space<vmem>>, %arg21: memref<128x128xf32, #tpu.memory_space<vmem>>, %arg22: memref<128x128xf32, #tpu.memory_space<vmem>>) attributes {dimension_semantics = [#tpu.dimension_semantics<parallel>, #tpu.dimension_semantics<arbitrary>], iteration_bounds = array<i64: 2, 1>, scalar_prefetch = 0 : i64, scratch_operands = 1 : i64, tpu.core_type = #tpu.core_type<tc>, window_params = [{transform_indices = @transform_0, window_bounds = array<i64: 128, 384>}, {transform_indices = @transform_1, window_bounds = array<i64: 128, 256>}, {transform_indices = @transform_2, window_bounds = array<i64: 128, 512>}, {pipeline_mode = #tpu.pipeline_mode<synchronous>, transform_indices = @transform_3, window_bounds = array<i64: 256, 128>}, {pipeline_mode = #tpu.pipeline_mode<synchronous>, transform_indices = @transform_4, window_bounds = array<i64: 512, 128>}, {pipeline_mode = #tpu.pipeline_mode<synchronous>, transform_indices = @transform_5, window_bounds = array<i64: 128, 384>}, {pipeline_mode = #tpu.pipeline_mode<synchronous>, transform_indices = @transform_6, window_bounds = array<i64: 1, 384>}, {pipeline_mode = #tpu.pipeline_mode<synchronous>, transform_indices = @transform_7, window_bounds = array<i64: 384, 256>}, {pipeline_mode = #tpu.pipeline_mode<synchronous>, transform_indices = @transform_8, window_bounds = array<i64: 384, 256>}, {pipeline_mode = #tpu.pipeline_mode<synchronous>, transform_indices = @transform_9, window_bounds = array<i64: 256, 512>}, {pipeline_mode = #tpu.pipeline_mode<synchronous>, transform_indices = @transform_10, window_bounds = array<i64: 1, 512>}, {pipeline_mode = #tpu.pipeline_mode<synchronous>, transform_indices = @transform_11, window_bounds = array<i64: 512, 256>}, {pipeline_mode = #tpu.pipeline_mode<synchronous>, transform_indices = @transform_12, window_bounds = array<i64: 1, 256>}, {pipeline_mode = #tpu.pipeline_mode<synchronous>, transform_indices = @transform_13, window_bounds = array<i64: 256, 128>}, {pipeline_mode = #tpu.pipeline_mode<synchronous>, transform_indices = @transform_14, window_bounds = array<i64: 1, 128>}, {pipeline_mode = #tpu.pipeline_mode<synchronous>, transform_indices = @transform_15, window_bounds = array<i64: 128, 128>}, {pipeline_mode = #tpu.pipeline_mode<synchronous>, transform_indices = @transform_16, window_bounds = array<i64: 1, 128>}, {pipeline_mode = #tpu.pipeline_mode<synchronous>, transform_indices = @transform_17, window_bounds = array<i64: 128, 128>}, {pipeline_mode = #tpu.pipeline_mode<synchronous>, transform_indices = @transform_18, window_bounds = array<i64: 1, 128>}, {transform_indices = @transform_19, window_bounds = array<i64: 128, 128>}]} {
    %c0_i32 = arith.constant 0 : i32
    %0 = arith.cmpi eq, %arg1, %c0_i32 : i32
    %1 = arith.extui %0 : i1 to i32
    %c0_i32_0 = arith.constant 0 : i32
    %2 = arith.cmpi ne, %1, %c0_i32_0 : i32
    scf.if %2 {
      %cst_10 = arith.constant 0.000000e+00 : f32
      %12 = vector.broadcast %cst_10 : f32 to vector<128x128xf32>
      %c0_11 = arith.constant 0 : index
      %c0_12 = arith.constant 0 : index
      %13 = vector.load %arg22[%c0_11, %c0_12] : memref<128x128xf32, #tpu.memory_space<vmem>>, vector<128x128xf32>
      tpu.vector_store %arg22[%c0_11, %c0_12], %12 {strides = array<i32>} : memref<128x128xf32, #tpu.memory_space<vmem>>, vector<128x128xf32>,
    } else {
    }
    %c0 = arith.constant 0 : index
    %c0_1 = arith.constant 0 : index
    %3 = vector.load %arg22[%c0, %c0_1] : memref<128x128xf32, #tpu.memory_space<vmem>>, vector<128x128xf32>
    %c0_2 = arith.constant 0 : index
    %c0_3 = arith.constant 0 : index
    %4 = vector.load %arg4[%c0_2, %c0_3] : memref<128x512xbf16, #tpu.memory_space<vmem>>, vector<128x512xbf16>
    %c0_4 = arith.constant 0 : index
    %c0_5 = arith.constant 0 : index
    %5 = vector.load %arg6[%c0_4, %c0_5] : memref<512x128xbf16, #tpu.memory_space<vmem>>, vector<512x128xbf16>
    %cst = arith.constant dense<0.000000e+00> : vector<128x128xf32>
    %6 = tpu.matmul %4, %5, %cst {dimension_numbers = #tpu.dot_dimension_numbers<[1], [0], [0], [1], [0, 0, 1, 1], [], []>} : vector<128x512xbf16>, vector<512x128xbf16>, vector<128x128xf32> -> vector<128x128xf32>
    %7 = arith.addf %3, %6 : vector<128x128xf32>
    %c0_6 = arith.constant 0 : index
    %c0_7 = arith.constant 0 : index
    %8 = vector.load %arg22[%c0_6, %c0_7] : memref<128x128xf32, #tpu.memory_space<vmem>>, vector<128x128xf32>
    tpu.vector_store %arg22[%c0_6, %c0_7], %7 {strides = array<i32>} : memref<128x128xf32, #tpu.memory_space<vmem>>, vector<128x128xf32>,
    %c0_i32_8 = arith.constant 0 : i32
    %9 = arith.cmpi eq, %arg1, %c0_i32_8 : i32
    %10 = arith.extui %9 : i1 to i32
    %c0_i32_9 = arith.constant 0 : i32
    %11 = arith.cmpi ne, %10, %c0_i32_9 : i32
    scf.if %11 {
      %c0_10 = arith.constant 0 : index
      %c0_11 = arith.constant 0 : index
      %12 = vector.load %arg3[%c0_10, %c0_11] : memref<128x256xbf16, #tpu.memory_space<vmem>>, vector<128x256xbf16>
      %c0_12 = arith.constant 0 : index
      %c0_13 = arith.constant 0 : index
      %13 = vector.load %arg5[%c0_12, %c0_13] : memref<256x128xbf16, #tpu.memory_space<vmem>>, vector<256x128xbf16>
      %cst_14 = arith.constant dense<0.000000e+00> : vector<128x128xf32>
      %14 = tpu.matmul %12, %13, %cst_14 {dimension_numbers = #tpu.dot_dimension_numbers<[1], [0], [0], [1], [0, 0, 1, 1], [], []>} : vector<128x256xbf16>, vector<256x128xbf16>, vector<128x128xf32> -> vector<128x128xf32>
      %cst_15 = arith.constant 0.000000e+00 : f32
      %15 = vector.broadcast %cst_15 : f32 to vector<128x128xf32>
      %16 = arith.maximumf %14, %15 : vector<128x128xf32>
      %c0_16 = arith.constant 0 : index
      %c0_17 = arith.constant 0 : index
      %17 = vector.load %arg22[%c0_16, %c0_17] : memref<128x128xf32, #tpu.memory_space<vmem>>, vector<128x128xf32>
      %cst_18 = arith.constant 0.000000e+00 : f32
      %18 = vector.broadcast %cst_18 : f32 to vector<128x128xf32>
      %19 = arith.maximumf %17, %18 : vector<128x128xf32>
      %20 = arith.mulf %16, %19 : vector<128x128xf32>
      %21 = arith.truncf %20 : vector<128x128xf32> to vector<128x128xbf16>
      %c0_19 = arith.constant 0 : index
      %c0_20 = arith.constant 0 : index
      %22 = vector.load %arg7[%c0_19, %c0_20] : memref<128x384xbf16, #tpu.memory_space<vmem>>, vector<128x384xbf16>
      %cst_21 = arith.constant dense<0.000000e+00> : vector<128x384xf32>
      %23 = tpu.matmul %21, %22, %cst_21 {dimension_numbers = #tpu.dot_dimension_numbers<[1], [0], [0], [1], [0, 0, 1, 1], [], []>} : vector<128x128xbf16>, vector<128x384xbf16>, vector<128x384xf32> -> vector<128x384xf32>
      %c0_22 = arith.constant 0 : index
      %c0_23 = arith.constant 0 : index
      %24 = vector.load %arg8[%c0_22, %c0_23] : memref<1x384xf32, #tpu.memory_space<vmem>>, vector<1x384xf32>
      %25 = vector.broadcast %24 : vector<1x384xf32> to vector<128x384xf32>
      %26 = arith.addf %23, %25 : vector<128x384xf32>
      %cst_24 = arith.constant 0.000000e+00 : f32
      %27 = vector.broadcast %cst_24 : f32 to vector<128x384xf32>
      %28 = arith.maximumf %26, %27 : vector<128x384xf32>
      %29 = arith.truncf %28 : vector<128x384xf32> to vector<128x384xbf16>
      %c0_25 = arith.constant 0 : index
      %c0_26 = arith.constant 0 : index
      %30 = vector.load %arg2[%c0_25, %c0_26] : memref<128x384xbf16, #tpu.memory_space<vmem>>, vector<128x384xbf16>
      %c0_27 = arith.constant 0 : index
      %c0_28 = arith.constant 0 : index
      %31 = vector.load %arg9[%c0_27, %c0_28] : memref<384x256xbf16, #tpu.memory_space<vmem>>, vector<384x256xbf16>
      %cst_29 = arith.constant dense<0.000000e+00> : vector<128x256xf32>
      %32 = tpu.matmul %30, %31, %cst_29 {dimension_numbers = #tpu.dot_dimension_numbers<[1], [0], [0], [1], [0, 0, 1, 1], [], []>} : vector<128x384xbf16>, vector<384x256xbf16>, vector<128x256xf32> -> vector<128x256xf32>
      %cst_30 = arith.constant 0.000000e+00 : f32
      %33 = vector.broadcast %cst_30 : f32 to vector<128x256xf32>
      %34 = arith.maximumf %32, %33 : vector<128x256xf32>
      %c0_31 = arith.constant 0 : index
      %c0_32 = arith.constant 0 : index
      %35 = vector.load %arg10[%c0_31, %c0_32] : memref<384x256xbf16, #tpu.memory_space<vmem>>, vector<384x256xbf16>
      %cst_33 = arith.constant dense<0.000000e+00> : vector<128x256xf32>
      %36 = tpu.matmul %29, %35, %cst_33 {dimension_numbers = #tpu.dot_dimension_numbers<[1], [0], [0], [1], [0, 0, 1, 1], [], []>} : vector<128x384xbf16>, vector<384x256xbf16>, vector<128x256xf32> -> vector<128x256xf32>
      %cst_34 = arith.constant 0.000000e+00 : f32
      %37 = vector.broadcast %cst_34 : f32 to vector<128x256xf32>
      %38 = arith.maximumf %36, %37 : vector<128x256xf32>
      %39 = arith.mulf %34, %38 : vector<128x256xf32>
      %40 = arith.truncf %39 : vector<128x256xf32> to vector<128x256xbf16>
      %c0_35 = arith.constant 0 : index
      %c0_36 = arith.constant 0 : index
      %41 = vector.load %arg11[%c0_35, %c0_36] : memref<256x512xbf16, #tpu.memory_space<vmem>>, vector<256x512xbf16>
      %cst_37 = arith.constant dense<0.000000e+00> : vector<128x512xf32>
      %42 = tpu.matmul %40, %41, %cst_37 {dimension_numbers = #tpu.dot_dimension_numbers<[1], [0], [0], [1], [0, 0, 1, 1], [], []>} : vector<128x256xbf16>, vector<256x512xbf16>, vector<128x512xf32> -> vector<128x512xf32>
      %c0_38 = arith.constant 0 : index
      %c0_39 = arith.constant 0 : index
      %43 = vector.load %arg12[%c0_38, %c0_39] : memref<1x512xf32, #tpu.memory_space<vmem>>, vector<1x512xf32>
      %44 = vector.broadcast %43 : vector<1x512xf32> to vector<128x512xf32>
      %45 = arith.addf %42, %44 : vector<128x512xf32>
      %cst_40 = arith.constant 0.000000e+00 : f32
      %46 = vector.broadcast %cst_40 : f32 to vector<128x512xf32>
      %47 = arith.maximumf %45, %46 : vector<128x512xf32>
      %48 = arith.truncf %47 : vector<128x512xf32> to vector<128x512xbf16>
      %c0_41 = arith.constant 0 : index
      %c0_42 = arith.constant 0 : index
      %49 = vector.load %arg13[%c0_41, %c0_42] : memref<512x256xbf16, #tpu.memory_space<vmem>>, vector<512x256xbf16>
      %cst_43 = arith.constant dense<0.000000e+00> : vector<128x256xf32>
      %50 = tpu.matmul %48, %49, %cst_43 {dimension_numbers = #tpu.dot_dimension_numbers<[1], [0], [0], [1], [0, 0, 1, 1], [], []>} : vector<128x512xbf16>, vector<512x256xbf16>, vector<128x256xf32> -> vector<128x256xf32>
      %c0_44 = arith.constant 0 : index
      %c0_45 = arith.constant 0 : index
      %51 = vector.load %arg14[%c0_44, %c0_45] : memref<1x256xf32, #tpu.memory_space<vmem>>, vector<1x256xf32>
      %52 = vector.broadcast %51 : vector<1x256xf32> to vector<128x256xf32>
      %53 = arith.addf %50, %52 : vector<128x256xf32>
      %cst_46 = arith.constant 0.000000e+00 : f32
      %54 = vector.broadcast %cst_46 : f32 to vector<128x256xf32>
      %55 = arith.maximumf %53, %54 : vector<128x256xf32>
      %56 = arith.truncf %55 : vector<128x256xf32> to vector<128x256xbf16>
      %c0_47 = arith.constant 0 : index
      %c0_48 = arith.constant 0 : index
      %57 = vector.load %arg15[%c0_47, %c0_48] : memref<256x128xbf16, #tpu.memory_space<vmem>>, vector<256x128xbf16>
      %cst_49 = arith.constant dense<0.000000e+00> : vector<128x128xf32>
      %58 = tpu.matmul %56, %57, %cst_49 {dimension_numbers = #tpu.dot_dimension_numbers<[1], [0], [0], [1], [0, 0, 1, 1], [], []>} : vector<128x256xbf16>, vector<256x128xbf16>, vector<128x128xf32> -> vector<128x128xf32>
      %c0_50 = arith.constant 0 : index
      %c0_51 = arith.constant 0 : index
      %59 = vector.load %arg16[%c0_50, %c0_51] : memref<1x128xf32, #tpu.memory_space<vmem>>, vector<1x128xf32>
      %60 = vector.broadcast %59 : vector<1x128xf32> to vector<128x128xf32>
      %61 = arith.addf %58, %60 : vector<128x128xf32>
      %cst_52 = arith.constant 0.000000e+00 : f32
      %62 = vector.broadcast %cst_52 : f32 to vector<128x128xf32>
      %63 = arith.maximumf %61, %62 : vector<128x128xf32>
      %64 = arith.truncf %63 : vector<128x128xf32> to vector<128x128xbf16>
      %c0_53 = arith.constant 0 : index
      %c0_54 = arith.constant 0 : index
      %65 = vector.load %arg17[%c0_53, %c0_54] : memref<128x128xbf16, #tpu.memory_space<vmem>>, vector<128x128xbf16>
      %cst_55 = arith.constant dense<0.000000e+00> : vector<128x128xf32>
      %66 = tpu.matmul %64, %65, %cst_55 {dimension_numbers = #tpu.dot_dimension_numbers<[1], [0], [0], [1], [0, 0, 1, 1], [], []>} : vector<128x128xbf16>, vector<128x128xbf16>, vector<128x128xf32> -> vector<128x128xf32>
      %c0_56 = arith.constant 0 : index
      %c0_57 = arith.constant 0 : index
      %67 = vector.load %arg18[%c0_56, %c0_57] : memref<1x128xf32, #tpu.memory_space<vmem>>, vector<1x128xf32>
      %68 = vector.broadcast %67 : vector<1x128xf32> to vector<128x128xf32>
      %69 = arith.addf %66, %68 : vector<128x128xf32>
      %cst_58 = arith.constant 0.000000e+00 : f32
      %70 = vector.broadcast %cst_58 : f32 to vector<128x128xf32>
      %71 = arith.maximumf %69, %70 : vector<128x128xf32>
      %72 = arith.truncf %71 : vector<128x128xf32> to vector<128x128xbf16>
      %c0_59 = arith.constant 0 : index
      %c0_60 = arith.constant 0 : index
      %73 = vector.load %arg19[%c0_59, %c0_60] : memref<128x128xbf16, #tpu.memory_space<vmem>>, vector<128x128xbf16>
      %cst_61 = arith.constant dense<0.000000e+00> : vector<128x128xf32>
      %74 = tpu.matmul %72, %73, %cst_61 {dimension_numbers = #tpu.dot_dimension_numbers<[1], [0], [0], [1], [0, 0, 1, 1], [], []>} : vector<128x128xbf16>, vector<128x128xbf16>, vector<128x128xf32> -> vector<128x128xf32>
      %c0_62 = arith.constant 0 : index
      %c0_63 = arith.constant 0 : index
      %75 = vector.load %arg20[%c0_62, %c0_63] : memref<1x128xf32, #tpu.memory_space<vmem>>, vector<1x128xf32>
      %76 = vector.broadcast %75 : vector<1x128xf32> to vector<128x128xf32>
      %77 = arith.addf %74, %76 : vector<128x128xf32>
      %78 = arith.negf %77 : vector<128x128xf32>
      %79 = math.exp %78 : vector<128x128xf32>
      %cst_64 = arith.constant 1.000000e+00 : f32
      %80 = vector.broadcast %cst_64 : f32 to vector<128x128xf32>
      %81 = arith.addf %80, %79 : vector<128x128xf32>
      %82 = arith.divf %80, %81 : vector<128x128xf32>
      %c0_65 = arith.constant 0 : index
      %c0_66 = arith.constant 0 : index
      %83 = vector.load %arg21[%c0_65, %c0_66] : memref<128x128xf32, #tpu.memory_space<vmem>>, vector<128x128xf32>
      tpu.vector_store %arg21[%c0_65, %c0_66], %82 {strides = array<i32>} : memref<128x128xf32, #tpu.memory_space<vmem>>, vector<128x128xf32>,
    } else {
    }
    return
  }
  func.func @transform_0(%arg0: i32, %arg1: i32) -> (i32, i32) {
    %c0_i32 = arith.constant 0 : i32
    %c0_i32_0 = arith.constant 0 : i32
    return %arg0, %c0_i32 : i32, i32
  }
  func.func @transform_1(%arg0: i32, %arg1: i32) -> (i32, i32) {
    %c0_i32 = arith.constant 0 : i32
    %c0_i32_0 = arith.constant 0 : i32
    return %arg0, %c0_i32 : i32, i32
  }
  func.func @transform_2(%arg0: i32, %arg1: i32) -> (i32, i32) {
    %c0_i32 = arith.constant 0 : i32
    return %arg0, %arg1 : i32, i32
  }
  func.func @transform_3(%arg0: i32, %arg1: i32) -> (i32, i32) {
    %c0_i32 = arith.constant 0 : i32
    %c0_i32_0 = arith.constant 0 : i32
    %c0_i32_1 = arith.constant 0 : i32
    return %c0_i32, %c0_i32_0 : i32, i32
  }
  func.func @transform_4(%arg0: i32, %arg1: i32) -> (i32, i32) {
    %c0_i32 = arith.constant 0 : i32
    %c0_i32_0 = arith.constant 0 : i32
    %c0_i32_1 = arith.constant 0 : i32
    return %c0_i32, %c0_i32_0 : i32, i32
  }
  func.func @transform_5(%arg0: i32, %arg1: i32) -> (i32, i32) {
    %c0_i32 = arith.constant 0 : i32
    %c0_i32_0 = arith.constant 0 : i32
    %c0_i32_1 = arith.constant 0 : i32
    return %c0_i32, %c0_i32_0 : i32, i32
  }
  func.func @transform_6(%arg0: i32, %arg1: i32) -> (i32, i32) {
    %c0_i32 = arith.constant 0 : i32
    %c0_i32_0 = arith.constant 0 : i32
    %c0_i32_1 = arith.constant 0 : i32
    return %c0_i32, %c0_i32_0 : i32, i32
  }
  func.func @transform_7(%arg0: i32, %arg1: i32) -> (i32, i32) {
    %c0_i32 = arith.constant 0 : i32
    %c0_i32_0 = arith.constant 0 : i32
    %c0_i32_1 = arith.constant 0 : i32
    return %c0_i32, %c0_i32_0 : i32, i32
  }
  func.func @transform_8(%arg0: i32, %arg1: i32) -> (i32, i32) {
    %c0_i32 = arith.constant 0 : i32
    %c0_i32_0 = arith.constant 0 : i32
    %c0_i32_1 = arith.constant 0 : i32
    return %c0_i32, %c0_i32_0 : i32, i32
  }
  func.func @transform_9(%arg0: i32, %arg1: i32) -> (i32, i32) {
    %c0_i32 = arith.constant 0 : i32
    %c0_i32_0 = arith.constant 0 : i32
    %c0_i32_1 = arith.constant 0 : i32
    return %c0_i32, %c0_i32_0 : i32, i32
  }
  func.func @transform_10(%arg0: i32, %arg1: i32) -> (i32, i32) {
    %c0_i32 = arith.constant 0 : i32
    %c0_i32_0 = arith.constant 0 : i32
    %c0_i32_1 = arith.constant 0 : i32
    return %c0_i32, %c0_i32_0 : i32, i32
  }
  func.func @transform_11(%arg0: i32, %arg1: i32) -> (i32, i32) {
    %c0_i32 = arith.constant 0 : i32
    %c0_i32_0 = arith.constant 0 : i32
    %c0_i32_1 = arith.constant 0 : i32
    return %c0_i32, %c0_i32_0 : i32, i32
  }
  func.func @transform_12(%arg0: i32, %arg1: i32) -> (i32, i32) {
    %c0_i32 = arith.constant 0 : i32
    %c0_i32_0 = arith.constant 0 : i32
    %c0_i32_1 = arith.constant 0 : i32
    return %c0_i32, %c0_i32_0 : i32, i32
  }
  func.func @transform_13(%arg0: i32, %arg1: i32) -> (i32, i32) {
    %c0_i32 = arith.constant 0 : i32
    %c0_i32_0 = arith.constant 0 : i32
    %c0_i32_1 = arith.constant 0 : i32
    return %c0_i32, %c0_i32_0 : i32, i32
  }
  func.func @transform_14(%arg0: i32, %arg1: i32) -> (i32, i32) {
    %c0_i32 = arith.constant 0 : i32
    %c0_i32_0 = arith.constant 0 : i32
    %c0_i32_1 = arith.constant 0 : i32
    return %c0_i32, %c0_i32_0 : i32, i32
  }
  func.func @transform_15(%arg0: i32, %arg1: i32) -> (i32, i32) {
    %c0_i32 = arith.constant 0 : i32
    %c0_i32_0 = arith.constant 0 : i32
    %c0_i32_1 = arith.constant 0 : i32
    return %c0_i32, %c0_i32_0 : i32, i32
  }
  func.func @transform_16(%arg0: i32, %arg1: i32) -> (i32, i32) {
    %c0_i32 = arith.constant 0 : i32
    %c0_i32_0 = arith.constant 0 : i32
    %c0_i32_1 = arith.constant 0 : i32
    return %c0_i32, %c0_i32_0 : i32, i32
  }
  func.func @transform_17(%arg0: i32, %arg1: i32) -> (i32, i32) {
    %c0_i32 = arith.constant 0 : i32
    %c0_i32_0 = arith.constant 0 : i32
    %c0_i32_1 = arith.constant 0 : i32
    return %c0_i32, %c0_i32_0 : i32, i32
  }
  func.func @transform_18(%arg0: i32, %arg1: i32) -> (i32, i32) {
    %c0_i32 = arith.constant 0 : i32
    %c0_i32_0 = arith.constant 0 : i32
    %c0_i32_1 = arith.constant 0 : i32
    return %c0_i32, %c0_i32_0 : i32, i32
  }
  func.func @transform_19(%arg0: i32, %arg1: i32) -> (i32, i32) {
    %c0_i32 = arith.constant 0 : i32
    %c0_i32_0 = arith.constant 0 : i32
    return %arg0, %c0_i32 : i32, i32
  }
}

</mosaic_0001>

<llo_original>
// kernel: tpu_custom_call.1
$region0: #{tpu_custom_call.1}
  #allocation0 [shape = 'u32[]', space=smem, size = 0x4, offset = 0x4, fixed_abs, tag = 'smem constant byte address 0x4 - core index']
  #allocation1 [shape = 'u32[144,128]{1,0:T(1,128)}', space=vmem, size = 0x12000, scoped, tag = 'internal scratch']
  #allocation2 [shape = 'f32[128,128]{1,0:T(8,128)}', space=vmem, size = 0x10000, scoped, tag = 'scratch operand']
  %s0 = inlined_call_operand.hbm [shape: bf16[256,384], index: 0, kind: input, shape index: {}]
  %s1 = inlined_call_operand.hbm [shape: bf16[256,256], index: 1, kind: input, shape index: {}]
  %s2 = inlined_call_operand.hbm [shape: bf16[256,512], index: 2, kind: input, shape index: {}]
  %s3 = inlined_call_operand.hbm [shape: bf16[256,128], index: 3, kind: input, shape index: {}]
  %s4 = inlined_call_operand.hbm [shape: bf16[512,128], index: 4, kind: input, shape index: {}]
  %s5 = inlined_call_operand.hbm [shape: bf16[128,384], index: 5, kind: input, shape index: {}]
  %s6 = inlined_call_operand.vmem [shape: f32[1,384], index: 6, kind: input, shape index: {}]
  %s7 = inlined_call_operand.hbm [shape: bf16[384,256], index: 7, kind: input, shape index: {}]
  %s8 = inlined_call_operand.hbm [shape: bf16[384,256], index: 8, kind: input, shape index: {}]
  %s9 = inlined_call_operand.hbm [shape: bf16[256,512], index: 9, kind: input, shape index: {}]
  %s10 = inlined_call_operand.vmem [shape: f32[1,512], index: 10, kind: input, shape index: {}]
  %s11 = inlined_call_operand.hbm [shape: bf16[512,256], index: 11, kind: input, shape index: {}]
  %s12 = inlined_call_operand.vmem [shape: f32[1,256], index: 12, kind: input, shape index: {}]
  %s13 = inlined_call_operand.hbm [shape: bf16[256,128], index: 13, kind: input, shape index: {}]
  %s14 = inlined_call_operand.vmem [shape: f32[1,128], index: 14, kind: input, shape index: {}]
  %s15 = inlined_call_operand.hbm [shape: bf16[128,128], index: 15, kind: input, shape index: {}]
  %s16 = inlined_call_operand.vmem [shape: f32[1,128], index: 16, kind: input, shape index: {}]
  %s17 = inlined_call_operand.hbm [shape: bf16[128,128], index: 17, kind: input, shape index: {}]
  %s18 = inlined_call_operand.vmem [shape: f32[1,128], index: 18, kind: input, shape index: {}]
  %s19 = inlined_call_operand.hbm [shape: f32[256,128], index: 19, kind: output, shape index: {}]
  %s20 = sld [smem:[#allocation0]]
  $region169: #{tpu_custom_call.1} parent=0
    _
  %s22 = ssub.s32 1, %s20
  %s23 = scalar_select 0, %s22, %s20
  $region1: #{tpu_custom_call.1} parent=0
    #allocation3 [shape = 'u8[196608]{0}', space=vmem, size = 0x30000, scoped, tag = 'input window, operand 0']
    #allocation4 [shape = 's32[2]{0}', space=sflag, size = 0x8, scoped, tag = 'scoped memory for tpu_custom_call.1']
    #allocation5 [shape = 's32[2]{0}', space=sflag, size = 0x8, scoped, tag = 'scoped memory for tpu_custom_call.1']
    #allocation6 [shape = 'u8[131072]{0}', space=vmem, size = 0x20000, scoped, tag = 'input window, operand 1']
    #allocation7 [shape = 's32[2]{0}', space=sflag, size = 0x8, scoped, tag = 'scoped memory for tpu_custom_call.1']
    #allocation8 [shape = 'u8[262144]{0}', space=vmem, size = 0x40000, scoped, tag = 'input window, operand 2']
    #allocation9 [shape = 'u8[65536]{0}', space=vmem, size = 0x10000, scoped, tag = 'input window, operand 3, single buffered']
    #allocation10 [shape = 's32[1]{0}', space=sflag, size = 0x4, scoped, tag = 'scoped memory for tpu_custom_call.1']
    #allocation11 [shape = 'u8[131072]{0}', space=vmem, size = 0x20000, scoped, tag = 'input window, operand 4, single buffered']
    #allocation12 [shape = 'u8[98304]{0}', space=vmem, size = 0x18000, scoped, tag = 'input window, operand 5, single buffered']
    #allocation13 [shape = 's32[1]{0}', space=sflag, size = 0x4, scoped, tag = 'scoped memory for tpu_custom_call.1']
    #allocation14 [shape = 'u8[196608]{0}', space=vmem, size = 0x30000, scoped, tag = 'input window, operand 7, single buffered']
    #allocation15 [shape = 'u8[196608]{0}', space=vmem, size = 0x30000, scoped, tag = 'input window, operand 8, single buffered']
    #allocation16 [shape = 's32[1]{0}', space=sflag, size = 0x4, scoped, tag = 'scoped memory for tpu_custom_call.1']
    #allocation17 [shape = 'u8[262144]{0}', space=vmem, size = 0x40000, scoped, tag = 'input window, operand 9, single buffered']
    #allocation18 [shape = 'u8[262144]{0}', space=vmem, size = 0x40000, scoped, tag = 'input window, operand 11, single buffered']
    #allocation19 [shape = 's32[1]{0}', space=sflag, size = 0x4, scoped, tag = 'scoped memory for tpu_custom_call.1']
    #allocation20 [shape = 'u8[65536]{0}', space=vmem, size = 0x10000, scoped, tag = 'input window, operand 13, single buffered']
    #allocation21 [shape = 'u8[32768]{0}', space=vmem, size = 0x8000, scoped, tag = 'input window, operand 15, single buffered']
    #allocation22 [shape = 's32[1]{0}', space=sflag, size = 0x4, scoped, tag = 'scoped memory for tpu_custom_call.1']
    #allocation23 [shape = 'u8[32768]{0}', space=vmem, size = 0x8000, scoped, tag = 'input window, operand 17, single buffered']
    #allocation24 [shape = 'u8[131072]{0}', space=vmem, size = 0x20000, scoped, tag = 'output window, operand 0']
    %24 = vsyncpa [#allocation4], 0
    %s25 = scalar_lea.sflag [#allocation4], 1
    %26 = vsyncpa %s25, 0
    %27 = vsyncpa [#allocation7], 0
    %s28 = scalar_lea.sflag [#allocation7], 1
    %29 = vsyncpa %s28, 0
    %30 = vsyncpa [#allocation10], 0
    %31 = vsyncpa [#allocation13], 0
    %32 = vsyncpa [#allocation16], 0
    %33 = vsyncpa [#allocation19], 0
    %34 = vsyncpa [#allocation22], 0
    %35 = vsyncpa [#allocation5], 0
    %s36 = scalar_lea.sflag [#allocation5], 1
    %37 = vsyncpa %s36, 0
    loop: start=0, step=1, limit=4
    $region2: #{tpu_custom_call.1} parent=1 // loop_pre_header
      _
    $region3: #{tpu_custom_call.1} parent=1 // loop_header
      %s39 = sphi 0, %s43
      %p40 = scmp.ge.s32.totalorder %s39, 4
      %s46 = sphi 0, %s58
      %s47 = sphi 0, %s54
      %s48 = sphi 0, %s46
      %s49 = sphi 0, %s47
      %s50 = sphi 0, %s48
      %s51 = sphi 0, %s49
      %s61 = sphi 0, %s63
      %s64 = sphi 0, %s61
      %s65 = sphi 0, %s64
      %s81 = sphi 0, %s65
      %s87 = sphi 0, %s89
      %s90 = sphi 0, %s87
      %s91 = sphi 0, %s90
      %s107 = sphi 0, %s91
      %s115 = sphi 0, %s117
      %s118 = sphi 0, %s115
      %s119 = sphi 0, %s118
      %s135 = sphi 0, %s119
      %s139 = sphi 0, %s139
      %s141 = sphi 0, %s139
      %s142 = sphi 0, %s141
      %s156 = sphi 0, %s142
      %s160 = sphi 0, %s160
      %s162 = sphi 0, %s160
      %s163 = sphi 0, %s162
      %s177 = sphi 0, %s163
      %s181 = sphi 0, %s181
      %s183 = sphi 0, %s181
      %s184 = sphi 0, %s183
      %s198 = sphi 0, %s184
      %s202 = sphi 0, %s202
      %s204 = sphi 0, %s202
      %s205 = sphi 0, %s204
      %s219 = sphi 0, %s205
      %s223 = sphi 0, %s223
      %s225 = sphi 0, %s223
      %s226 = sphi 0, %s225
      %s240 = sphi 0, %s226
      %s244 = sphi 0, %s244
      %s246 = sphi 0, %s244
      %s247 = sphi 0, %s246
      %s261 = sphi 0, %s247
      %s265 = sphi 0, %s265
      %s267 = sphi 0, %s265
      %s268 = sphi 0, %s267
      %s282 = sphi 0, %s268
      %s286 = sphi 0, %s286
      %s288 = sphi 0, %s286
      %s289 = sphi 0, %s288
      %s303 = sphi 0, %s289
      %s307 = sphi 0, %s307
      %s309 = sphi 0, %s307
      %s310 = sphi 0, %s309
      %s324 = sphi 0, %s310
      %s328 = sphi 0, %s328
      %s330 = sphi 0, %s328
      %s331 = sphi 0, %s330
      %s345 = sphi 0, %s331
      %s349 = sphi 0, %s349
      %s351 = sphi 0, %s349
      %s352 = sphi 0, %s351
      %s366 = sphi 0, %s352
      %s370 = sphi 0, %s370
      %s372 = sphi 0, %s370
      %s373 = sphi 0, %s372
      %s387 = sphi 0, %s373
      %s391 = sphi 0, %s391
      %s393 = sphi 0, %s391
      %s394 = sphi 0, %s393
      %s408 = sphi 0, %s394
      %s412 = sphi 0, %s412
      %s414 = sphi 0, %s412
      %s415 = sphi 0, %s414
      %s429 = sphi 0, %s415
      %s433 = sphi 0, %s433
      %s435 = sphi 0, %s433
      %s436 = sphi 0, %s435
      %s450 = sphi 0, %s436
      %s454 = sphi 0, %s454
      %s456 = sphi 0, %s454
      %s457 = sphi 0, %s456
      %s471 = sphi 0, %s457
      %s477 = sphi 0, %s479
      %s480 = sphi 0, %s477
      %s481 = sphi 0, %s480
      %s497 = sphi 0, %s481
    $region4: #{tpu_custom_call.1} parent=1 // loop_header_branch
      %42 = sbr.rel (%p40) target = $region8
    $region5: #{tpu_custom_call.1} parent=1 // loop_body
      %s44 = ssub.s32 %s39, 1
      %s45 = ssub.s32 %s39, 2
      %s52 = sadd.s32 1, %s47
      %p53 = scmp.ge.s32.totalorder %s52, 1
      %s54 = scalar_select %p53, 0, %s52
      %s55 = sadd.s32 1, %s46
      %s56 = scalar_select %p53, %s55, %s46
      %p57 = scmp.ge.s32.totalorder %s56, 2
      %s58 = scalar_select %p57, 0, %s56
      %s59 = ssub.s32 %s46, %s58
      %p60 = scmp.eq.s32.totalorder %s59, 0
      %s62 = sadd.s32 %s61, 1
      %s63 = scalar_select %p60, %s61, %s62
      %p66 = pneg %p60
      %p67 = scmp.eq.s32.totalorder %s39, 1
      %p68 = por %p66, %p67
      %p69 = scmp.ne.s32.totalorder %s61, %s64
      %p70 = scmp.eq.s32.totalorder %s39, 0
      %p71 = por %p69, %p70
      %p72 = scmp.ne.s32.totalorder %s61, %s64
      %p73 = scmp.eq.s32.totalorder %s44, 1
      %p74 = por %p72, %p73
      %p75 = scmp.ne.s32.totalorder %s64, %s65
      %p76 = scmp.eq.s32.totalorder %s44, 0
      %p77 = por %p75, %p76
      %p78 = scmp.ne.s32.totalorder %s64, %s65
      %p79 = scmp.eq.s32.totalorder %s45, 1
      %p80 = por %p78, %p79
      %p82 = scmp.ne.s32.totalorder %s65, %s81
      %p83 = scmp.eq.s32.totalorder %s45, 0
      %p84 = por %p82, %p83
      %s85 = ssub.s32 %s46, %s58
      %p86 = scmp.eq.s32.totalorder %s85, 0
      %s88 = sadd.s32 %s87, 1
      %s89 = scalar_select %p86, %s87, %s88
      %p92 = pneg %p86
      %p93 = scmp.eq.s32.totalorder %s39, 1
      %p94 = por %p92, %p93
      %p95 = scmp.ne.s32.totalorder %s87, %s90
      %p96 = scmp.eq.s32.totalorder %s39, 0
      %p97 = por %p95, %p96
      %p98 = scmp.ne.s32.totalorder %s87, %s90
      %p99 = scmp.eq.s32.totalorder %s44, 1
      %p100 = por %p98, %p99
      %p101 = scmp.ne.s32.totalorder %s90, %s91
      %p102 = scmp.eq.s32.totalorder %s44, 0
      %p103 = por %p101, %p102
      %p104 = scmp.ne.s32.totalorder %s90, %s91
      %p105 = scmp.eq.s32.totalorder %s45, 1
      %p106 = por %p104, %p105
      %p108 = scmp.ne.s32.totalorder %s91, %s107
      %p109 = scmp.eq.s32.totalorder %s45, 0
      %p110 = por %p108, %p109
      %s111 = ssub.s32 %s46, %s58
      %s112 = ssub.s32 %s47, %s54
      %s113 = sor.u32 %s111, %s112
      %p114 = scmp.eq.s32.totalorder %s113, 0
      %s116 = sadd.s32 %s115, 1
      %s117 = scalar_select %p114, %s115, %s116
      %p120 = pneg %p114
      %p121 = scmp.eq.s32.totalorder %s39, 1
      %p122 = por %p120, %p121
      %p123 = scmp.ne.s32.totalorder %s115, %s118
      %p124 = scmp.eq.s32.totalorder %s39, 0
      %p125 = por %p123, %p124
      %p126 = scmp.ne.s32.totalorder %s115, %s118
      %p127 = scmp.eq.s32.totalorder %s44, 1
      %p128 = por %p126, %p127
      %p129 = scmp.ne.s32.totalorder %s118, %s119
      %p130 = scmp.eq.s32.totalorder %s44, 0
      %p131 = por %p129, %p130
      %p132 = scmp.ne.s32.totalorder %s118, %s119
      %p133 = scmp.eq.s32.totalorder %s45, 1
      %p134 = por %p132, %p133
      %p136 = scmp.ne.s32.totalorder %s119, %s135
      %p137 = scmp.eq.s32.totalorder %s45, 0
      %p138 = por %p136, %p137
      %s140 = sadd.s32 %s139, 1
      %p143 = scmp.eq.s32.totalorder %s39, 1
      %p144 = scmp.ne.s32.totalorder %s139, %s141
      %p145 = scmp.eq.s32.totalorder %s39, 0
      %p146 = por %p144, %p145
      %p147 = scmp.ne.s32.totalorder %s139, %s141
      %p148 = scmp.eq.s32.totalorder %s44, 1
      %p149 = por %p147, %p148
      %p150 = scmp.ne.s32.totalorder %s141, %s142
      %p151 = scmp.eq.s32.totalorder %s44, 0
      %p152 = por %p150, %p151
      %p153 = scmp.ne.s32.totalorder %s141, %s142
      %p154 = scmp.eq.s32.totalorder %s45, 1
      %p155 = por %p153, %p154
      %p157 = scmp.ne.s32.totalorder %s142, %s156
      %p158 = scmp.eq.s32.totalorder %s45, 0
      %p159 = por %p157, %p158
      %s161 = sadd.s32 %s160, 1
      %p164 = scmp.eq.s32.totalorder %s39, 1
      %p165 = scmp.ne.s32.totalorder %s160, %s162
      %p166 = scmp.eq.s32.totalorder %s39, 0
      %p167 = por %p165, %p166
      %p168 = scmp.ne.s32.totalorder %s160, %s162
      %p169 = scmp.eq.s32.totalorder %s44, 1
      %p170 = por %p168, %p169
      %p171 = scmp.ne.s32.totalorder %s162, %s163
      %p172 = scmp.eq.s32.totalorder %s44, 0
      %p173 = por %p171, %p172
      %p174 = scmp.ne.s32.totalorder %s162, %s163
      %p175 = scmp.eq.s32.totalorder %s45, 1
      %p176 = por %p174, %p175
      %p178 = scmp.ne.s32.totalorder %s163, %s177
      %p179 = scmp.eq.s32.totalorder %s45, 0
      %p180 = por %p178, %p179
      %s182 = sadd.s32 %s181, 1
      %p185 = scmp.eq.s32.totalorder %s39, 1
      %p186 = scmp.ne.s32.totalorder %s181, %s183
      %p187 = scmp.eq.s32.totalorder %s39, 0
      %p188 = por %p186, %p187
      %p189 = scmp.ne.s32.totalorder %s181, %s183
      %p190 = scmp.eq.s32.totalorder %s44, 1
      %p191 = por %p189, %p190
      %p192 = scmp.ne.s32.totalorder %s183, %s184
      %p193 = scmp.eq.s32.totalorder %s44, 0
      %p194 = por %p192, %p193
      %p195 = scmp.ne.s32.totalorder %s183, %s184
      %p196 = scmp.eq.s32.totalorder %s45, 1
      %p197 = por %p195, %p196
      %p199 = scmp.ne.s32.totalorder %s184, %s198
      %p200 = scmp.eq.s32.totalorder %s45, 0
      %p201 = por %p199, %p200
      %s203 = sadd.s32 %s202, 1
      %p206 = scmp.eq.s32.totalorder %s39, 1
      %p207 = scmp.ne.s32.totalorder %s202, %s204
      %p208 = scmp.eq.s32.totalorder %s39, 0
      %p209 = por %p207, %p208
      %p210 = scmp.ne.s32.totalorder %s202, %s204
      %p211 = scmp.eq.s32.totalorder %s44, 1
      %p212 = por %p210, %p211
      %p213 = scmp.ne.s32.totalorder %s204, %s205
      %p214 = scmp.eq.s32.totalorder %s44, 0
      %p215 = por %p213, %p214
      %p216 = scmp.ne.s32.totalorder %s204, %s205
      %p217 = scmp.eq.s32.totalorder %s45, 1
      %p218 = por %p216, %p217
      %p220 = scmp.ne.s32.totalorder %s205, %s219
      %p221 = scmp.eq.s32.totalorder %s45, 0
      %p222 = por %p220, %p221
      %s224 = sadd.s32 %s223, 1
      %p227 = scmp.eq.s32.totalorder %s39, 1
      %p228 = scmp.ne.s32.totalorder %s223, %s225
      %p229 = scmp.eq.s32.totalorder %s39, 0
      %p230 = por %p228, %p229
      %p231 = scmp.ne.s32.totalorder %s223, %s225
      %p232 = scmp.eq.s32.totalorder %s44, 1
      %p233 = por %p231, %p232
      %p234 = scmp.ne.s32.totalorder %s225, %s226
      %p235 = scmp.eq.s32.totalorder %s44, 0
      %p236 = por %p234, %p235
      %p237 = scmp.ne.s32.totalorder %s225, %s226
      %p238 = scmp.eq.s32.totalorder %s45, 1
      %p239 = por %p237, %p238
      %p241 = scmp.ne.s32.totalorder %s226, %s240
      %p242 = scmp.eq.s32.totalorder %s45, 0
      %p243 = por %p241, %p242
      %s245 = sadd.s32 %s244, 1
      %p248 = scmp.eq.s32.totalorder %s39, 1
      %p249 = scmp.ne.s32.totalorder %s244, %s246
      %p250 = scmp.eq.s32.totalorder %s39, 0
      %p251 = por %p249, %p250
      %p252 = scmp.ne.s32.totalorder %s244, %s246
      %p253 = scmp.eq.s32.totalorder %s44, 1
      %p254 = por %p252, %p253
      %p255 = scmp.ne.s32.totalorder %s246, %s247
      %p256 = scmp.eq.s32.totalorder %s44, 0
      %p257 = por %p255, %p256
      %p258 = scmp.ne.s32.totalorder %s246, %s247
      %p259 = scmp.eq.s32.totalorder %s45, 1
      %p260 = por %p258, %p259
      %p262 = scmp.ne.s32.totalorder %s247, %s261
      %p263 = scmp.eq.s32.totalorder %s45, 0
      %p264 = por %p262, %p263
      %s266 = sadd.s32 %s265, 1
      %p269 = scmp.eq.s32.totalorder %s39, 1
      %p270 = scmp.ne.s32.totalorder %s265, %s267
      %p271 = scmp.eq.s32.totalorder %s39, 0
      %p272 = por %p270, %p271
      %p273 = scmp.ne.s32.totalorder %s265, %s267
      %p274 = scmp.eq.s32.totalorder %s44, 1
      %p275 = por %p273, %p274
      %p276 = scmp.ne.s32.totalorder %s267, %s268
      %p277 = scmp.eq.s32.totalorder %s44, 0
      %p278 = por %p276, %p277
      %p279 = scmp.ne.s32.totalorder %s267, %s268
      %p280 = scmp.eq.s32.totalorder %s45, 1
      %p281 = por %p279, %p280
      %p283 = scmp.ne.s32.totalorder %s268, %s282
      %p284 = scmp.eq.s32.totalorder %s45, 0
      %p285 = por %p283, %p284
      %s287 = sadd.s32 %s286, 1
      %p290 = scmp.eq.s32.totalorder %s39, 1
      %p291 = scmp.ne.s32.totalorder %s286, %s288
      %p292 = scmp.eq.s32.totalorder %s39, 0
      %p293 = por %p291, %p292
      %p294 = scmp.ne.s32.totalorder %s286, %s288
      %p295 = scmp.eq.s32.totalorder %s44, 1
      %p296 = por %p294, %p295
      %p297 = scmp.ne.s32.totalorder %s288, %s289
      %p298 = scmp.eq.s32.totalorder %s44, 0
      %p299 = por %p297, %p298
      %p300 = scmp.ne.s32.totalorder %s288, %s289
      %p301 = scmp.eq.s32.totalorder %s45, 1
      %p302 = por %p300, %p301
      %p304 = scmp.ne.s32.totalorder %s289, %s303
      %p305 = scmp.eq.s32.totalorder %s45, 0
      %p306 = por %p304, %p305
      %s308 = sadd.s32 %s307, 1
      %p311 = scmp.eq.s32.totalorder %s39, 1
      %p312 = scmp.ne.s32.totalorder %s307, %s309
      %p313 = scmp.eq.s32.totalorder %s39, 0
      %p314 = por %p312, %p313
      %p315 = scmp.ne.s32.totalorder %s307, %s309
      %p316 = scmp.eq.s32.totalorder %s44, 1
      %p317 = por %p315, %p316
      %p318 = scmp.ne.s32.totalorder %s309, %s310
      %p319 = scmp.eq.s32.totalorder %s44, 0
      %p320 = por %p318, %p319
      %p321 = scmp.ne.s32.totalorder %s309, %s310
      %p322 = scmp.eq.s32.totalorder %s45, 1
      %p323 = por %p321, %p322
      %p325 = scmp.ne.s32.totalorder %s310, %s324
      %p326 = scmp.eq.s32.totalorder %s45, 0
      %p327 = por %p325, %p326
      %s329 = sadd.s32 %s328, 1
      %p332 = scmp.eq.s32.totalorder %s39, 1
      %p333 = scmp.ne.s32.totalorder %s328, %s330
      %p334 = scmp.eq.s32.totalorder %s39, 0
      %p335 = por %p333, %p334
      %p336 = scmp.ne.s32.totalorder %s328, %s330
      %p337 = scmp.eq.s32.totalorder %s44, 1
      %p338 = por %p336, %p337
      %p339 = scmp.ne.s32.totalorder %s330, %s331
      %p340 = scmp.eq.s32.totalorder %s44, 0
      %p341 = por %p339, %p340
      %p342 = scmp.ne.s32.totalorder %s330, %s331
      %p343 = scmp.eq.s32.totalorder %s45, 1
      %p344 = por %p342, %p343
      %p346 = scmp.ne.s32.totalorder %s331, %s345
      %p347 = scmp.eq.s32.totalorder %s45, 0
      %p348 = por %p346, %p347
      %s350 = sadd.s32 %s349, 1
      %p353 = scmp.eq.s32.totalorder %s39, 1
      %p354 = scmp.ne.s32.totalorder %s349, %s351
      %p355 = scmp.eq.s32.totalorder %s39, 0
      %p356 = por %p354, %p355
      %p357 = scmp.ne.s32.totalorder %s349, %s351
      %p358 = scmp.eq.s32.totalorder %s44, 1
      %p359 = por %p357, %p358
      %p360 = scmp.ne.s32.totalorder %s351, %s352
      %p361 = scmp.eq.s32.totalorder %s44, 0
      %p362 = por %p360, %p361
      %p363 = scmp.ne.s32.totalorder %s351, %s352
      %p364 = scmp.eq.s32.totalorder %s45, 1
      %p365 = por %p363, %p364
      %p367 = scmp.ne.s32.totalorder %s352, %s366
      %p368 = scmp.eq.s32.totalorder %s45, 0
      %p369 = por %p367, %p368
      %s371 = sadd.s32 %s370, 1
      %p374 = scmp.eq.s32.totalorder %s39, 1
      %p375 = scmp.ne.s32.totalorder %s370, %s372
      %p376 = scmp.eq.s32.totalorder %s39, 0
      %p377 = por %p375, %p376
      %p378 = scmp.ne.s32.totalorder %s370, %s372
      %p379 = scmp.eq.s32.totalorder %s44, 1
      %p380 = por %p378, %p379
      %p381 = scmp.ne.s32.totalorder %s372, %s373
      %p382 = scmp.eq.s32.totalorder %s44, 0
      %p383 = por %p381, %p382
      %p384 = scmp.ne.s32.totalorder %s372, %s373
      %p385 = scmp.eq.s32.totalorder %s45, 1
      %p386 = por %p384, %p385
      %p388 = scmp.ne.s32.totalorder %s373, %s387
      %p389 = scmp.eq.s32.totalorder %s45, 0
      %p390 = por %p388, %p389
      %s392 = sadd.s32 %s391, 1
      %p395 = scmp.eq.s32.totalorder %s39, 1
      %p396 = scmp.ne.s32.totalorder %s391, %s393
      %p397 = scmp.eq.s32.totalorder %s39, 0
      %p398 = por %p396, %p397
      %p399 = scmp.ne.s32.totalorder %s391, %s393
      %p400 = scmp.eq.s32.totalorder %s44, 1
      %p401 = por %p399, %p400
      %p402 = scmp.ne.s32.totalorder %s393, %s394
      %p403 = scmp.eq.s32.totalorder %s44, 0
      %p404 = por %p402, %p403
      %p405 = scmp.ne.s32.totalorder %s393, %s394
      %p406 = scmp.eq.s32.totalorder %s45, 1
      %p407 = por %p405, %p406
      %p409 = scmp.ne.s32.totalorder %s394, %s408
      %p410 = scmp.eq.s32.totalorder %s45, 0
      %p411 = por %p409, %p410
      %s413 = sadd.s32 %s412, 1
      %p416 = scmp.eq.s32.totalorder %s39, 1
      %p417 = scmp.ne.s32.totalorder %s412, %s414
      %p418 = scmp.eq.s32.totalorder %s39, 0
      %p419 = por %p417, %p418
      %p420 = scmp.ne.s32.totalorder %s412, %s414
      %p421 = scmp.eq.s32.totalorder %s44, 1
      %p422 = por %p420, %p421
      %p423 = scmp.ne.s32.totalorder %s414, %s415
      %p424 = scmp.eq.s32.totalorder %s44, 0
      %p425 = por %p423, %p424
      %p426 = scmp.ne.s32.totalorder %s414, %s415
      %p427 = scmp.eq.s32.totalorder %s45, 1
      %p428 = por %p426, %p427
      %p430 = scmp.ne.s32.totalorder %s415, %s429
      %p431 = scmp.eq.s32.totalorder %s45, 0
      %p432 = por %p430, %p431
      %s434 = sadd.s32 %s433, 1
      %p437 = scmp.eq.s32.totalorder %s39, 1
      %p438 = scmp.ne.s32.totalorder %s433, %s435
      %p439 = scmp.eq.s32.totalorder %s39, 0
      %p440 = por %p438, %p439
      %p441 = scmp.ne.s32.totalorder %s433, %s435
      %p442 = scmp.eq.s32.totalorder %s44, 1
      %p443 = por %p441, %p442
      %p444 = scmp.ne.s32.totalorder %s435, %s436
      %p445 = scmp.eq.s32.totalorder %s44, 0
      %p446 = por %p444, %p445
      %p447 = scmp.ne.s32.totalorder %s435, %s436
      %p448 = scmp.eq.s32.totalorder %s45, 1
      %p449 = por %p447, %p448
      %p451 = scmp.ne.s32.totalorder %s436, %s450
      %p452 = scmp.eq.s32.totalorder %s45, 0
      %p453 = por %p451, %p452
      %s455 = sadd.s32 %s454, 1
      %p458 = scmp.eq.s32.totalorder %s39, 1
      %p459 = scmp.ne.s32.totalorder %s454, %s456
      %p460 = scmp.eq.s32.totalorder %s39, 0
      %p461 = por %p459, %p460
      %p462 = scmp.ne.s32.totalorder %s454, %s456
      %p463 = scmp.eq.s32.totalorder %s44, 1
      %p464 = por %p462, %p463
      %p465 = scmp.ne.s32.totalorder %s456, %s457
      %p466 = scmp.eq.s32.totalorder %s44, 0
      %p467 = por %p465, %p466
      %p468 = scmp.ne.s32.totalorder %s456, %s457
      %p469 = scmp.eq.s32.totalorder %s45, 1
      %p470 = por %p468, %p469
      %p472 = scmp.ne.s32.totalorder %s457, %s471
      %p473 = scmp.eq.s32.totalorder %s45, 0
      %p474 = por %p472, %p473
      %s475 = ssub.s32 %s46, %s58
      %p476 = scmp.eq.s32.totalorder %s475, 0
      %s478 = sadd.s32 %s477, 1
      %s479 = scalar_select %p476, %s477, %s478
      %p482 = pneg %p476
      %p483 = scmp.eq.s32.totalorder %s39, 1
      %p484 = por %p482, %p483
      %p485 = scmp.ne.s32.totalorder %s477, %s480
      %p486 = scmp.eq.s32.totalorder %s39, 0
      %p487 = por %p485, %p486
      %p488 = scmp.ne.s32.totalorder %s477, %s480
      %p489 = scmp.eq.s32.totalorder %s44, 1
      %p490 = por %p488, %p489
      %p491 = scmp.ne.s32.totalorder %s480, %s481
      %p492 = scmp.eq.s32.totalorder %s44, 0
      %p493 = por %p491, %p492
      %p494 = scmp.ne.s32.totalorder %s480, %s481
      %p495 = scmp.eq.s32.totalorder %s45, 1
      %p496 = por %p494, %p495
      %p498 = scmp.ne.s32.totalorder %s481, %s497
      %p499 = scmp.eq.s32.totalorder %s45, 0
      %p500 = por %p498, %p499
      %p501 = scmp.le.s32.totalorder 1, %s39
      %p502 = scmp.lt.s32.totalorder %s39, 3
      %p503 = pnand %p501, %p502
      %p504 = pneg %p503
      // Predicated region
      $region9: #{tpu_custom_call.1} parent=5 // pred_check
        _
      $region10: #{tpu_custom_call.1} parent=5 // pred_check_branch
        %506 = sbr.rel (%p503) target = $region12
      $region11: #{tpu_custom_call.1} parent=5 // pred_region
        %s507 = ssub.s32 %s39, 1
        // Predicated region
        $region13: #{tpu_custom_call.1} parent=11 // pred_check
          %p508 = pneg %p152
        $region14: #{tpu_custom_call.1} parent=11 // pred_check_branch
          %510 = sbr.rel (%p508) target = $region16
        $region15: #{tpu_custom_call.1} parent=11 // pred_region
          %s512 = ssub.s32 2048, 2048
          %513 = vsyncadd [#allocation10], %s512
          %s514 = sshll.u32 [#allocation9], 4
          %s515 = int_to_ptr.vmem [resolvable:$true] %s514
          %520 = dma.hbm_to_vmem [thread:$0]  %s3, 2048, %s515, [#allocation10], 64, 64, 4
        $region16: #{tpu_custom_call.1} parent=11 // pred_fallthru
          _
        // Predicated region
        $region17: #{tpu_custom_call.1} parent=11 // pred_check
          %p521 = pneg %p173
        $region18: #{tpu_custom_call.1} parent=11 // pred_check_branch
          %523 = sbr.rel (%p521) target = $region20
        $region19: #{tpu_custom_call.1} parent=11 // pred_region
          %s525 = ssub.s32 4096, 4096
          %526 = vsyncadd [#allocation10], %s525
          %s527 = sshll.u32 [#allocation11], 4
          %s528 = int_to_ptr.vmem [resolvable:$true] %s527
          %533 = dma.hbm_to_vmem [thread:$0]  %s4, 4096, %s528, [#allocation10], 64, 64, 4
        $region20: #{tpu_custom_call.1} parent=11 // pred_fallthru
          _
        // Predicated region
        $region21: #{tpu_custom_call.1} parent=11 // pred_check
          %p534 = pneg %p194
        $region22: #{tpu_custom_call.1} parent=11 // pred_check_branch
          %536 = sbr.rel (%p534) target = $region24
        $region23: #{tpu_custom_call.1} parent=11 // pred_region
          %s538 = ssub.s32 3072, 3072
          %539 = vsyncadd [#allocation13], %s538
          %s540 = sshll.u32 [#allocation12], 4
          %s541 = int_to_ptr.vmem [resolvable:$true] %s540
          %546 = dma.hbm_to_vmem [thread:$0]  %s5, 3072, %s541, [#allocation13], 192, 192, 12
        $region24: #{tpu_custom_call.1} parent=11 // pred_fallthru
          _
        // Predicated region
        $region25: #{tpu_custom_call.1} parent=11 // pred_check
          %p547 = pneg %p215
        $region26: #{tpu_custom_call.1} parent=11 // pred_check_branch
          %549 = sbr.rel (%p547) target = $region28
        $region27: #{tpu_custom_call.1} parent=11 // pred_region
          _
        $region28: #{tpu_custom_call.1} parent=11 // pred_fallthru
          _
        // Predicated region
        $region29: #{tpu_custom_call.1} parent=11 // pred_check
          %p550 = pneg %p236
        $region30: #{tpu_custom_call.1} parent=11 // pred_check_branch
          %552 = sbr.rel (%p550) target = $region32
        $region31: #{tpu_custom_call.1} parent=11 // pred_region
          %s554 = ssub.s32 6144, 6144
          %555 = vsyncadd [#allocation13], %s554
          %s556 = sshll.u32 [#allocation14], 4
          %s557 = int_to_ptr.vmem [resolvable:$true] %s556
          %562 = dma.hbm_to_vmem [thread:$0]  %s7, 6144, %s557, [#allocation13], 128, 128, 8
        $region32: #{tpu_custom_call.1} parent=11 // pred_fallthru
          _
        // Predicated region
        $region33: #{tpu_custom_call.1} parent=11 // pred_check
          %p563 = pneg %p257
        $region34: #{tpu_custom_call.1} parent=11 // pred_check_branch
          %565 = sbr.rel (%p563) target = $region36
        $region35: #{tpu_custom_call.1} parent=11 // pred_region
          %s567 = ssub.s32 6144, 6144
          %568 = vsyncadd [#allocation16], %s567
          %s569 = sshll.u32 [#allocation15], 4
          %s570 = int_to_ptr.vmem [resolvable:$true] %s569
          %575 = dma.hbm_to_vmem [thread:$0]  %s8, 6144, %s570, [#allocation16], 128, 128, 8
        $region36: #{tpu_custom_call.1} parent=11 // pred_fallthru
          _
        // Predicated region
        $region37: #{tpu_custom_call.1} parent=11 // pred_check
          %p576 = pneg %p278
        $region38: #{tpu_custom_call.1} parent=11 // pred_check_branch
          %578 = sbr.rel (%p576) target = $region40
        $region39: #{tpu_custom_call.1} parent=11 // pred_region
          %s580 = ssub.s32 8192, 8192
          %581 = vsyncadd [#allocation16], %s580
          %s582 = sshll.u32 [#allocation17], 4
          %s583 = int_to_ptr.vmem [resolvable:$true] %s582
          %588 = dma.hbm_to_vmem [thread:$0]  %s9, 8192, %s583, [#allocation16], 256, 256, 16
        $region40: #{tpu_custom_call.1} parent=11 // pred_fallthru
          _
        // Predicated region
        $region41: #{tpu_custom_call.1} parent=11 // pred_check
          %p589 = pneg %p299
        $region42: #{tpu_custom_call.1} parent=11 // pred_check_branch
          %591 = sbr.rel (%p589) target = $region44
        $region43: #{tpu_custom_call.1} parent=11 // pred_region
          _
        $region44: #{tpu_custom_call.1} parent=11 // pred_fallthru
          _
        // Predicated region
        $region45: #{tpu_custom_call.1} parent=11 // pred_check
          %p592 = pneg %p320
        $region46: #{tpu_custom_call.1} parent=11 // pred_check_branch
          %594 = sbr.rel (%p592) target = $region48
        $region47: #{tpu_custom_call.1} parent=11 // pred_region
          %s596 = ssub.s32 8192, 8192
          %597 = vsyncadd [#allocation19], %s596
          %s598 = sshll.u32 [#allocation18], 4
          %s599 = int_to_ptr.vmem [resolvable:$true] %s598
          %604 = dma.hbm_to_vmem [thread:$0]  %s11, 8192, %s599, [#allocation19], 128, 128, 8
        $region48: #{tpu_custom_call.1} parent=11 // pred_fallthru
          _
        // Predicated region
        $region49: #{tpu_custom_call.1} parent=11 // pred_check
          %p605 = pneg %p341
        $region50: #{tpu_custom_call.1} parent=11 // pred_check_branch
          %607 = sbr.rel (%p605) target = $region52
        $region51: #{tpu_custom_call.1} parent=11 // pred_region
          _
        $region52: #{tpu_custom_call.1} parent=11 // pred_fallthru
          _
        // Predicated region
        $region53: #{tpu_custom_call.1} parent=11 // pred_check
          %p608 = pneg %p362
        $region54: #{tpu_custom_call.1} parent=11 // pred_check_branch
          %610 = sbr.rel (%p608) target = $region56
        $region55: #{tpu_custom_call.1} parent=11 // pred_region
          %s612 = ssub.s32 2048, 2048
          %613 = vsyncadd [#allocation19], %s612
          %s614 = sshll.u32 [#allocation20], 4
          %s615 = int_to_ptr.vmem [resolvable:$true] %s614
          %620 = dma.hbm_to_vmem [thread:$0]  %s13, 2048, %s615, [#allocation19], 64, 64, 4
        $region56: #{tpu_custom_call.1} parent=11 // pred_fallthru
          _
        // Predicated region
        $region57: #{tpu_custom_call.1} parent=11 // pred_check
          %p621 = pneg %p383
        $region58: #{tpu_custom_call.1} parent=11 // pred_check_branch
          %623 = sbr.rel (%p621) target = $region60
        $region59: #{tpu_custom_call.1} parent=11 // pred_region
          _
        $region60: #{tpu_custom_call.1} parent=11 // pred_fallthru
          _
        // Predicated region
        $region61: #{tpu_custom_call.1} parent=11 // pred_check
          %p624 = pneg %p404
        $region62: #{tpu_custom_call.1} parent=11 // pred_check_branch
          %626 = sbr.rel (%p624) target = $region64
        $region63: #{tpu_custom_call.1} parent=11 // pred_region
          %s628 = ssub.s32 1024, 1024
          %629 = vsyncadd [#allocation22], %s628
          %s630 = sshll.u32 [#allocation21], 4
          %s631 = int_to_ptr.vmem [resolvable:$true] %s630
          %636 = dma.hbm_to_vmem [thread:$0]  %s15, 1024, %s631, [#allocation22], 64, 64, 4
        $region64: #{tpu_custom_call.1} parent=11 // pred_fallthru
          _
        // Predicated region
        $region65: #{tpu_custom_call.1} parent=11 // pred_check
          %p637 = pneg %p425
        $region66: #{tpu_custom_call.1} parent=11 // pred_check_branch
          %639 = sbr.rel (%p637) target = $region68
        $region67: #{tpu_custom_call.1} parent=11 // pred_region
          _
        $region68: #{tpu_custom_call.1} parent=11 // pred_fallthru
          _
        // Predicated region
        $region69: #{tpu_custom_call.1} parent=11 // pred_check
          %p640 = pneg %p446
        $region70: #{tpu_custom_call.1} parent=11 // pred_check_branch
          %642 = sbr.rel (%p640) target = $region72
        $region71: #{tpu_custom_call.1} parent=11 // pred_region
          %s644 = ssub.s32 1024, 1024
          %645 = vsyncadd [#allocation22], %s644
          %s646 = sshll.u32 [#allocation23], 4
          %s647 = int_to_ptr.vmem [resolvable:$true] %s646
          %652 = dma.hbm_to_vmem [thread:$0]  %s17, 1024, %s647, [#allocation22], 64, 64, 4
        $region72: #{tpu_custom_call.1} parent=11 // pred_fallthru
          _
        // Predicated region
        $region73: #{tpu_custom_call.1} parent=11 // pred_check
          %p653 = pneg %p467
        $region74: #{tpu_custom_call.1} parent=11 // pred_check_branch
          %655 = sbr.rel (%p653) target = $region76
        $region75: #{tpu_custom_call.1} parent=11 // pred_region
          _
        $region76: #{tpu_custom_call.1} parent=11 // pred_fallthru
          _
      $region12: #{tpu_custom_call.1} parent=5 // pred_fallthru
        _
      %p656 = scmp.lt.s32.totalorder %s39, 2
      // Predicated region
      $region77: #{tpu_custom_call.1} parent=5 // pred_check
        %p657 = pneg %p656
      $region78: #{tpu_custom_call.1} parent=5 // pred_check_branch
        %659 = sbr.rel (%p657) target = $region80
      $region79: #{tpu_custom_call.1} parent=5 // pred_region
        // Predicated region
        $region81: #{tpu_custom_call.1} parent=79 // pred_check
          %p660 = pneg %p71
        $region82: #{tpu_custom_call.1} parent=79 // pred_check_branch
          %662 = sbr.rel (%p660) target = $region84
        $region83: #{tpu_custom_call.1} parent=79 // pred_region
          %s663 = sand.u32 %s61, 1
          %s664 = scalar_lea.sflag [#allocation4], %s663
          %s665 = sand.u32 %s61, 1
          %s666 = smul.addr %s665, 192
          %s667 = scalar_lea.vmem [#allocation3], %s666
          %s668 = smul.u32 16, %s46
          %s670 = ssub.s32 3072, 3072
          %671 = vsyncadd %s664, %s670
          %s672 = smul.addr %s668, 3
          %s673 = smul.addr %s672, 64
          %s674 = scalar_lea.hbm %s0, %s673
          %s675 = sshll.u32 %s667, 4
          %s676 = int_to_ptr.vmem [resolvable:$true] %s675
          %681 = dma.hbm_to_vmem [thread:$0]  %s674, 3072, %s676, %s664, 192, 192, 12
        $region84: #{tpu_custom_call.1} parent=79 // pred_fallthru
          _
        // Predicated region
        $region85: #{tpu_custom_call.1} parent=79 // pred_check
          %p682 = pneg %p97
        $region86: #{tpu_custom_call.1} parent=79 // pred_check_branch
          %684 = sbr.rel (%p682) target = $region88
        $region87: #{tpu_custom_call.1} parent=79 // pred_region
          %s685 = sand.u32 %s39, 1
          %s686 = scalar_lea.sflag [#allocation7], %s685
          %s687 = sand.u32 %s87, 1
          %s688 = smul.addr %s687, 128
          %s689 = scalar_lea.vmem [#allocation6], %s688
          %s690 = smul.u32 16, %s46
          %s692 = ssub.s32 2048, 2048
          %693 = vsyncadd %s686, %s692
          %s694 = smul.addr %s690, 2
          %s695 = smul.addr %s694, 64
          %s696 = scalar_lea.hbm %s1, %s695
          %s697 = sshll.u32 %s689, 4
          %s698 = int_to_ptr.vmem [resolvable:$true] %s697
          %703 = dma.hbm_to_vmem [thread:$0]  %s696, 2048, %s698, %s686, 128, 128, 8
        $region88: #{tpu_custom_call.1} parent=79 // pred_fallthru
          _
        // Predicated region
        $region89: #{tpu_custom_call.1} parent=79 // pred_check
          %p704 = pneg %p125
        $region90: #{tpu_custom_call.1} parent=79 // pred_check_branch
          %706 = sbr.rel (%p704) target = $region92
        $region91: #{tpu_custom_call.1} parent=79 // pred_region
          %s707 = sand.u32 %s39, 1
          %s708 = scalar_lea.sflag [#allocation7], %s707
          %s709 = sand.u32 %s115, 1
          %s710 = smul.addr %s709, 256
          %s711 = scalar_lea.vmem [#allocation8], %s710
          %s712 = smul.u32 16, %s46
          %s713 = smul.u32 4, %s47
          %s715 = ssub.s32 4096, 4096
          %716 = vsyncadd %s708, %s715
          %s717 = smul.addr %s712, 4
          %s718 = sadd.s32 %s713, %s717
          %s719 = smul.addr %s718, 64
          %s720 = scalar_lea.hbm %s2, %s719
          %s721 = sshll.u32 %s711, 4
          %s722 = int_to_ptr.vmem [resolvable:$true] %s721
          %727 = dma.hbm_to_vmem [thread:$0]  %s720, 4096, %s722, %s708, 256, 256, 16
        $region92: #{tpu_custom_call.1} parent=79 // pred_fallthru
          _
      $region80: #{tpu_custom_call.1} parent=5 // pred_fallthru
        _
      %p728 = scmp.le.s32.totalorder 1, %s39
      %p729 = scmp.lt.s32.totalorder %s39, 3
      %p730 = pnand %p728, %p729
      %p731 = pneg %p730
      // Predicated region
      $region93: #{tpu_custom_call.1} parent=5 // pred_check
        _
      $region94: #{tpu_custom_call.1} parent=5 // pred_check_branch
        %733 = sbr.rel (%p730) target = $region96
      $region95: #{tpu_custom_call.1} parent=5 // pred_region
        %s734 = ssub.s32 %s39, 1
        %s735 = sand.u32 %s64, 1
        %s736 = scalar_lea.sflag [#allocation4], %s735
        %s737 = sand.u32 %s64, 1
        %s738 = smul.addr %s737, 192
        %s739 = scalar_lea.vmem [#allocation3], %s738
        // Predicated region
        $region97: #{tpu_custom_call.1} parent=95 // pred_check
          %p740 = pneg %p77
        $region98: #{tpu_custom_call.1} parent=95 // pred_check_branch
          %742 = sbr.rel (%p740) target = $region100
        $region99: #{tpu_custom_call.1} parent=95 // pred_region
          %743 = dma.done %s736, 3072
        $region100: #{tpu_custom_call.1} parent=95 // pred_fallthru
          _
        %s744 = sand.u32 %s44, 1
        %s745 = scalar_lea.sflag [#allocation7], %s744
        %s746 = sand.u32 %s90, 1
        %s747 = smul.addr %s746, 128
        %s748 = scalar_lea.vmem [#allocation6], %s747
        // Predicated region
        $region101: #{tpu_custom_call.1} parent=95 // pred_check
          %p749 = pneg %p103
        $region102: #{tpu_custom_call.1} parent=95 // pred_check_branch
          %751 = sbr.rel (%p749) target = $region104
        $region103: #{tpu_custom_call.1} parent=95 // pred_region
          %752 = dma.done %s745, 2048
        $region104: #{tpu_custom_call.1} parent=95 // pred_fallthru
          _
        %s753 = sand.u32 %s44, 1
        %s754 = scalar_lea.sflag [#allocation7], %s753
        %s755 = sand.u32 %s118, 1
        %s756 = smul.addr %s755, 256
        %s757 = scalar_lea.vmem [#allocation8], %s756
        // Predicated region
        $region105: #{tpu_custom_call.1} parent=95 // pred_check
          %p758 = pneg %p131
        $region106: #{tpu_custom_call.1} parent=95 // pred_check_branch
          %760 = sbr.rel (%p758) target = $region108
        $region107: #{tpu_custom_call.1} parent=95 // pred_region
          %761 = dma.done %s754, 4096
        $region108: #{tpu_custom_call.1} parent=95 // pred_fallthru
          _
        // Predicated region
        $region109: #{tpu_custom_call.1} parent=95 // pred_check
          %p762 = pneg %p152
        $region110: #{tpu_custom_call.1} parent=95 // pred_check_branch
          %764 = sbr.rel (%p762) target = $region112
        $region111: #{tpu_custom_call.1} parent=95 // pred_region
          %765 = dma.done [#allocation10], 2048
        $region112: #{tpu_custom_call.1} parent=95 // pred_fallthru
          _
        // Predicated region
        $region113: #{tpu_custom_call.1} parent=95 // pred_check
          %p766 = pneg %p173
        $region114: #{tpu_custom_call.1} parent=95 // pred_check_branch
          %768 = sbr.rel (%p766) target = $region116
        $region115: #{tpu_custom_call.1} parent=95 // pred_region
          %769 = dma.done [#allocation10], 4096
        $region116: #{tpu_custom_call.1} parent=95 // pred_fallthru
          _
        // Predicated region
        $region117: #{tpu_custom_call.1} parent=95 // pred_check
          %p770 = pneg %p194
        $region118: #{tpu_custom_call.1} parent=95 // pred_check_branch
          %772 = sbr.rel (%p770) target = $region120
        $region119: #{tpu_custom_call.1} parent=95 // pred_region
          %773 = dma.done [#allocation13], 3072
        $region120: #{tpu_custom_call.1} parent=95 // pred_fallthru
          _
        // Predicated region
        $region121: #{tpu_custom_call.1} parent=95 // pred_check
          %p774 = pneg %p236
        $region122: #{tpu_custom_call.1} parent=95 // pred_check_branch
          %776 = sbr.rel (%p774) target = $region124
        $region123: #{tpu_custom_call.1} parent=95 // pred_region
          %777 = dma.done [#allocation13], 6144
        $region124: #{tpu_custom_call.1} parent=95 // pred_fallthru
          _
        // Predicated region
        $region125: #{tpu_custom_call.1} parent=95 // pred_check
          %p778 = pneg %p257
        $region126: #{tpu_custom_call.1} parent=95 // pred_check_branch
          %780 = sbr.rel (%p778) target = $region128
        $region127: #{tpu_custom_call.1} parent=95 // pred_region
          %781 = dma.done [#allocation16], 6144
        $region128: #{tpu_custom_call.1} parent=95 // pred_fallthru
          _
        // Predicated region
        $region129: #{tpu_custom_call.1} parent=95 // pred_check
          %p782 = pneg %p278
        $region130: #{tpu_custom_call.1} parent=95 // pred_check_branch
          %784 = sbr.rel (%p782) target = $region132
        $region131: #{tpu_custom_call.1} parent=95 // pred_region
          %785 = dma.done [#allocation16], 8192
        $region132: #{tpu_custom_call.1} parent=95 // pred_fallthru
          _
        // Predicated region
        $region133: #{tpu_custom_call.1} parent=95 // pred_check
          %p786 = pneg %p320
        $region134: #{tpu_custom_call.1} parent=95 // pred_check_branch
          %788 = sbr.rel (%p786) target = $region136
        $region135: #{tpu_custom_call.1} parent=95 // pred_region
          %789 = dma.done [#allocation19], 8192
        $region136: #{tpu_custom_call.1} parent=95 // pred_fallthru
          _
        // Predicated region
        $region137: #{tpu_custom_call.1} parent=95 // pred_check
          %p790 = pneg %p362
        $region138: #{tpu_custom_call.1} parent=95 // pred_check_branch
          %792 = sbr.rel (%p790) target = $region140
        $region139: #{tpu_custom_call.1} parent=95 // pred_region
          %793 = dma.done [#allocation19], 2048
        $region140: #{tpu_custom_call.1} parent=95 // pred_fallthru
          _
        // Predicated region
        $region141: #{tpu_custom_call.1} parent=95 // pred_check
          %p794 = pneg %p404
        $region142: #{tpu_custom_call.1} parent=95 // pred_check_branch
          %796 = sbr.rel (%p794) target = $region144
        $region143: #{tpu_custom_call.1} parent=95 // pred_region
          %797 = dma.done [#allocation22], 1024
        $region144: #{tpu_custom_call.1} parent=95 // pred_fallthru
          _
        // Predicated region
        $region145: #{tpu_custom_call.1} parent=95 // pred_check
          %p798 = pneg %p446
        $region146: #{tpu_custom_call.1} parent=95 // pred_check_branch
          %800 = sbr.rel (%p798) target = $region148
        $region147: #{tpu_custom_call.1} parent=95 // pred_region
          %801 = dma.done [#allocation22], 1024
        $region148: #{tpu_custom_call.1} parent=95 // pred_fallthru
          _
        %s802 = sand.u32 %s64, 1
        %s803 = scalar_lea.sflag [#allocation4], %s802
        %s804 = sand.u32 %s64, 1
        %s805 = smul.addr %s804, 192
        %s806 = scalar_lea.vmem [#allocation3], %s805
        %p807 = pneg %p77
        %p808 = pneg %p74
        %s809 = sand.u32 %s44, 1
        %s810 = scalar_lea.sflag [#allocation7], %s809
        %s811 = sand.u32 %s90, 1
        %s812 = smul.addr %s811, 128
        %s813 = scalar_lea.vmem [#allocation6], %s812
        %p814 = pneg %p103
        %p815 = pneg %p100
        %s816 = sand.u32 %s44, 1
        %s817 = scalar_lea.sflag [#allocation7], %s816
        %s818 = sand.u32 %s118, 1
        %s819 = smul.addr %s818, 256
        %s820 = scalar_lea.vmem [#allocation8], %s819
        %p821 = pneg %p131
        %p822 = pneg %p128
        %p823 = pneg %p152
        %p824 = pneg %p149
        %p825 = pneg %p173
        %p826 = pneg %p170
        %p827 = pneg %p194
        %p828 = pneg %p191
        %p829 = pneg %p215
        %p830 = pneg %p212
        %p831 = pneg %p236
        %p832 = pneg %p233
        %p833 = pneg %p257
        %p834 = pneg %p254
        %p835 = pneg %p278
        %p836 = pneg %p275
        %p837 = pneg %p299
        %p838 = pneg %p296
        %p839 = pneg %p320
        %p840 = pneg %p317
        %p841 = pneg %p341
        %p842 = pneg %p338
        %p843 = pneg %p362
        %p844 = pneg %p359
        %p845 = pneg %p383
        %p846 = pneg %p380
        %p847 = pneg %p404
        %p848 = pneg %p401
        %p849 = pneg %p425
        %p850 = pneg %p422
        %p851 = pneg %p446
        %p852 = pneg %p443
        %p853 = pneg %p467
        %p854 = pneg %p464
        %p855 = pneg %p493
        %p856 = pneg %p490
        %s857 = sand.u32 %s480, 1
        %s858 = scalar_lea.sflag [#allocation5], %s857
        %s859 = sand.u32 %s480, 1
        %s860 = smul.addr %s859, 128
        %s861 = scalar_lea.vmem [#allocation24], %s860
        %s862 = smul.u32 16, %s48
        %s863 = smul.u32 16, %s48
        %s864 = smul.u32 16, %s48
        %s865 = smul.u32 4, %s49
        %s866 = smul.u32 16, %s48
        %p868 = scmp.eq.s32.totalorder %s49, 0
        // Predicated region
        $region149: #{tpu_custom_call.1} parent=95 // pred_check
          %p869 = pneg %p868
        $region150: #{tpu_custom_call.1} parent=95 // pred_check_branch
          %871 = sbr.rel (%p869) target = $region152
        $region151: #{tpu_custom_call.1} parent=95 // pred_region
          %872 = vst [vmem:[#allocation2] sm:$0xff] 0.0
          %873 = vst [vmem:[#allocation2 + $0x8] sm:$0xff] 0.0
          %874 = vst [vmem:[#allocation2 + $0x10] sm:$0xff] 0.0
          %875 = vst [vmem:[#allocation2 + $0x18] sm:$0xff] 0.0
          %876 = vst [vmem:[#allocation2 + $0x20] sm:$0xff] 0.0
          %877 = vst [vmem:[#allocation2 + $0x28] sm:$0xff] 0.0
          %878 = vst [vmem:[#allocation2 + $0x30] sm:$0xff] 0.0
          %879 = vst [vmem:[#allocation2 + $0x38] sm:$0xff] 0.0
          %880 = vst [vmem:[#allocation2 + $0x40] sm:$0xff] 0.0
          %881 = vst [vmem:[#allocation2 + $0x48] sm:$0xff] 0.0
          %882 = vst [vmem:[#allocation2 + $0x50] sm:$0xff] 0.0
          %883 = vst [vmem:[#allocation2 + $0x58] sm:$0xff] 0.0
          %884 = vst [vmem:[#allocation2 + $0x60] sm:$0xff] 0.0
          %885 = vst [vmem:[#allocation2 + $0x68] sm:$0xff] 0.0
          %886 = vst [vmem:[#allocation2 + $0x70] sm:$0xff] 0.0
          %887 = vst [vmem:[#allocation2 + $0x78] sm:$0xff] 0.0
        $region152: #{tpu_custom_call.1} parent=95 // pred_fallthru
          _
        %v888 = vld [vmem:[#allocation2] sm:$0xff]
        %v889 = vld [vmem:[#allocation2 + $0x8] sm:$0xff]
        %v890 = vld [vmem:[#allocation2 + $0x10] sm:$0xff]
        %v891 = vld [vmem:[#allocation2 + $0x18] sm:$0xff]
        %v892 = vld [vmem:[#allocation2 + $0x20] sm:$0xff]
        %v893 = vld [vmem:[#allocation2 + $0x28] sm:$0xff]
        %v894 = vld [vmem:[#allocation2 + $0x30] sm:$0xff]
        %v895 = vld [vmem:[#allocation2 + $0x38] sm:$0xff]
        %v896 = vld [vmem:[#allocation2 + $0x40] sm:$0xff]
        %v897 = vld [vmem:[#allocation2 + $0x48] sm:$0xff]
        %v898 = vld [vmem:[#allocation2 + $0x50] sm:$0xff]
        %v899 = vld [vmem:[#allocation2 + $0x58] sm:$0xff]
        %v900 = vld [vmem:[#allocation2 + $0x60] sm:$0xff]
        %v901 = vld [vmem:[#allocation2 + $0x68] sm:$0xff]
        %v902 = vld [vmem:[#allocation2 + $0x70] sm:$0xff]
        %v903 = vld [vmem:[#allocation2 + $0x78] sm:$0xff]
        %v904 = vld [vmem:[%s757] sm:$0xff]
        %v905 = vld [vmem:[%s757 + $0x8] sm:$0xff]
        %v906 = vld [vmem:[%s757 + $0x10] sm:$0xff]
        %v907 = vld [vmem:[%s757 + $0x18] sm:$0xff]
        %v908 = vld [vmem:[%s757 + $0x20] sm:$0xff]
        %v909 = vld [vmem:[%s757 + $0x28] sm:$0xff]
        %v910 = vld [vmem:[%s757 + $0x30] sm:$0xff]
        %v911 = vld [vmem:[%s757 + $0x38] sm:$0xff]
        %v912 = vld [vmem:[%s757 + $0x40] sm:$0xff]
        %v913 = vld [vmem:[%s757 + $0x48] sm:$0xff]
        %v914 = vld [vmem:[%s757 + $0x50] sm:$0xff]
        %v915 = vld [vmem:[%s757 + $0x58] sm:$0xff]
        %v916 = vld [vmem:[%s757 + $0x60] sm:$0xff]
        %v917 = vld [vmem:[%s757 + $0x68] sm:$0xff]
        %v918 = vld [vmem:[%s757 + $0x70] sm:$0xff]
        %v919 = vld [vmem:[%s757 + $0x78] sm:$0xff]
        %v920 = vld [vmem:[%s757 + $0x80] sm:$0xff]
        %v921 = vld [vmem:[%s757 + $0x88] sm:$0xff]
        %v922 = vld [vmem:[%s757 + $0x90] sm:$0xff]
        %v923 = vld [vmem:[%s757 + $0x98] sm:$0xff]
        %v924 = vld [vmem:[%s757 + $0xa0] sm:$0xff]
        %v925 = vld [vmem:[%s757 + $0xa8] sm:$0xff]
        %v926 = vld [vmem:[%s757 + $0xb0] sm:$0xff]
        %v927 = vld [vmem:[%s757 + $0xb8] sm:$0xff]
        %v928 = vld [vmem:[%s757 + $0xc0] sm:$0xff]
        %v929 = vld [vmem:[%s757 + $0xc8] sm:$0xff]
        %v930 = vld [vmem:[%s757 + $0xd0] sm:$0xff]
        %v931 = vld [vmem:[%s757 + $0xd8] sm:$0xff]
        %v932 = vld [vmem:[%s757 + $0xe0] sm:$0xff]
        %v933 = vld [vmem:[%s757 + $0xe8] sm:$0xff]
        %v934 = vld [vmem:[%s757 + $0xf0] sm:$0xff]
        %v935 = vld [vmem:[%s757 + $0xf8] sm:$0xff]
        %v936 = vld [vmem:[#allocation11] sm:$0xf]
        %v937 = vld [vmem:[#allocation11 + $0x4] sm:$0xf]
        %v938 = vld [vmem:[#allocation11 + $0x8] sm:$0xf]
        %v939 = vld [vmem:[#allocation11 + $0xc] sm:$0xf]
        %v940 = vld [vmem:[#allocation11 + $0x10] sm:$0xf]
        %v941 = vld [vmem:[#allocation11 + $0x14] sm:$0xf]
        %v942 = vld [vmem:[#allocation11 + $0x18] sm:$0xf]
        %v943 = vld [vmem:[#allocation11 + $0x1c] sm:$0xf]
        %v944 = vld [vmem:[#allocation11 + $0x20] sm:$0xf]
        %v945 = vld [vmem:[#allocation11 + $0x24] sm:$0xf]
        %v946 = vld [vmem:[#allocation11 + $0x28] sm:$0xf]
        %v947 = vld [vmem:[#allocation11 + $0x2c] sm:$0xf]
        %v948 = vld [vmem:[#allocation11 + $0x30] sm:$0xf]
        %v949 = vld [vmem:[#allocation11 + $0x34] sm:$0xf]
        %v950 = vld [vmem:[#allocation11 + $0x38] sm:$0xf]
        %v951 = vld [vmem:[#allocation11 + $0x3c] sm:$0xf]
        %v952 = vld [vmem:[#allocation11 + $0x40] sm:$0xf]
        %v953 = vld [vmem:[#allocation11 + $0x44] sm:$0xf]
        %v954 = vld [vmem:[#allocation11 + $0x48] sm:$0xf]
        %v955 = vld [vmem:[#allocation11 + $0x4c] sm:$0xf]
        %v956 = vld [vmem:[#allocation11 + $0x50] sm:$0xf]
        %v957 = vld [vmem:[#allocation11 + $0x54] sm:$0xf]
        %v958 = vld [vmem:[#allocation11 + $0x58] sm:$0xf]
        %v959 = vld [vmem:[#allocation11 + $0x5c] sm:$0xf]
        %v960 = vld [vmem:[#allocation11 + $0x60] sm:$0xf]
        %v961 = vld [vmem:[#allocation11 + $0x64] sm:$0xf]
        %v962 = vld [vmem:[#allocation11 + $0x68] sm:$0xf]
        %v963 = vld [vmem:[#allocation11 + $0x6c] sm:$0xf]
        %v964 = vld [vmem:[#allocation11 + $0x70] sm:$0xf]
        %v965 = vld [vmem:[#allocation11 + $0x74] sm:$0xf]
        %v966 = vld [vmem:[#allocation11 + $0x78] sm:$0xf]
        %v967 = vld [vmem:[#allocation11 + $0x7c] sm:$0xf]
        %v968 = vld [vmem:[#allocation11 + $0x80] sm:$0xf]
        %v969 = vld [vmem:[#allocation11 + $0x84] sm:$0xf]
        %v970 = vld [vmem:[#allocation11 + $0x88] sm:$0xf]
        %v971 = vld [vmem:[#allocation11 + $0x8c] sm:$0xf]
        %v972 = vld [vmem:[#allocation11 + $0x90] sm:$0xf]
        %v973 = vld [vmem:[#allocation11 + $0x94] sm:$0xf]
        %v974 = vld [vmem:[#allocation11 + $0x98] sm:$0xf]
        %v975 = vld [vmem:[#allocation11 + $0x9c] sm:$0xf]
        %v976 = vld [vmem:[#allocation11 + $0xa0] sm:$0xf]
        %v977 = vld [vmem:[#allocation11 + $0xa4] sm:$0xf]
        %v978 = vld [vmem:[#allocation11 + $0xa8] sm:$0xf]
        %v979 = vld [vmem:[#allocation11 + $0xac] sm:$0xf]
        %v980 = vld [vmem:[#allocation11 + $0xb0] sm:$0xf]
        %v981 = vld [vmem:[#allocation11 + $0xb4] sm:$0xf]
        %v982 = vld [vmem:[#allocation11 + $0xb8] sm:$0xf]
        %v983 = vld [vmem:[#allocation11 + $0xbc] sm:$0xf]
        %v984 = vld [vmem:[#allocation11 + $0xc0] sm:$0xf]
        %v985 = vld [vmem:[#allocation11 + $0xc4] sm:$0xf]
        %v986 = vld [vmem:[#allocation11 + $0xc8] sm:$0xf]
        %v987 = vld [vmem:[#allocation11 + $0xcc] sm:$0xf]
        %v988 = vld [vmem:[#allocation11 + $0xd0] sm:$0xf]
        %v989 = vld [vmem:[#allocation11 + $0xd4] sm:$0xf]
        %v990 = vld [vmem:[#allocation11 + $0xd8] sm:$0xf]
        %v991 = vld [vmem:[#allocation11 + $0xdc] sm:$0xf]
        %v992 = vld [vmem:[#allocation11 + $0xe0] sm:$0xf]
        %v993 = vld [vmem:[#allocation11 + $0xe4] sm:$0xf]
        %v994 = vld [vmem:[#allocation11 + $0xe8] sm:$0xf]
        %v995 = vld [vmem:[#allocation11 + $0xec] sm:$0xf]
        %v996 = vld [vmem:[#allocation11 + $0xf0] sm:$0xf]
        %v997 = vld [vmem:[#allocation11 + $0xf4] sm:$0xf]
        %v998 = vld [vmem:[#allocation11 + $0xf8] sm:$0xf]
        %v999 = vld [vmem:[#allocation11 + $0xfc] sm:$0xf]
        %v1032 = vunpack.c.l.b16 %v904
        %v1033 = vunpack.c.h.b16 %v904
        %v1034 = vunpack.c.l.b16 %v905
        %v1035 = vunpack.c.h.b16 %v905
        %v1036 = vunpack.c.l.b16 %v906
        %v1037 = vunpack.c.h.b16 %v906
        %v1038 = vunpack.c.l.b16 %v907
        %v1039 = vunpack.c.h.b16 %v907
        %v1040 = vunpack.c.l.b16 %v908
        %v1041 = vunpack.c.h.b16 %v908
        %v1042 = vunpack.c.l.b16 %v909
        %v1043 = vunpack.c.h.b16 %v909
        %v1044 = vunpack.c.l.b16 %v910
        %v1045 = vunpack.c.h.b16 %v910
        %v1046 = vunpack.c.l.b16 %v911
        %v1047 = vunpack.c.h.b16 %v911
        %v1048 = vunpack.c.l.b16 %v912
        %v1049 = vunpack.c.h.b16 %v912
        %v1050 = vunpack.c.l.b16 %v913
        %v1051 = vunpack.c.h.b16 %v913
        %v1052 = vunpack.c.l.b16 %v914
        %v1053 = vunpack.c.h.b16 %v914
        %v1054 = vunpack.c.l.b16 %v915
        %v1055 = vunpack.c.h.b16 %v915
        %v1056 = vunpack.c.l.b16 %v916
        %v1057 = vunpack.c.h.b16 %v916
        %v1058 = vunpack.c.l.b16 %v917
        %v1059 = vunpack.c.h.b16 %v917
        %v1060 = vunpack.c.l.b16 %v918
        %v1061 = vunpack.c.h.b16 %v918
        %v1062 = vunpack.c.l.b16 %v919
        %v1063 = vunpack.c.h.b16 %v919
        %v1064 = vunpack.c.l.b16 %v920
        %v1065 = vunpack.c.h.b16 %v920
        %v1066 = vunpack.c.l.b16 %v921
        %v1067 = vunpack.c.h.b16 %v921
        %v1068 = vunpack.c.l.b16 %v922
        %v1069 = vunpack.c.h.b16 %v922
        %v1070 = vunpack.c.l.b16 %v923
        %v1071 = vunpack.c.h.b16 %v923
        %v1072 = vunpack.c.l.b16 %v924
        %v1073 = vunpack.c.h.b16 %v924
        %v1074 = vunpack.c.l.b16 %v925
        %v1075 = vunpack.c.h.b16 %v925
        %v1076 = vunpack.c.l.b16 %v926
        %v1077 = vunpack.c.h.b16 %v926
        %v1078 = vunpack.c.l.b16 %v927
        %v1079 = vunpack.c.h.b16 %v927
        %v1080 = vunpack.c.l.b16 %v928
        %v1081 = vunpack.c.h.b16 %v928
        %v1082 = vunpack.c.l.b16 %v929
        %v1083 = vunpack.c.h.b16 %v929
        %v1084 = vunpack.c.l.b16 %v930
        %v1085 = vunpack.c.h.b16 %v930
        %v1086 = vunpack.c.l.b16 %v931
        %v1087 = vunpack.c.h.b16 %v931
        %v1088 = vunpack.c.l.b16 %v932
        %v1089 = vunpack.c.h.b16 %v932
        %v1090 = vunpack.c.l.b16 %v933
        %v1091 = vunpack.c.h.b16 %v933
        %v1092 = vunpack.c.l.b16 %v934
        %v1093 = vunpack.c.h.b16 %v934
        %v1094 = vunpack.c.l.b16 %v935
        %v1095 = vunpack.c.h.b16 %v935
        %v1096 = vpack.c.b16 %v1036, %v1032
        %v1097 = vpack.c.b16 %v1037, %v1033
        %v1098 = vpack.c.b16 %v1038, %v1034
        %v1099 = vpack.c.b16 %v1039, %v1035
        %v1100 = vpack.c.b16 %v1044, %v1040
        %v1101 = vpack.c.b16 %v1045, %v1041
        %v1102 = vpack.c.b16 %v1046, %v1042
        %v1103 = vpack.c.b16 %v1047, %v1043
        %v1104 = vpack.c.b16 %v1052, %v1048
        %v1105 = vpack.c.b16 %v1053, %v1049
        %v1106 = vpack.c.b16 %v1054, %v1050
        %v1107 = vpack.c.b16 %v1055, %v1051
        %v1108 = vpack.c.b16 %v1060, %v1056
        %v1109 = vpack.c.b16 %v1061, %v1057
        %v1110 = vpack.c.b16 %v1062, %v1058
        %v1111 = vpack.c.b16 %v1063, %v1059
        %v1112 = vpack.c.b16 %v1068, %v1064
        %v1113 = vpack.c.b16 %v1069, %v1065
        %v1114 = vpack.c.b16 %v1070, %v1066
        %v1115 = vpack.c.b16 %v1071, %v1067
        %v1116 = vpack.c.b16 %v1076, %v1072
        %v1117 = vpack.c.b16 %v1077, %v1073
        %v1118 = vpack.c.b16 %v1078, %v1074
        %v1119 = vpack.c.b16 %v1079, %v1075
        %v1120 = vpack.c.b16 %v1084, %v1080
        %v1121 = vpack.c.b16 %v1085, %v1081
        %v1122 = vpack.c.b16 %v1086, %v1082
        %v1123 = vpack.c.b16 %v1087, %v1083
        %v1124 = vpack.c.b16 %v1092, %v1088
        %v1125 = vpack.c.b16 %v1093, %v1089
        %v1126 = vpack.c.b16 %v1094, %v1090
        %v1127 = vpack.c.b16 %v1095, %v1091
        %v1224 = vunpack.c.l.b16 %v936
        %v1225 = vunpack.c.l.b16 %v937
        %v1226 = vunpack.c.l.b16 %v938
        %v1227 = vunpack.c.l.b16 %v939
        %v1228 = vunpack.c.l.b16 %v940
        %v1229 = vunpack.c.l.b16 %v941
        %v1230 = vunpack.c.l.b16 %v942
        %v1231 = vunpack.c.l.b16 %v943
        %v1232 = vunpack.c.l.b16 %v944
        %v1233 = vunpack.c.l.b16 %v945
        %v1234 = vunpack.c.l.b16 %v946
        %v1235 = vunpack.c.l.b16 %v947
        %v1236 = vunpack.c.l.b16 %v948
        %v1237 = vunpack.c.l.b16 %v949
        %v1238 = vunpack.c.l.b16 %v950
        %v1239 = vunpack.c.l.b16 %v951
        %v1240 = vunpack.c.l.b16 %v952
        %v1241 = vunpack.c.l.b16 %v953
        %v1242 = vunpack.c.l.b16 %v954
        %v1243 = vunpack.c.l.b16 %v955
        %v1244 = vunpack.c.l.b16 %v956
        %v1245 = vunpack.c.l.b16 %v957
        %v1246 = vunpack.c.l.b16 %v958
        %v1247 = vunpack.c.l.b16 %v959
        %v1248 = vunpack.c.l.b16 %v960
        %v1249 = vunpack.c.l.b16 %v961
        %v1250 = vunpack.c.l.b16 %v962
        %v1251 = vunpack.c.l.b16 %v963
        %v1252 = vunpack.c.l.b16 %v964
        %v1253 = vunpack.c.l.b16 %v965
        %v1254 = vunpack.c.l.b16 %v966
        %v1255 = vunpack.c.l.b16 %v967
        %v1256 = vunpack.c.l.b16 %v968
        %v1257 = vunpack.c.l.b16 %v969
        %v1258 = vunpack.c.l.b16 %v970
        %v1259 = vunpack.c.l.b16 %v971
        %v1260 = vunpack.c.l.b16 %v972
        %v1261 = vunpack.c.l.b16 %v973
        %v1262 = vunpack.c.l.b16 %v974
        %v1263 = vunpack.c.l.b16 %v975
        %v1264 = vunpack.c.l.b16 %v976
        %v1265 = vunpack.c.l.b16 %v977
        %v1266 = vunpack.c.l.b16 %v978
        %v1267 = vunpack.c.l.b16 %v979
        %v1268 = vunpack.c.l.b16 %v980
        %v1269 = vunpack.c.l.b16 %v981
        %v1270 = vunpack.c.l.b16 %v982
        %v1271 = vunpack.c.l.b16 %v983
        %v1272 = vunpack.c.l.b16 %v984
        %v1273 = vunpack.c.l.b16 %v985
        %v1274 = vunpack.c.l.b16 %v986
        %v1275 = vunpack.c.l.b16 %v987
        %v1276 = vunpack.c.l.b16 %v988
        %v1277 = vunpack.c.l.b16 %v989
        %v1278 = vunpack.c.l.b16 %v990
        %v1279 = vunpack.c.l.b16 %v991
        %v1280 = vunpack.c.l.b16 %v992
        %v1281 = vunpack.c.l.b16 %v993
        %v1282 = vunpack.c.l.b16 %v994
        %v1283 = vunpack.c.l.b16 %v995
        %v1284 = vunpack.c.l.b16 %v996
        %v1285 = vunpack.c.l.b16 %v997
        %v1286 = vunpack.c.l.b16 %v998
        %v1287 = vunpack.c.l.b16 %v999
        %v1288 = vpack.c.b16 %v1225, %v1224
        %v1289 = vpack.c.b16 %v1227, %v1226
        %v1290 = vpack.c.b16 %v1229, %v1228
        %v1291 = vpack.c.b16 %v1231, %v1230
        %v1292 = vpack.c.b16 %v1233, %v1232
        %v1293 = vpack.c.b16 %v1235, %v1234
        %v1294 = vpack.c.b16 %v1237, %v1236
        %v1295 = vpack.c.b16 %v1239, %v1238
        %v1296 = vpack.c.b16 %v1241, %v1240
        %v1297 = vpack.c.b16 %v1243, %v1242
        %v1298 = vpack.c.b16 %v1245, %v1244
        %v1299 = vpack.c.b16 %v1247, %v1246
        %v1300 = vpack.c.b16 %v1249, %v1248
        %v1301 = vpack.c.b16 %v1251, %v1250
        %v1302 = vpack.c.b16 %v1253, %v1252
        %v1303 = vpack.c.b16 %v1255, %v1254
        %v1304 = vpack.c.b16 %v1257, %v1256
        %v1305 = vpack.c.b16 %v1259, %v1258
        %v1306 = vpack.c.b16 %v1261, %v1260
        %v1307 = vpack.c.b16 %v1263, %v1262
        %v1308 = vpack.c.b16 %v1265, %v1264
        %v1309 = vpack.c.b16 %v1267, %v1266
        %v1310 = vpack.c.b16 %v1269, %v1268
        %v1311 = vpack.c.b16 %v1271, %v1270
        %v1312 = vpack.c.b16 %v1273, %v1272
        %v1313 = vpack.c.b16 %v1275, %v1274
        %v1314 = vpack.c.b16 %v1277, %v1276
        %v1315 = vpack.c.b16 %v1279, %v1278
        %v1316 = vpack.c.b16 %v1281, %v1280
        %v1317 = vpack.c.b16 %v1283, %v1282
        %v1318 = vpack.c.b16 %v1285, %v1284
        %v1319 = vpack.c.b16 %v1287, %v1286
        %1352 = vmatprep.subr.bf16.mxu0 0
        %1353 = vmatpush1.bf16.msra.mxu0 %v1295
        %1354 = vmatprep.subr.bf16.mxu0 0
        %1355 = vmatpush1.bf16.msra.mxu0 %v1294
        %1356 = vmatprep.subr.bf16.mxu0 0
        %1357 = vmatpush1.bf16.msra.mxu0 %v1293
        %1358 = vmatprep.subr.bf16.mxu0 0
        %1359 = vmatpush1.bf16.msra.mxu0 %v1292
        %1360 = vmatprep.subr.bf16.mxu0 0
        %1361 = vmatpush1.bf16.msra.mxu0 %v1291
        %1362 = vmatprep.subr.bf16.mxu0 0
        %1363 = vmatpush1.bf16.msra.mxu0 %v1290
        %1364 = vmatprep.subr.bf16.mxu0 0
        %1365 = vmatpush1.bf16.msra.mxu0 %v1289
        %1366 = vmatprep.subr.bf16.mxu0 0
        %1367 = vmatpush1.bf16.msra.mxu0 %v1288
        %1368 = vmatprep.subr.bf16.mxu0 0
        %1369 = vmatpush2.bf16.msra.mxu0 %v1303
        %1370 = vmatprep.subr.bf16.mxu0 0
        %1371 = vmatpush2.bf16.msra.mxu0 %v1302
        %1372 = vmatprep.subr.bf16.mxu0 0
        %1373 = vmatpush2.bf16.msra.mxu0 %v1301
        %1374 = vmatprep.subr.bf16.mxu0 0
        %1375 = vmatpush2.bf16.msra.mxu0 %v1300
        %1376 = vmatprep.subr.bf16.mxu0 0
        %1377 = vmatpush2.bf16.msra.mxu0 %v1299
        %1378 = vmatprep.subr.bf16.mxu0 0
        %1379 = vmatpush2.bf16.msra.mxu0 %v1298
        %1380 = vmatprep.subr.bf16.mxu0 0
        %1381 = vmatpush2.bf16.msra.mxu0 %v1297
        %1382 = vmatprep.subr.bf16.mxu0 0
        %1383 = vmatpush2.bf16.msra.mxu0 %v1296
        %1384 = vmatprep.mubr.bf16.mxu0 %v1097
        %1385 = vmatmul.mubr.bf16.gmra.mxu0 %v1096
        %v1386 = vpop.f32.mrf.mxu0
        %v1387 = vadd.f32 0.0, %v1386
        %v1388 = vpop.f32.mrf.mxu0
        %v1389 = vpop.f32.mrf.mxu0
        %v1390 = vadd.f32 0.0, %v1389
        %v1391 = vpop.f32.mrf.mxu0
        %1392 = vmatprep.mubr.bf16.mxu0 %v1101
        %1393 = vmatmul.mubr.bf16.gmra.mxu0 %v1100
        %v1394 = vpop.f32.mrf.mxu0
        %v1395 = vadd.f32 0.0, %v1394
        %v1396 = vpop.f32.mrf.mxu0
        %v1397 = vpop.f32.mrf.mxu0
        %v1398 = vadd.f32 0.0, %v1397
        %v1399 = vpop.f32.mrf.mxu0
        %1400 = vmatprep.mubr.bf16.mxu0 %v1105
        %1401 = vmatmul.mubr.bf16.gmra.mxu0 %v1104
        %v1402 = vpop.f32.mrf.mxu0
        %v1403 = vadd.f32 0.0, %v1402
        %v1404 = vpop.f32.mrf.mxu0
        %v1405 = vpop.f32.mrf.mxu0
        %v1406 = vadd.f32 0.0, %v1405
        %v1407 = vpop.f32.mrf.mxu0
        %1408 = vmatprep.mubr.bf16.mxu0 %v1109
        %1409 = vmatmul.mubr.bf16.gmra.mxu0 %v1108
        %v1410 = vpop.f32.mrf.mxu0
        %v1411 = vadd.f32 0.0, %v1410
        %v1412 = vpop.f32.mrf.mxu0
        %v1413 = vpop.f32.mrf.mxu0
        %v1414 = vadd.f32 0.0, %v1413
        %v1415 = vpop.f32.mrf.mxu0
        %1416 = vmatprep.mubr.bf16.mxu0 %v1113
        %1417 = vmatmul.mubr.bf16.gmra.mxu0 %v1112
        %v1418 = vpop.f32.mrf.mxu0
        %v1419 = vadd.f32 0.0, %v1418
        %v1420 = vpop.f32.mrf.mxu0
        %v1421 = vpop.f32.mrf.mxu0
        %v1422 = vadd.f32 0.0, %v1421
        %v1423 = vpop.f32.mrf.mxu0
        %1424 = vmatprep.mubr.bf16.mxu0 %v1117
        %1425 = vmatmul.mubr.bf16.gmra.mxu0 %v1116
        %v1426 = vpop.f32.mrf.mxu0
        %v1427 = vadd.f32 0.0, %v1426
        %v1428 = vpop.f32.mrf.mxu0
        %v1429 = vpop.f32.mrf.mxu0
        %v1430 = vadd.f32 0.0, %v1429
        %v1431 = vpop.f32.mrf.mxu0
        %1432 = vmatprep.mubr.bf16.mxu0 %v1121
        %1433 = vmatmul.mubr.bf16.gmra.mxu0 %v1120
        %v1434 = vpop.f32.mrf.mxu0
        %v1435 = vadd.f32 0.0, %v1434
        %v1436 = vpop.f32.mrf.mxu0
        %v1437 = vpop.f32.mrf.mxu0
        %v1438 = vadd.f32 0.0, %v1437
        %v1439 = vpop.f32.mrf.mxu0
        %1440 = vmatprep.mubr.bf16.mxu0 %v1125
        %1441 = vmatmul.mubr.bf16.gmra.mxu0 %v1124
        %v1442 = vpop.f32.mrf.mxu0
        %v1443 = vadd.f32 0.0, %v1442
        %v1444 = vpop.f32.mrf.mxu0
        %v1445 = vpop.f32.mrf.mxu0
        %v1446 = vadd.f32 0.0, %v1445
        %v1447 = vpop.f32.mrf.mxu0
        %1448 = vdwg.mxu0
        %1449 = vmatprep.subr.bf16.mxu0 0
        %1450 = vmatpush1.bf16.msra.mxu0 %v1311
        %1451 = vmatprep.subr.bf16.mxu0 0
        %1452 = vmatpush1.bf16.msra.mxu0 %v1310
        %1453 = vmatprep.subr.bf16.mxu0 0
        %1454 = vmatpush1.bf16.msra.mxu0 %v1309
        %1455 = vmatprep.subr.bf16.mxu0 0
        %1456 = vmatpush1.bf16.msra.mxu0 %v1308
        %1457 = vmatprep.subr.bf16.mxu0 0
        %1458 = vmatpush1.bf16.msra.mxu0 %v1307
        %1459 = vmatprep.subr.bf16.mxu0 0
        %1460 = vmatpush1.bf16.msra.mxu0 %v1306
        %1461 = vmatprep.subr.bf16.mxu0 0
        %1462 = vmatpush1.bf16.msra.mxu0 %v1305
        %1463 = vmatprep.subr.bf16.mxu0 0
        %1464 = vmatpush1.bf16.msra.mxu0 %v1304
        %1465 = vmatprep.subr.bf16.mxu0 0
        %1466 = vmatpush2.bf16.msra.mxu0 %v1319
        %1467 = vmatprep.subr.bf16.mxu0 0
        %1468 = vmatpush2.bf16.msra.mxu0 %v1318
        %1469 = vmatprep.subr.bf16.mxu0 0
        %1470 = vmatpush2.bf16.msra.mxu0 %v1317
        %1471 = vmatprep.subr.bf16.mxu0 0
        %1472 = vmatpush2.bf16.msra.mxu0 %v1316
        %1473 = vmatprep.subr.bf16.mxu0 0
        %1474 = vmatpush2.bf16.msra.mxu0 %v1315
        %1475 = vmatprep.subr.bf16.mxu0 0
        %1476 = vmatpush2.bf16.msra.mxu0 %v1314
        %1477 = vmatprep.subr.bf16.mxu0 0
        %1478 = vmatpush2.bf16.msra.mxu0 %v1313
        %1479 = vmatprep.subr.bf16.mxu0 0
        %1480 = vmatpush2.bf16.msra.mxu0 %v1312
        %1481 = vmatprep.mubr.bf16.mxu0 %v1099
        %1482 = vmatmul.mubr.bf16.gmra.mxu0 %v1098
        %v1483 = vpop.f32.mrf.mxu0
        %v1484 = vadd.f32 %v1387, %v1483
        %v1485 = vpop.f32.mrf.mxu0
        %v1486 = vpop.f32.mrf.mxu0
        %v1487 = vadd.f32 %v1390, %v1486
        %v1488 = vpop.f32.mrf.mxu0
        %1489 = vmatprep.mubr.bf16.mxu0 %v1103
        %1490 = vmatmul.mubr.bf16.gmra.mxu0 %v1102
        %v1491 = vpop.f32.mrf.mxu0
        %v1492 = vadd.f32 %v1395, %v1491
        %v1493 = vpop.f32.mrf.mxu0
        %v1494 = vpop.f32.mrf.mxu0
        %v1495 = vadd.f32 %v1398, %v1494
        %v1496 = vpop.f32.mrf.mxu0
        %1497 = vmatprep.mubr.bf16.mxu0 %v1107
        %1498 = vmatmul.mubr.bf16.gmra.mxu0 %v1106
        %v1499 = vpop.f32.mrf.mxu0
        %v1500 = vadd.f32 %v1403, %v1499
        %v1501 = vpop.f32.mrf.mxu0
        %v1502 = vpop.f32.mrf.mxu0
        %v1503 = vadd.f32 %v1406, %v1502
        %v1504 = vpop.f32.mrf.mxu0
        %1505 = vmatprep.mubr.bf16.mxu0 %v1111
        %1506 = vmatmul.mubr.bf16.gmra.mxu0 %v1110
        %v1507 = vpop.f32.mrf.mxu0
        %v1508 = vadd.f32 %v1411, %v1507
        %v1509 = vpop.f32.mrf.mxu0
        %v1510 = vpop.f32.mrf.mxu0
        %v1511 = vadd.f32 %v1414, %v1510
        %v1512 = vpop.f32.mrf.mxu0
        %1513 = vmatprep.mubr.bf16.mxu0 %v1115
        %1514 = vmatmul.mubr.bf16.gmra.mxu0 %v1114
        %v1515 = vpop.f32.mrf.mxu0
        %v1516 = vadd.f32 %v1419, %v1515
        %v1517 = vpop.f32.mrf.mxu0
        %v1518 = vpop.f32.mrf.mxu0
        %v1519 = vadd.f32 %v1422, %v1518
        %v1520 = vpop.f32.mrf.mxu0
        %1521 = vmatprep.mubr.bf16.mxu0 %v1119
        %1522 = vmatmul.mubr.bf16.gmra.mxu0 %v1118
        %v1523 = vpop.f32.mrf.mxu0
        %v1524 = vadd.f32 %v1427, %v1523
        %v1525 = vpop.f32.mrf.mxu0
        %v1526 = vpop.f32.mrf.mxu0
        %v1527 = vadd.f32 %v1430, %v1526
        %v1528 = vpop.f32.mrf.mxu0
        %1529 = vmatprep.mubr.bf16.mxu0 %v1123
        %1530 = vmatmul.mubr.bf16.gmra.mxu0 %v1122
        %v1531 = vpop.f32.mrf.mxu0
        %v1532 = vadd.f32 %v1435, %v1531
        %v1533 = vpop.f32.mrf.mxu0
        %v1534 = vpop.f32.mrf.mxu0
        %v1535 = vadd.f32 %v1438, %v1534
        %v1536 = vpop.f32.mrf.mxu0
        %1537 = vmatprep.mubr.bf16.mxu0 %v1127
        %1538 = vmatmul.mubr.bf16.gmra.mxu0 %v1126
        %v1539 = vpop.f32.mrf.mxu0
        %v1540 = vadd.f32 %v1443, %v1539
        %v1541 = vpop.f32.mrf.mxu0
        %v1542 = vpop.f32.mrf.mxu0
        %v1543 = vadd.f32 %v1446, %v1542
        %v1544 = vpop.f32.mrf.mxu0
        %1545 = vdwg.mxu0
        %v1546 = vadd.f32 %v888, %v1484
        %v1547 = vadd.f32 %v889, %v1487
        %v1548 = vadd.f32 %v890, %v1492
        %v1549 = vadd.f32 %v891, %v1495
        %v1550 = vadd.f32 %v892, %v1500
        %v1551 = vadd.f32 %v893, %v1503
        %v1552 = vadd.f32 %v894, %v1508
        %v1553 = vadd.f32 %v895, %v1511
        %v1554 = vadd.f32 %v896, %v1516
        %v1555 = vadd.f32 %v897, %v1519
        %v1556 = vadd.f32 %v898, %v1524
        %v1557 = vadd.f32 %v899, %v1527
        %v1558 = vadd.f32 %v900, %v1532
        %v1559 = vadd.f32 %v901, %v1535
        %v1560 = vadd.f32 %v902, %v1540
        %v1561 = vadd.f32 %v903, %v1543
        %1562 = vst [vmem:[#allocation2] sm:$0xff] %v1546
        %1563 = vst [vmem:[#allocation2 + $0x8] sm:$0xff] %v1547
        %1564 = vst [vmem:[#allocation2 + $0x10] sm:$0xff] %v1548
        %1565 = vst [vmem:[#allocation2 + $0x18] sm:$0xff] %v1549
        %1566 = vst [vmem:[#allocation2 + $0x20] sm:$0xff] %v1550
        %1567 = vst [vmem:[#allocation2 + $0x28] sm:$0xff] %v1551
        %1568 = vst [vmem:[#allocation2 + $0x30] sm:$0xff] %v1552
        %1569 = vst [vmem:[#allocation2 + $0x38] sm:$0xff] %v1553
        %1570 = vst [vmem:[#allocation2 + $0x40] sm:$0xff] %v1554
        %1571 = vst [vmem:[#allocation2 + $0x48] sm:$0xff] %v1555
        %1572 = vst [vmem:[#allocation2 + $0x50] sm:$0xff] %v1556
        %1573 = vst [vmem:[#allocation2 + $0x58] sm:$0xff] %v1557
        %1574 = vst [vmem:[#allocation2 + $0x60] sm:$0xff] %v1558
        %1575 = vst [vmem:[#allocation2 + $0x68] sm:$0xff] %v1559
        %1576 = vst [vmem:[#allocation2 + $0x70] sm:$0xff] %v1560
        %1577 = vst [vmem:[#allocation2 + $0x78] sm:$0xff] %v1561
        // Predicated region
        $region153: #{tpu_custom_call.1} parent=95 // pred_check
          %p1578 = pneg %p868
        $region154: #{tpu_custom_call.1} parent=95 // pred_check_branch
          %1580 = sbr.rel (%p1578) target = $region156
        $region155: #{tpu_custom_call.1} parent=95 // pred_region
          %v1581 = vld [vmem:[%s748] sm:$0xff]
          %v1582 = vld [vmem:[%s748 + $0x8] sm:$0xff]
          %v1583 = vld [vmem:[%s748 + $0x10] sm:$0xff]
          %v1584 = vld [vmem:[%s748 + $0x18] sm:$0xff]
          %v1585 = vld [vmem:[%s748 + $0x20] sm:$0xff]
          %v1586 = vld [vmem:[%s748 + $0x28] sm:$0xff]
          %v1587 = vld [vmem:[%s748 + $0x30] sm:$0xff]
          %v1588 = vld [vmem:[%s748 + $0x38] sm:$0xff]
          %v1589 = vld [vmem:[%s748 + $0x40] sm:$0xff]
          %v1590 = vld [vmem:[%s748 + $0x48] sm:$0xff]
          %v1591 = vld [vmem:[%s748 + $0x50] sm:$0xff]
          %v1592 = vld [vmem:[%s748 + $0x58] sm:$0xff]
          %v1593 = vld [vmem:[%s748 + $0x60] sm:$0xff]
          %v1594 = vld [vmem:[%s748 + $0x68] sm:$0xff]
          %v1595 = vld [vmem:[%s748 + $0x70] sm:$0xff]
          %v1596 = vld [vmem:[%s748 + $0x78] sm:$0xff]
          %v1597 = vld [vmem:[#allocation9] sm:$0xf]
          %v1598 = vld [vmem:[#allocation9 + $0x4] sm:$0xf]
          %v1599 = vld [vmem:[#allocation9 + $0x8] sm:$0xf]
          %v1600 = vld [vmem:[#allocation9 + $0xc] sm:$0xf]
          %v1601 = vld [vmem:[#allocation9 + $0x10] sm:$0xf]
          %v1602 = vld [vmem:[#allocation9 + $0x14] sm:$0xf]
          %v1603 = vld [vmem:[#allocation9 + $0x18] sm:$0xf]
          %v1604 = vld [vmem:[#allocation9 + $0x1c] sm:$0xf]
          %v1605 = vld [vmem:[#allocation9 + $0x20] sm:$0xf]
          %v1606 = vld [vmem:[#allocation9 + $0x24] sm:$0xf]
          %v1607 = vld [vmem:[#allocation9 + $0x28] sm:$0xf]
          %v1608 = vld [vmem:[#allocation9 + $0x2c] sm:$0xf]
          %v1609 = vld [vmem:[#allocation9 + $0x30] sm:$0xf]
          %v1610 = vld [vmem:[#allocation9 + $0x34] sm:$0xf]
          %v1611 = vld [vmem:[#allocation9 + $0x38] sm:$0xf]
          %v1612 = vld [vmem:[#allocation9 + $0x3c] sm:$0xf]
          %v1613 = vld [vmem:[#allocation9 + $0x40] sm:$0xf]
          %v1614 = vld [vmem:[#allocation9 + $0x44] sm:$0xf]
          %v1615 = vld [vmem:[#allocation9 + $0x48] sm:$0xf]
          %v1616 = vld [vmem:[#allocation9 + $0x4c] sm:$0xf]
          %v1617 = vld [vmem:[#allocation9 + $0x50] sm:$0xf]
          %v1618 = vld [vmem:[#allocation9 + $0x54] sm:$0xf]
          %v1619 = vld [vmem:[#allocation9 + $0x58] sm:$0xf]
          %v1620 = vld [vmem:[#allocation9 + $0x5c] sm:$0xf]
          %v1621 = vld [vmem:[#allocation9 + $0x60] sm:$0xf]
          %v1622 = vld [vmem:[#allocation9 + $0x64] sm:$0xf]
          %v1623 = vld [vmem:[#allocation9 + $0x68] sm:$0xf]
          %v1624 = vld [vmem:[#allocation9 + $0x6c] sm:$0xf]
          %v1625 = vld [vmem:[#allocation9 + $0x70] sm:$0xf]
          %v1626 = vld [vmem:[#allocation9 + $0x74] sm:$0xf]
          %v1627 = vld [vmem:[#allocation9 + $0x78] sm:$0xf]
          %v1628 = vld [vmem:[#allocation9 + $0x7c] sm:$0xf]
          %v1645 = vunpack.c.l.b16 %v1581
          %v1646 = vunpack.c.h.b16 %v1581
          %v1647 = vunpack.c.l.b16 %v1582
          %v1648 = vunpack.c.h.b16 %v1582
          %v1649 = vunpack.c.l.b16 %v1583
          %v1650 = vunpack.c.h.b16 %v1583
          %v1651 = vunpack.c.l.b16 %v1584
          %v1652 = vunpack.c.h.b16 %v1584
          %v1653 = vunpack.c.l.b16 %v1585
          %v1654 = vunpack.c.h.b16 %v1585
          %v1655 = vunpack.c.l.b16 %v1586
          %v1656 = vunpack.c.h.b16 %v1586
          %v1657 = vunpack.c.l.b16 %v1587
          %v1658 = vunpack.c.h.b16 %v1587
          %v1659 = vunpack.c.l.b16 %v1588
          %v1660 = vunpack.c.h.b16 %v1588
          %v1661 = vunpack.c.l.b16 %v1589
          %v1662 = vunpack.c.h.b16 %v1589
          %v1663 = vunpack.c.l.b16 %v1590
          %v1664 = vunpack.c.h.b16 %v1590
          %v1665 = vunpack.c.l.b16 %v1591
          %v1666 = vunpack.c.h.b16 %v1591
          %v1667 = vunpack.c.l.b16 %v1592
          %v1668 = vunpack.c.h.b16 %v1592
          %v1669 = vunpack.c.l.b16 %v1593
          %v1670 = vunpack.c.h.b16 %v1593
          %v1671 = vunpack.c.l.b16 %v1594
          %v1672 = vunpack.c.h.b16 %v1594
          %v1673 = vunpack.c.l.b16 %v1595
          %v1674 = vunpack.c.h.b16 %v1595
          %v1675 = vunpack.c.l.b16 %v1596
          %v1676 = vunpack.c.h.b16 %v1596
          %v1677 = vpack.c.b16 %v1647, %v1645
          %v1678 = vpack.c.b16 %v1648, %v1646
          %v1679 = vpack.c.b16 %v1651, %v1649
          %v1680 = vpack.c.b16 %v1652, %v1650
          %v1681 = vpack.c.b16 %v1655, %v1653
          %v1682 = vpack.c.b16 %v1656, %v1654
          %v1683 = vpack.c.b16 %v1659, %v1657
          %v1684 = vpack.c.b16 %v1660, %v1658
          %v1685 = vpack.c.b16 %v1663, %v1661
          %v1686 = vpack.c.b16 %v1664, %v1662
          %v1687 = vpack.c.b16 %v1667, %v1665
          %v1688 = vpack.c.b16 %v1668, %v1666
          %v1689 = vpack.c.b16 %v1671, %v1669
          %v1690 = vpack.c.b16 %v1672, %v1670
          %v1691 = vpack.c.b16 %v1675, %v1673
          %v1692 = vpack.c.b16 %v1676, %v1674
          %v1741 = vunpack.c.l.b16 %v1597
          %v1742 = vunpack.c.l.b16 %v1598
          %v1743 = vunpack.c.l.b16 %v1599
          %v1744 = vunpack.c.l.b16 %v1600
          %v1745 = vunpack.c.l.b16 %v1601
          %v1746 = vunpack.c.l.b16 %v1602
          %v1747 = vunpack.c.l.b16 %v1603
          %v1748 = vunpack.c.l.b16 %v1604
          %v1749 = vunpack.c.l.b16 %v1605
          %v1750 = vunpack.c.l.b16 %v1606
          %v1751 = vunpack.c.l.b16 %v1607
          %v1752 = vunpack.c.l.b16 %v1608
          %v1753 = vunpack.c.l.b16 %v1609
          %v1754 = vunpack.c.l.b16 %v1610
          %v1755 = vunpack.c.l.b16 %v1611
          %v1756 = vunpack.c.l.b16 %v1612
          %v1757 = vunpack.c.l.b16 %v1613
          %v1758 = vunpack.c.l.b16 %v1614
          %v1759 = vunpack.c.l.b16 %v1615
          %v1760 = vunpack.c.l.b16 %v1616
          %v1761 = vunpack.c.l.b16 %v1617
          %v1762 = vunpack.c.l.b16 %v1618
          %v1763 = vunpack.c.l.b16 %v1619
          %v1764 = vunpack.c.l.b16 %v1620
          %v1765 = vunpack.c.l.b16 %v1621
          %v1766 = vunpack.c.l.b16 %v1622
          %v1767 = vunpack.c.l.b16 %v1623
          %v1768 = vunpack.c.l.b16 %v1624
          %v1769 = vunpack.c.l.b16 %v1625
          %v1770 = vunpack.c.l.b16 %v1626
          %v1771 = vunpack.c.l.b16 %v1627
          %v1772 = vunpack.c.l.b16 %v1628
          %v1773 = vpack.c.b16 %v1742, %v1741
          %v1774 = vpack.c.b16 %v1744, %v1743
          %v1775 = vpack.c.b16 %v1746, %v1745
          %v1776 = vpack.c.b16 %v1748, %v1747
          %v1777 = vpack.c.b16 %v1750, %v1749
          %v1778 = vpack.c.b16 %v1752, %v1751
          %v1779 = vpack.c.b16 %v1754, %v1753
          %v1780 = vpack.c.b16 %v1756, %v1755
          %v1781 = vpack.c.b16 %v1758, %v1757
          %v1782 = vpack.c.b16 %v1760, %v1759
          %v1783 = vpack.c.b16 %v1762, %v1761
          %v1784 = vpack.c.b16 %v1764, %v1763
          %v1785 = vpack.c.b16 %v1766, %v1765
          %v1786 = vpack.c.b16 %v1768, %v1767
          %v1787 = vpack.c.b16 %v1770, %v1769
          %v1788 = vpack.c.b16 %v1772, %v1771
          %1805 = vmatprep.subr.bf16.mxu0 0
          %1806 = vmatpush1.bf16.msra.mxu0 %v1780
          %1807 = vmatprep.subr.bf16.mxu0 0
          %1808 = vmatpush1.bf16.msra.mxu0 %v1779
          %1809 = vmatprep.subr.bf16.mxu0 0
          %1810 = vmatpush1.bf16.msra.mxu0 %v1778
          %1811 = vmatprep.subr.bf16.mxu0 0
          %1812 = vmatpush1.bf16.msra.mxu0 %v1777
          %1813 = vmatprep.subr.bf16.mxu0 0
          %1814 = vmatpush1.bf16.msra.mxu0 %v1776
          %1815 = vmatprep.subr.bf16.mxu0 0
          %1816 = vmatpush1.bf16.msra.mxu0 %v1775
          %1817 = vmatprep.subr.bf16.mxu0 0
          %1818 = vmatpush1.bf16.msra.mxu0 %v1774
          %1819 = vmatprep.subr.bf16.mxu0 0
          %1820 = vmatpush1.bf16.msra.mxu0 %v1773
          %1821 = vmatprep.subr.bf16.mxu0 0
          %1822 = vmatpush2.bf16.msra.mxu0 %v1788
          %1823 = vmatprep.subr.bf16.mxu0 0
          %1824 = vmatpush2.bf16.msra.mxu0 %v1787
          %1825 = vmatprep.subr.bf16.mxu0 0
          %1826 = vmatpush2.bf16.msra.mxu0 %v1786
          %1827 = vmatprep.subr.bf16.mxu0 0
          %1828 = vmatpush2.bf16.msra.mxu0 %v1785
          %1829 = vmatprep.subr.bf16.mxu0 0
          %1830 = vmatpush2.bf16.msra.mxu0 %v1784
          %1831 = vmatprep.subr.bf16.mxu0 0
          %1832 = vmatpush2.bf16.msra.mxu0 %v1783
          %1833 = vmatprep.subr.bf16.mxu0 0
          %1834 = vmatpush2.bf16.msra.mxu0 %v1782
          %1835 = vmatprep.subr.bf16.mxu0 0
          %1836 = vmatpush2.bf16.msra.mxu0 %v1781
          %1837 = vmatprep.mubr.bf16.mxu0 %v1678
          %1838 = vmatmul.mubr.bf16.gmra.mxu0 %v1677
          %v1839 = vpop.f32.mrf.mxu0
          %v1840 = vadd.f32 0.0, %v1839
          %v1841 = vpop.f32.mrf.mxu0
          %v1842 = vpop.f32.mrf.mxu0
          %v1843 = vadd.f32 0.0, %v1842
          %v1844 = vpop.f32.mrf.mxu0
          %1845 = vmatprep.mubr.bf16.mxu0 %v1680
          %1846 = vmatmul.mubr.bf16.gmra.mxu0 %v1679
          %v1847 = vpop.f32.mrf.mxu0
          %v1848 = vadd.f32 0.0, %v1847
          %v1849 = vpop.f32.mrf.mxu0
          %v1850 = vpop.f32.mrf.mxu0
          %v1851 = vadd.f32 0.0, %v1850
          %v1852 = vpop.f32.mrf.mxu0
          %1853 = vmatprep.mubr.bf16.mxu0 %v1682
          %1854 = vmatmul.mubr.bf16.gmra.mxu0 %v1681
          %v1855 = vpop.f32.mrf.mxu0
          %v1856 = vadd.f32 0.0, %v1855
          %v1857 = vpop.f32.mrf.mxu0
          %v1858 = vpop.f32.mrf.mxu0
          %v1859 = vadd.f32 0.0, %v1858
          %v1860 = vpop.f32.mrf.mxu0
          %1861 = vmatprep.mubr.bf16.mxu0 %v1684
          %1862 = vmatmul.mubr.bf16.gmra.mxu0 %v1683
          %v1863 = vpop.f32.mrf.mxu0
          %v1864 = vadd.f32 0.0, %v1863
          %v1865 = vpop.f32.mrf.mxu0
          %v1866 = vpop.f32.mrf.mxu0
          %v1867 = vadd.f32 0.0, %v1866
          %v1868 = vpop.f32.mrf.mxu0
          %1869 = vmatprep.mubr.bf16.mxu0 %v1686
          %1870 = vmatmul.mubr.bf16.gmra.mxu0 %v1685
          %v1871 = vpop.f32.mrf.mxu0
          %v1872 = vadd.f32 0.0, %v1871
          %v1873 = vpop.f32.mrf.mxu0
          %v1874 = vpop.f32.mrf.mxu0
          %v1875 = vadd.f32 0.0, %v1874
          %v1876 = vpop.f32.mrf.mxu0
          %1877 = vmatprep.mubr.bf16.mxu0 %v1688
          %1878 = vmatmul.mubr.bf16.gmra.mxu0 %v1687
          %v1879 = vpop.f32.mrf.mxu0
          %v1880 = vadd.f32 0.0, %v1879
          %v1881 = vpop.f32.mrf.mxu0
          %v1882 = vpop.f32.mrf.mxu0
          %v1883 = vadd.f32 0.0, %v1882
          %v1884 = vpop.f32.mrf.mxu0
          %1885 = vmatprep.mubr.bf16.mxu0 %v1690
          %1886 = vmatmul.mubr.bf16.gmra.mxu0 %v1689
          %v1887 = vpop.f32.mrf.mxu0
          %v1888 = vadd.f32 0.0, %v1887
          %v1889 = vpop.f32.mrf.mxu0
          %v1890 = vpop.f32.mrf.mxu0
          %v1891 = vadd.f32 0.0, %v1890
          %v1892 = vpop.f32.mrf.mxu0
          %1893 = vmatprep.mubr.bf16.mxu0 %v1692
          %1894 = vmatmul.mubr.bf16.gmra.mxu0 %v1691
          %v1895 = vpop.f32.mrf.mxu0
          %v1896 = vadd.f32 0.0, %v1895
          %v1897 = vpop.f32.mrf.mxu0
          %v1898 = vpop.f32.mrf.mxu0
          %v1899 = vadd.f32 0.0, %v1898
          %v1900 = vpop.f32.mrf.mxu0
          %1901 = vdwg.mxu0
          %v1902 = vmax.f32 %v1840, 0.0
          %v1903 = vmax.f32 %v1843, 0.0
          %v1904 = vmax.f32 %v1848, 0.0
          %v1905 = vmax.f32 %v1851, 0.0
          %v1906 = vmax.f32 %v1856, 0.0
          %v1907 = vmax.f32 %v1859, 0.0
          %v1908 = vmax.f32 %v1864, 0.0
          %v1909 = vmax.f32 %v1867, 0.0
          %v1910 = vmax.f32 %v1872, 0.0
          %v1911 = vmax.f32 %v1875, 0.0
          %v1912 = vmax.f32 %v1880, 0.0
          %v1913 = vmax.f32 %v1883, 0.0
          %v1914 = vmax.f32 %v1888, 0.0
          %v1915 = vmax.f32 %v1891, 0.0
          %v1916 = vmax.f32 %v1896, 0.0
          %v1917 = vmax.f32 %v1899, 0.0
          %v1918 = vld [vmem:[#allocation2] sm:$0xff]
          %v1919 = vld [vmem:[#allocation2 + $0x8] sm:$0xff]
          %v1920 = vld [vmem:[#allocation2 + $0x10] sm:$0xff]
          %v1921 = vld [vmem:[#allocation2 + $0x18] sm:$0xff]
          %v1922 = vld [vmem:[#allocation2 + $0x20] sm:$0xff]
          %v1923 = vld [vmem:[#allocation2 + $0x28] sm:$0xff]
          %v1924 = vld [vmem:[#allocation2 + $0x30] sm:$0xff]
          %v1925 = vld [vmem:[#allocation2 + $0x38] sm:$0xff]
          %v1926 = vld [vmem:[#allocation2 + $0x40] sm:$0xff]
          %v1927 = vld [vmem:[#allocation2 + $0x48] sm:$0xff]
          %v1928 = vld [vmem:[#allocation2 + $0x50] sm:$0xff]
          %v1929 = vld [vmem:[#allocation2 + $0x58] sm:$0xff]
          %v1930 = vld [vmem:[#allocation2 + $0x60] sm:$0xff]
          %v1931 = vld [vmem:[#allocation2 + $0x68] sm:$0xff]
          %v1932 = vld [vmem:[#allocation2 + $0x70] sm:$0xff]
          %v1933 = vld [vmem:[#allocation2 + $0x78] sm:$0xff]
          %v1934 = vmax.f32 %v1918, 0.0
          %v1935 = vmax.f32 %v1919, 0.0
          %v1936 = vmax.f32 %v1920, 0.0
          %v1937 = vmax.f32 %v1921, 0.0
          %v1938 = vmax.f32 %v1922, 0.0
          %v1939 = vmax.f32 %v1923, 0.0
          %v1940 = vmax.f32 %v1924, 0.0
          %v1941 = vmax.f32 %v1925, 0.0
          %v1942 = vmax.f32 %v1926, 0.0
          %v1943 = vmax.f32 %v1927, 0.0
          %v1944 = vmax.f32 %v1928, 0.0
          %v1945 = vmax.f32 %v1929, 0.0
          %v1946 = vmax.f32 %v1930, 0.0
          %v1947 = vmax.f32 %v1931, 0.0
          %v1948 = vmax.f32 %v1932, 0.0
          %v1949 = vmax.f32 %v1933, 0.0
          %v1950 = vmul.f32 %v1902, %v1934
          %v1951 = vmul.f32 %v1903, %v1935
          %v1952 = vmul.f32 %v1904, %v1936
          %v1953 = vmul.f32 %v1905, %v1937
          %v1954 = vmul.f32 %v1906, %v1938
          %v1955 = vmul.f32 %v1907, %v1939
          %v1956 = vmul.f32 %v1908, %v1940
          %v1957 = vmul.f32 %v1909, %v1941
          %v1958 = vmul.f32 %v1910, %v1942
          %v1959 = vmul.f32 %v1911, %v1943
          %v1960 = vmul.f32 %v1912, %v1944
          %v1961 = vmul.f32 %v1913, %v1945
          %v1962 = vmul.f32 %v1914, %v1946
          %v1963 = vmul.f32 %v1915, %v1947
          %v1964 = vmul.f32 %v1916, %v1948
          %v1965 = vmul.f32 %v1917, %v1949
          %v1966 = vpack.c.bf16 %v1951, %v1950
          %v1967 = vpack.c.bf16 %v1953, %v1952
          %v1968 = vpack.c.bf16 %v1955, %v1954
          %v1969 = vpack.c.bf16 %v1957, %v1956
          %v1970 = vpack.c.bf16 %v1959, %v1958
          %v1971 = vpack.c.bf16 %v1961, %v1960
          %v1972 = vpack.c.bf16 %v1963, %v1962
          %v1973 = vpack.c.bf16 %v1965, %v1964
          %v1974 = vld [vmem:[#allocation12] sm:$0xff]
          %v1975 = vld [vmem:[#allocation12 + $0x8] sm:$0xf]
          %v1976 = vld [vmem:[#allocation12 + $0xc] sm:$0xff]
          %v1977 = vld [vmem:[#allocation12 + $0x14] sm:$0xf]
          %v1978 = vld [vmem:[#allocation12 + $0x18] sm:$0xff]
          %v1979 = vld [vmem:[#allocation12 + $0x20] sm:$0xf]
          %v1980 = vld [vmem:[#allocation12 + $0x24] sm:$0xff]
          %v1981 = vld [vmem:[#allocation12 + $0x2c] sm:$0xf]
          %v1982 = vld [vmem:[#allocation12 + $0x30] sm:$0xff]
          %v1983 = vld [vmem:[#allocation12 + $0x38] sm:$0xf]
          %v1984 = vld [vmem:[#allocation12 + $0x3c] sm:$0xff]
          %v1985 = vld [vmem:[#allocation12 + $0x44] sm:$0xf]
          %v1986 = vld [vmem:[#allocation12 + $0x48] sm:$0xff]
          %v1987 = vld [vmem:[#allocation12 + $0x50] sm:$0xf]
          %v1988 = vld [vmem:[#allocation12 + $0x54] sm:$0xff]
          %v1989 = vld [vmem:[#allocation12 + $0x5c] sm:$0xf]
          %v1990 = vld [vmem:[#allocation12 + $0x60] sm:$0xff]
          %v1991 = vld [vmem:[#allocation12 + $0x68] sm:$0xf]
          %v1992 = vld [vmem:[#allocation12 + $0x6c] sm:$0xff]
          %v1993 = vld [vmem:[#allocation12 + $0x74] sm:$0xf]
          %v1994 = vld [vmem:[#allocation12 + $0x78] sm:$0xff]
          %v1995 = vld [vmem:[#allocation12 + $0x80] sm:$0xf]
          %v1996 = vld [vmem:[#allocation12 + $0x84] sm:$0xff]
          %v1997 = vld [vmem:[#allocation12 + $0x8c] sm:$0xf]
          %v1998 = vld [vmem:[#allocation12 + $0x90] sm:$0xff]
          %v1999 = vld [vmem:[#allocation12 + $0x98] sm:$0xf]
          %v2000 = vld [vmem:[#allocation12 + $0x9c] sm:$0xff]
          %v2001 = vld [vmem:[#allocation12 + $0xa4] sm:$0xf]
          %v2002 = vld [vmem:[#allocation12 + $0xa8] sm:$0xff]
          %v2003 = vld [vmem:[#allocation12 + $0xb0] sm:$0xf]
          %v2004 = vld [vmem:[#allocation12 + $0xb4] sm:$0xff]
          %v2005 = vld [vmem:[#allocation12 + $0xbc] sm:$0xf]
          %v2006 = vld [vmem:[%s6] sm:$0x7]
          %v2008 = vlaneseq
          %v2009 = vshrl.u32 %v2008, 7
          %v2010 = vsub.s32 0, %v2009
          %v2011 = vrot.slane %v2006, %v2010
          %v2012 = vlaneseq
          %v2013 = vshrl.u32 %v2012, 7
          %v2014 = vsub.s32 1, %v2013
          %v2015 = vrot.slane %v2006, %v2014
          %v2016 = vlaneseq
          %v2017 = vshrl.u32 %v2016, 7
          %v2018 = vsub.s32 2, %v2017
          %v2019 = vrot.slane %v2006, %v2018
          %v2055 = vunpack.c.l.b16 %v1974
          %v2056 = vunpack.c.h.b16 %v1974
          %v2057 = vunpack.c.l.b16 %v1975
          %v2058 = vunpack.c.l.b16 %v1976
          %v2059 = vunpack.c.h.b16 %v1976
          %v2060 = vunpack.c.l.b16 %v1977
          %v2061 = vunpack.c.l.b16 %v1978
          %v2062 = vunpack.c.h.b16 %v1978
          %v2063 = vunpack.c.l.b16 %v1979
          %v2064 = vunpack.c.l.b16 %v1980
          %v2065 = vunpack.c.h.b16 %v1980
          %v2066 = vunpack.c.l.b16 %v1981
          %v2067 = vunpack.c.l.b16 %v1982
          %v2068 = vunpack.c.h.b16 %v1982
          %v2069 = vunpack.c.l.b16 %v1983
          %v2070 = vunpack.c.l.b16 %v1984
          %v2071 = vunpack.c.h.b16 %v1984
          %v2072 = vunpack.c.l.b16 %v1985
          %v2073 = vunpack.c.l.b16 %v1986
          %v2074 = vunpack.c.h.b16 %v1986
          %v2075 = vunpack.c.l.b16 %v1987
          %v2076 = vunpack.c.l.b16 %v1988
          %v2077 = vunpack.c.h.b16 %v1988
          %v2078 = vunpack.c.l.b16 %v1989
          %v2079 = vunpack.c.l.b16 %v1990
          %v2080 = vunpack.c.h.b16 %v1990
          %v2081 = vunpack.c.l.b16 %v1991
          %v2082 = vunpack.c.l.b16 %v1992
          %v2083 = vunpack.c.h.b16 %v1992
          %v2084 = vunpack.c.l.b16 %v1993
          %v2085 = vunpack.c.l.b16 %v1994
          %v2086 = vunpack.c.h.b16 %v1994
          %v2087 = vunpack.c.l.b16 %v1995
          %v2088 = vunpack.c.l.b16 %v1996
          %v2089 = vunpack.c.h.b16 %v1996
          %v2090 = vunpack.c.l.b16 %v1997
          %v2091 = vunpack.c.l.b16 %v1998
          %v2092 = vunpack.c.h.b16 %v1998
          %v2093 = vunpack.c.l.b16 %v1999
          %v2094 = vunpack.c.l.b16 %v2000
          %v2095 = vunpack.c.h.b16 %v2000
          %v2096 = vunpack.c.l.b16 %v2001
          %v2097 = vunpack.c.l.b16 %v2002
          %v2098 = vunpack.c.h.b16 %v2002
          %v2099 = vunpack.c.l.b16 %v2003
          %v2100 = vunpack.c.l.b16 %v2004
          %v2101 = vunpack.c.h.b16 %v2004
          %v2102 = vunpack.c.l.b16 %v2005
          %v2103 = vpack.c.b16 %v2058, %v2055
          %v2104 = vpack.c.b16 %v2059, %v2056
          %v2105 = vpack.c.b16 %v2060, %v2057
          %v2106 = vpack.c.b16 %v2064, %v2061
          %v2107 = vpack.c.b16 %v2065, %v2062
          %v2108 = vpack.c.b16 %v2066, %v2063
          %v2109 = vpack.c.b16 %v2070, %v2067
          %v2110 = vpack.c.b16 %v2071, %v2068
          %v2111 = vpack.c.b16 %v2072, %v2069
          %v2112 = vpack.c.b16 %v2076, %v2073
          %v2113 = vpack.c.b16 %v2077, %v2074
          %v2114 = vpack.c.b16 %v2078, %v2075
          %v2115 = vpack.c.b16 %v2082, %v2079
          %v2116 = vpack.c.b16 %v2083, %v2080
          %v2117 = vpack.c.b16 %v2084, %v2081
          %v2118 = vpack.c.b16 %v2088, %v2085
          %v2119 = vpack.c.b16 %v2089, %v2086
          %v2120 = vpack.c.b16 %v2090, %v2087
          %v2121 = vpack.c.b16 %v2094, %v2091
          %v2122 = vpack.c.b16 %v2095, %v2092
          %v2123 = vpack.c.b16 %v2096, %v2093
          %v2124 = vpack.c.b16 %v2100, %v2097
          %v2125 = vpack.c.b16 %v2101, %v2098
          %v2126 = vpack.c.b16 %v2102, %v2099
          %2151 = vmatprep.subr.bf16.mxu0 %v2125
          %2152 = vmatpush1.bf16.msra.mxu0 %v2124
          %2153 = vmatprep.subr.bf16.mxu0 %v2122
          %2154 = vmatpush1.bf16.msra.mxu0 %v2121
          %2155 = vmatprep.subr.bf16.mxu0 %v2119
          %2156 = vmatpush1.bf16.msra.mxu0 %v2118
          %2157 = vmatprep.subr.bf16.mxu0 %v2116
          %2158 = vmatpush1.bf16.msra.mxu0 %v2115
          %2159 = vmatprep.subr.bf16.mxu0 %v2113
          %2160 = vmatpush1.bf16.msra.mxu0 %v2112
          %2161 = vmatprep.subr.bf16.mxu0 %v2110
          %2162 = vmatpush1.bf16.msra.mxu0 %v2109
          %2163 = vmatprep.subr.bf16.mxu0 %v2107
          %2164 = vmatpush1.bf16.msra.mxu0 %v2106
          %2165 = vmatprep.subr.bf16.mxu0 %v2104
          %2166 = vmatpush1.bf16.msra.mxu0 %v2103
          %2167 = vmatprep.subr.bf16.mxu0 0
          %2168 = vmatpush2.bf16.msra.mxu0 0
          %2169 = vmatprep.subr.bf16.mxu0 0
          %2170 = vmatpush2.bf16.msra.mxu0 0
          %2171 = vmatprep.subr.bf16.mxu0 0
          %2172 = vmatpush2.bf16.msra.mxu0 0
          %2173 = vmatprep.subr.bf16.mxu0 0
          %2174 = vmatpush2.bf16.msra.mxu0 0
          %2175 = vmatprep.subr.bf16.mxu0 0
          %2176 = vmatpush2.bf16.msra.mxu0 0
          %2177 = vmatprep.subr.bf16.mxu0 0
          %2178 = vmatpush2.bf16.msra.mxu0 0
          %2179 = vmatprep.subr.bf16.mxu0 0
          %2180 = vmatpush2.bf16.msra.mxu0 0
          %2181 = vmatprep.subr.bf16.mxu0 0
          %2182 = vmatpush2.bf16.msra.mxu0 0
          %2183 = vmatprep.mubr.bf16.mxu0 0
          %2184 = vmatmul.mubr.bf16.gmra.mxu0 %v1966
          %v2185 = vpop.f32.mrf.mxu0
          %v2186 = vadd.f32 %v2011, %v2185
          %v2187 = vpop.f32.mrf.mxu0
          %v2188 = vadd.f32 %v2015, %v2187
          %v2189 = vpop.f32.mrf.mxu0
          %v2190 = vadd.f32 %v2011, %v2189
          %v2191 = vpop.f32.mrf.mxu0
          %v2192 = vadd.f32 %v2015, %v2191
          %2193 = vmatprep.mubr.bf16.mxu0 0
          %2194 = vmatmul.mubr.bf16.gmra.mxu0 %v1967
          %v2195 = vpop.f32.mrf.mxu0
          %v2196 = vadd.f32 %v2011, %v2195
          %v2197 = vpop.f32.mrf.mxu0
          %v2198 = vadd.f32 %v2015, %v2197
          %v2199 = vpop.f32.mrf.mxu0
          %v2200 = vadd.f32 %v2011, %v2199
          %v2201 = vpop.f32.mrf.mxu0
          %v2202 = vadd.f32 %v2015, %v2201
          %2203 = vmatprep.mubr.bf16.mxu0 0
          %2204 = vmatmul.mubr.bf16.gmra.mxu0 %v1968
          %v2205 = vpop.f32.mrf.mxu0
          %v2206 = vadd.f32 %v2011, %v2205
          %v2207 = vpop.f32.mrf.mxu0
          %v2208 = vadd.f32 %v2015, %v2207
          %v2209 = vpop.f32.mrf.mxu0
          %v2210 = vadd.f32 %v2011, %v2209
          %v2211 = vpop.f32.mrf.mxu0
          %v2212 = vadd.f32 %v2015, %v2211
          %2213 = vmatprep.mubr.bf16.mxu0 0
          %2214 = vmatmul.mubr.bf16.gmra.mxu0 %v1969
          %v2215 = vpop.f32.mrf.mxu0
          %v2216 = vadd.f32 %v2011, %v2215
          %v2217 = vpop.f32.mrf.mxu0
          %v2218 = vadd.f32 %v2015, %v2217
          %v2219 = vpop.f32.mrf.mxu0
          %v2220 = vadd.f32 %v2011, %v2219
          %v2221 = vpop.f32.mrf.mxu0
          %v2222 = vadd.f32 %v2015, %v2221
          %2223 = vmatprep.mubr.bf16.mxu0 0
          %2224 = vmatmul.mubr.bf16.gmra.mxu0 %v1970
          %v2225 = vpop.f32.mrf.mxu0
          %v2226 = vadd.f32 %v2011, %v2225
          %v2227 = vpop.f32.mrf.mxu0
          %v2228 = vadd.f32 %v2015, %v2227
          %v2229 = vpop.f32.mrf.mxu0
          %v2230 = vadd.f32 %v2011, %v2229
          %v2231 = vpop.f32.mrf.mxu0
          %v2232 = vadd.f32 %v2015, %v2231
          %2233 = vmatprep.mubr.bf16.mxu0 0
          %2234 = vmatmul.mubr.bf16.gmra.mxu0 %v1971
          %v2235 = vpop.f32.mrf.mxu0
          %v2236 = vadd.f32 %v2011, %v2235
          %v2237 = vpop.f32.mrf.mxu0
          %v2238 = vadd.f32 %v2015, %v2237
          %v2239 = vpop.f32.mrf.mxu0
          %v2240 = vadd.f32 %v2011, %v2239
          %v2241 = vpop.f32.mrf.mxu0
          %v2242 = vadd.f32 %v2015, %v2241
          %2243 = vmatprep.mubr.bf16.mxu0 0
          %2244 = vmatmul.mubr.bf16.gmra.mxu0 %v1972
          %v2245 = vpop.f32.mrf.mxu0
          %v2246 = vadd.f32 %v2011, %v2245
          %v2247 = vpop.f32.mrf.mxu0
          %v2248 = vadd.f32 %v2015, %v2247
          %v2249 = vpop.f32.mrf.mxu0
          %v2250 = vadd.f32 %v2011, %v2249
          %v2251 = vpop.f32.mrf.mxu0
          %v2252 = vadd.f32 %v2015, %v2251
          %2253 = vmatprep.mubr.bf16.mxu0 0
          %2254 = vmatmul.mubr.bf16.gmra.mxu0 %v1973
          %v2255 = vpop.f32.mrf.mxu0
          %v2256 = vadd.f32 %v2011, %v2255
          %v2257 = vpop.f32.mrf.mxu0
          %v2258 = vadd.f32 %v2015, %v2257
          %v2259 = vpop.f32.mrf.mxu0
          %v2260 = vadd.f32 %v2011, %v2259
          %v2261 = vpop.f32.mrf.mxu0
          %v2262 = vadd.f32 %v2015, %v2261
          %2263 = vdwg.mxu0
          %2264 = vmatprep.subr.bf16.mxu0 0
          %2265 = vmatpush1.bf16.msra.mxu0 %v2126
          %2266 = vmatprep.subr.bf16.mxu0 0
          %2267 = vmatpush1.bf16.msra.mxu0 %v2123
          %2268 = vmatprep.subr.bf16.mxu0 0
          %2269 = vmatpush1.bf16.msra.mxu0 %v2120
          %2270 = vmatprep.subr.bf16.mxu0 0
          %2271 = vmatpush1.bf16.msra.mxu0 %v2117
          %2272 = vmatprep.subr.bf16.mxu0 0
          %2273 = vmatpush1.bf16.msra.mxu0 %v2114
          %2274 = vmatprep.subr.bf16.mxu0 0
          %2275 = vmatpush1.bf16.msra.mxu0 %v2111
          %2276 = vmatprep.subr.bf16.mxu0 0
          %2277 = vmatpush1.bf16.msra.mxu0 %v2108
          %2278 = vmatprep.subr.bf16.mxu0 0
          %2279 = vmatpush1.bf16.msra.mxu0 %v2105
          %2280 = vmatprep.subr.bf16.mxu0 0
          %2281 = vmatpush2.bf16.msra.mxu0 0
          %2282 = vmatprep.subr.bf16.mxu0 0
          %2283 = vmatpush2.bf16.msra.mxu0 0
          %2284 = vmatprep.subr.bf16.mxu0 0
          %2285 = vmatpush2.bf16.msra.mxu0 0
          %2286 = vmatprep.subr.bf16.mxu0 0
          %2287 = vmatpush2.bf16.msra.mxu0 0
          %2288 = vmatprep.subr.bf16.mxu0 0
          %2289 = vmatpush2.bf16.msra.mxu0 0
          %2290 = vmatprep.subr.bf16.mxu0 0
          %2291 = vmatpush2.bf16.msra.mxu0 0
          %2292 = vmatprep.subr.bf16.mxu0 0
          %2293 = vmatpush2.bf16.msra.mxu0 0
          %2294 = vmatprep.subr.bf16.mxu0 0
          %2295 = vmatpush2.bf16.msra.mxu0 0
          %2296 = vmatprep.mubr.bf16.mxu0 0
          %2297 = vmatmul.mubr.bf16.gmra.mxu0 %v1966
          %v2298 = vpop.f32.mrf.mxu0
          %v2299 = vadd.f32 %v2019, %v2298
          %v2300 = vpop.f32.mrf.mxu0
          %v2301 = vpop.f32.mrf.mxu0
          %v2302 = vadd.f32 %v2019, %v2301
          %v2303 = vpop.f32.mrf.mxu0
          %2304 = vmatprep.mubr.bf16.mxu0 0
          %2305 = vmatmul.mubr.bf16.gmra.mxu0 %v1967
          %v2306 = vpop.f32.mrf.mxu0
          %v2307 = vadd.f32 %v2019, %v2306
          %v2308 = vpop.f32.mrf.mxu0
          %v2309 = vpop.f32.mrf.mxu0
          %v2310 = vadd.f32 %v2019, %v2309
          %v2311 = vpop.f32.mrf.mxu0
          %2312 = vmatprep.mubr.bf16.mxu0 0
          %2313 = vmatmul.mubr.bf16.gmra.mxu0 %v1968
          %v2314 = vpop.f32.mrf.mxu0
          %v2315 = vadd.f32 %v2019, %v2314
          %v2316 = vpop.f32.mrf.mxu0
          %v2317 = vpop.f32.mrf.mxu0
          %v2318 = vadd.f32 %v2019, %v2317
          %v2319 = vpop.f32.mrf.mxu0
          %2320 = vmatprep.mubr.bf16.mxu0 0
          %2321 = vmatmul.mubr.bf16.gmra.mxu0 %v1969
          %v2322 = vpop.f32.mrf.mxu0
          %v2323 = vadd.f32 %v2019, %v2322
          %v2324 = vpop.f32.mrf.mxu0
          %v2325 = vpop.f32.mrf.mxu0
          %v2326 = vadd.f32 %v2019, %v2325
          %v2327 = vpop.f32.mrf.mxu0
          %2328 = vmatprep.mubr.bf16.mxu0 0
          %2329 = vmatmul.mubr.bf16.gmra.mxu0 %v1970
          %v2330 = vpop.f32.mrf.mxu0
          %v2331 = vadd.f32 %v2019, %v2330
          %v2332 = vpop.f32.mrf.mxu0
          %v2333 = vpop.f32.mrf.mxu0
          %v2334 = vadd.f32 %v2019, %v2333
          %v2335 = vpop.f32.mrf.mxu0
          %2336 = vmatprep.mubr.bf16.mxu0 0
          %2337 = vmatmul.mubr.bf16.gmra.mxu0 %v1971
          %v2338 = vpop.f32.mrf.mxu0
          %v2339 = vadd.f32 %v2019, %v2338
          %v2340 = vpop.f32.mrf.mxu0
          %v2341 = vpop.f32.mrf.mxu0
          %v2342 = vadd.f32 %v2019, %v2341
          %v2343 = vpop.f32.mrf.mxu0
          %2344 = vmatprep.mubr.bf16.mxu0 0
          %2345 = vmatmul.mubr.bf16.gmra.mxu0 %v1972
          %v2346 = vpop.f32.mrf.mxu0
          %v2347 = vadd.f32 %v2019, %v2346
          %v2348 = vpop.f32.mrf.mxu0
          %v2349 = vpop.f32.mrf.mxu0
          %v2350 = vadd.f32 %v2019, %v2349
          %v2351 = vpop.f32.mrf.mxu0
          %2352 = vmatprep.mubr.bf16.mxu0 0
          %2353 = vmatmul.mubr.bf16.gmra.mxu0 %v1973
          %v2354 = vpop.f32.mrf.mxu0
          %v2355 = vadd.f32 %v2019, %v2354
          %v2356 = vpop.f32.mrf.mxu0
          %v2357 = vpop.f32.mrf.mxu0
          %v2358 = vadd.f32 %v2019, %v2357
          %v2359 = vpop.f32.mrf.mxu0
          %2360 = vdwg.mxu0
          %v2361 = vmax.f32 %v2186, 0.0
          %v2362 = vmax.f32 %v2188, 0.0
          %v2363 = vmax.f32 %v2299, 0.0
          %v2364 = vmax.f32 %v2190, 0.0
          %v2365 = vmax.f32 %v2192, 0.0
          %v2366 = vmax.f32 %v2302, 0.0
          %v2367 = vmax.f32 %v2196, 0.0
          %v2368 = vmax.f32 %v2198, 0.0
          %v2369 = vmax.f32 %v2307, 0.0
          %v2370 = vmax.f32 %v2200, 0.0
          %v2371 = vmax.f32 %v2202, 0.0
          %v2372 = vmax.f32 %v2310, 0.0
          %v2373 = vmax.f32 %v2206, 0.0
          %v2374 = vmax.f32 %v2208, 0.0
          %v2375 = vmax.f32 %v2315, 0.0
          %v2376 = vmax.f32 %v2210, 0.0
          %v2377 = vmax.f32 %v2212, 0.0
          %v2378 = vmax.f32 %v2318, 0.0
          %v2379 = vmax.f32 %v2216, 0.0
          %v2380 = vmax.f32 %v2218, 0.0
          %v2381 = vmax.f32 %v2323, 0.0
          %v2382 = vmax.f32 %v2220, 0.0
          %v2383 = vmax.f32 %v2222, 0.0
          %v2384 = vmax.f32 %v2326, 0.0
          %v2385 = vmax.f32 %v2226, 0.0
          %v2386 = vmax.f32 %v2228, 0.0
          %v2387 = vmax.f32 %v2331, 0.0
          %v2388 = vmax.f32 %v2230, 0.0
          %v2389 = vmax.f32 %v2232, 0.0
          %v2390 = vmax.f32 %v2334, 0.0
          %v2391 = vmax.f32 %v2236, 0.0
          %v2392 = vmax.f32 %v2238, 0.0
          %v2393 = vmax.f32 %v2339, 0.0
          %v2394 = vmax.f32 %v2240, 0.0
          %v2395 = vmax.f32 %v2242, 0.0
          %v2396 = vmax.f32 %v2342, 0.0
          %v2397 = vmax.f32 %v2246, 0.0
          %v2398 = vmax.f32 %v2248, 0.0
          %v2399 = vmax.f32 %v2347, 0.0
          %v2400 = vmax.f32 %v2250, 0.0
          %v2401 = vmax.f32 %v2252, 0.0
          %v2402 = vmax.f32 %v2350, 0.0
          %v2403 = vmax.f32 %v2256, 0.0
          %v2404 = vmax.f32 %v2258, 0.0
          %v2405 = vmax.f32 %v2355, 0.0
          %v2406 = vmax.f32 %v2260, 0.0
          %v2407 = vmax.f32 %v2262, 0.0
          %v2408 = vmax.f32 %v2358, 0.0
          %v2409 = vpack.c.bf16 %v2364, %v2361
          %v2410 = vpack.c.bf16 %v2365, %v2362
          %v2411 = vpack.c.bf16 %v2366, %v2363
          %v2412 = vpack.c.bf16 %v2370, %v2367
          %v2413 = vpack.c.bf16 %v2371, %v2368
          %v2414 = vpack.c.bf16 %v2372, %v2369
          %v2415 = vpack.c.bf16 %v2376, %v2373
          %v2416 = vpack.c.bf16 %v2377, %v2374
          %v2417 = vpack.c.bf16 %v2378, %v2375
          %v2418 = vpack.c.bf16 %v2382, %v2379
          %v2419 = vpack.c.bf16 %v2383, %v2380
          %v2420 = vpack.c.bf16 %v2384, %v2381
          %v2421 = vpack.c.bf16 %v2388, %v2385
          %v2422 = vpack.c.bf16 %v2389, %v2386
          %v2423 = vpack.c.bf16 %v2390, %v2387
          %v2424 = vpack.c.bf16 %v2394, %v2391
          %v2425 = vpack.c.bf16 %v2395, %v2392
          %v2426 = vpack.c.bf16 %v2396, %v2393
          %v2427 = vpack.c.bf16 %v2400, %v2397
          %v2428 = vpack.c.bf16 %v2401, %v2398
          %v2429 = vpack.c.bf16 %v2402, %v2399
          %v2430 = vpack.c.bf16 %v2406, %v2403
          %v2431 = vpack.c.bf16 %v2407, %v2404
          %v2432 = vpack.c.bf16 %v2408, %v2405
          %v2433 = vld [vmem:[%s739] sm:$0xff]
          %v2434 = vld [vmem:[%s739 + $0x8] sm:$0xf]
          %v2435 = vld [vmem:[%s739 + $0xc] sm:$0xff]
          %v2436 = vld [vmem:[%s739 + $0x14] sm:$0xf]
          %v2437 = vld [vmem:[%s739 + $0x18] sm:$0xff]
          %v2438 = vld [vmem:[%s739 + $0x20] sm:$0xf]
          %v2439 = vld [vmem:[%s739 + $0x24] sm:$0xff]
          %v2440 = vld [vmem:[%s739 + $0x2c] sm:$0xf]
          %v2441 = vld [vmem:[%s739 + $0x30] sm:$0xff]
          %v2442 = vld [vmem:[%s739 + $0x38] sm:$0xf]
          %v2443 = vld [vmem:[%s739 + $0x3c] sm:$0xff]
          %v2444 = vld [vmem:[%s739 + $0x44] sm:$0xf]
          %v2445 = vld [vmem:[%s739 + $0x48] sm:$0xff]
          %v2446 = vld [vmem:[%s739 + $0x50] sm:$0xf]
          %v2447 = vld [vmem:[%s739 + $0x54] sm:$0xff]
          %v2448 = vld [vmem:[%s739 + $0x5c] sm:$0xf]
          %v2449 = vld [vmem:[%s739 + $0x60] sm:$0xff]
          %v2450 = vld [vmem:[%s739 + $0x68] sm:$0xf]
          %v2451 = vld [vmem:[%s739 + $0x6c] sm:$0xff]
          %v2452 = vld [vmem:[%s739 + $0x74] sm:$0xf]
          %v2453 = vld [vmem:[%s739 + $0x78] sm:$0xff]
          %v2454 = vld [vmem:[%s739 + $0x80] sm:$0xf]
          %v2455 = vld [vmem:[%s739 + $0x84] sm:$0xff]
          %v2456 = vld [vmem:[%s739 + $0x8c] sm:$0xf]
          %v2457 = vld [vmem:[%s739 + $0x90] sm:$0xff]
          %v2458 = vld [vmem:[%s739 + $0x98] sm:$0xf]
          %v2459 = vld [vmem:[%s739 + $0x9c] sm:$0xff]
          %v2460 = vld [vmem:[%s739 + $0xa4] sm:$0xf]
          %v2461 = vld [vmem:[%s739 + $0xa8] sm:$0xff]
          %v2462 = vld [vmem:[%s739 + $0xb0] sm:$0xf]
          %v2463 = vld [vmem:[%s739 + $0xb4] sm:$0xff]
          %v2464 = vld [vmem:[%s739 + $0xbc] sm:$0xf]
          %v2465 = vld [vmem:[#allocation14] sm:$0xff]
          %v2466 = vld [vmem:[#allocation14 + $0x8] sm:$0xff]
          %v2467 = vld [vmem:[#allocation14 + $0x10] sm:$0xff]
          %v2468 = vld [vmem:[#allocation14 + $0x18] sm:$0xff]
          %v2469 = vld [vmem:[#allocation14 + $0x20] sm:$0xff]
          %v2470 = vld [vmem:[#allocation14 + $0x28] sm:$0xff]
          %v2471 = vld [vmem:[#allocation14 + $0x30] sm:$0xff]
          %v2472 = vld [vmem:[#allocation14 + $0x38] sm:$0xff]
          %v2473 = vld [vmem:[#allocation14 + $0x40] sm:$0xff]
          %v2474 = vld [vmem:[#allocation14 + $0x48] sm:$0xff]
          %v2475 = vld [vmem:[#allocation14 + $0x50] sm:$0xff]
          %v2476 = vld [vmem:[#allocation14 + $0x58] sm:$0xff]
          %v2477 = vld [vmem:[#allocation14 + $0x60] sm:$0xff]
          %v2478 = vld [vmem:[#allocation14 + $0x68] sm:$0xff]
          %v2479 = vld [vmem:[#allocation14 + $0x70] sm:$0xff]
          %v2480 = vld [vmem:[#allocation14 + $0x78] sm:$0xff]
          %v2481 = vld [vmem:[#allocation14 + $0x80] sm:$0xff]
          %v2482 = vld [vmem:[#allocation14 + $0x88] sm:$0xff]
          %v2483 = vld [vmem:[#allocation14 + $0x90] sm:$0xff]
          %v2484 = vld [vmem:[#allocation14 + $0x98] sm:$0xff]
          %v2485 = vld [vmem:[#allocation14 + $0xa0] sm:$0xff]
          %v2486 = vld [vmem:[#allocation14 + $0xa8] sm:$0xff]
          %v2487 = vld [vmem:[#allocation14 + $0xb0] sm:$0xff]
          %v2488 = vld [vmem:[#allocation14 + $0xb8] sm:$0xff]
          %v2489 = vld [vmem:[#allocation14 + $0xc0] sm:$0xff]
          %v2490 = vld [vmem:[#allocation14 + $0xc8] sm:$0xff]
          %v2491 = vld [vmem:[#allocation14 + $0xd0] sm:$0xff]
          %v2492 = vld [vmem:[#allocation14 + $0xd8] sm:$0xff]
          %v2493 = vld [vmem:[#allocation14 + $0xe0] sm:$0xff]
          %v2494 = vld [vmem:[#allocation14 + $0xe8] sm:$0xff]
          %v2495 = vld [vmem:[#allocation14 + $0xf0] sm:$0xff]
          %v2496 = vld [vmem:[#allocation14 + $0xf8] sm:$0xff]
          %v2497 = vld [vmem:[#allocation14 + $0x100] sm:$0xff]
          %v2498 = vld [vmem:[#allocation14 + $0x108] sm:$0xff]
          %v2499 = vld [vmem:[#allocation14 + $0x110] sm:$0xff]
          %v2500 = vld [vmem:[#allocation14 + $0x118] sm:$0xff]
          %v2501 = vld [vmem:[#allocation14 + $0x120] sm:$0xff]
          %v2502 = vld [vmem:[#allocation14 + $0x128] sm:$0xff]
          %v2503 = vld [vmem:[#allocation14 + $0x130] sm:$0xff]
          %v2504 = vld [vmem:[#allocation14 + $0x138] sm:$0xff]
          %v2505 = vld [vmem:[#allocation14 + $0x140] sm:$0xff]
          %v2506 = vld [vmem:[#allocation14 + $0x148] sm:$0xff]
          %v2507 = vld [vmem:[#allocation14 + $0x150] sm:$0xff]
          %v2508 = vld [vmem:[#allocation14 + $0x158] sm:$0xff]
          %v2509 = vld [vmem:[#allocation14 + $0x160] sm:$0xff]
          %v2510 = vld [vmem:[#allocation14 + $0x168] sm:$0xff]
          %v2511 = vld [vmem:[#allocation14 + $0x170] sm:$0xff]
          %v2512 = vld [vmem:[#allocation14 + $0x178] sm:$0xff]
          %v2545 = vunpack.c.l.b16 %v2433
          %v2546 = vunpack.c.h.b16 %v2433
          %v2547 = vunpack.c.l.b16 %v2434
          %v2548 = vunpack.c.l.b16 %v2435
          %v2549 = vunpack.c.h.b16 %v2435
          %v2550 = vunpack.c.l.b16 %v2436
          %v2551 = vunpack.c.l.b16 %v2437
          %v2552 = vunpack.c.h.b16 %v2437
          %v2553 = vunpack.c.l.b16 %v2438
          %v2554 = vunpack.c.l.b16 %v2439
          %v2555 = vunpack.c.h.b16 %v2439
          %v2556 = vunpack.c.l.b16 %v2440
          %v2557 = vunpack.c.l.b16 %v2441
          %v2558 = vunpack.c.h.b16 %v2441
          %v2559 = vunpack.c.l.b16 %v2442
          %v2560 = vunpack.c.l.b16 %v2443
          %v2561 = vunpack.c.h.b16 %v2443
          %v2562 = vunpack.c.l.b16 %v2444
          %v2563 = vunpack.c.l.b16 %v2445
          %v2564 = vunpack.c.h.b16 %v2445
          %v2565 = vunpack.c.l.b16 %v2446
          %v2566 = vunpack.c.l.b16 %v2447
          %v2567 = vunpack.c.h.b16 %v2447
          %v2568 = vunpack.c.l.b16 %v2448
          %v2569 = vunpack.c.l.b16 %v2449
          %v2570 = vunpack.c.h.b16 %v2449
          %v2571 = vunpack.c.l.b16 %v2450
          %v2572 = vunpack.c.l.b16 %v2451
          %v2573 = vunpack.c.h.b16 %v2451
          %v2574 = vunpack.c.l.b16 %v2452
          %v2575 = vunpack.c.l.b16 %v2453
          %v2576 = vunpack.c.h.b16 %v2453
          %v2577 = vunpack.c.l.b16 %v2454
          %v2578 = vunpack.c.l.b16 %v2455
          %v2579 = vunpack.c.h.b16 %v2455
          %v2580 = vunpack.c.l.b16 %v2456
          %v2581 = vunpack.c.l.b16 %v2457
          %v2582 = vunpack.c.h.b16 %v2457
          %v2583 = vunpack.c.l.b16 %v2458
          %v2584 = vunpack.c.l.b16 %v2459
          %v2585 = vunpack.c.h.b16 %v2459
          %v2586 = vunpack.c.l.b16 %v2460
          %v2587 = vunpack.c.l.b16 %v2461
          %v2588 = vunpack.c.h.b16 %v2461
          %v2589 = vunpack.c.l.b16 %v2462
          %v2590 = vunpack.c.l.b16 %v2463
          %v2591 = vunpack.c.h.b16 %v2463
          %v2592 = vunpack.c.l.b16 %v2464
          %v2593 = vpack.c.b16 %v2548, %v2545
          %v2594 = vpack.c.b16 %v2549, %v2546
          %v2595 = vpack.c.b16 %v2550, %v2547
          %v2596 = vpack.c.b16 %v2554, %v2551
          %v2597 = vpack.c.b16 %v2555, %v2552
          %v2598 = vpack.c.b16 %v2556, %v2553
          %v2599 = vpack.c.b16 %v2560, %v2557
          %v2600 = vpack.c.b16 %v2561, %v2558
          %v2601 = vpack.c.b16 %v2562, %v2559
          %v2602 = vpack.c.b16 %v2566, %v2563
          %v2603 = vpack.c.b16 %v2567, %v2564
          %v2604 = vpack.c.b16 %v2568, %v2565
          %v2605 = vpack.c.b16 %v2572, %v2569
          %v2606 = vpack.c.b16 %v2573, %v2570
          %v2607 = vpack.c.b16 %v2574, %v2571
          %v2608 = vpack.c.b16 %v2578, %v2575
          %v2609 = vpack.c.b16 %v2579, %v2576
          %v2610 = vpack.c.b16 %v2580, %v2577
          %v2611 = vpack.c.b16 %v2584, %v2581
          %v2612 = vpack.c.b16 %v2585, %v2582
          %v2613 = vpack.c.b16 %v2586, %v2583
          %v2614 = vpack.c.b16 %v2590, %v2587
          %v2615 = vpack.c.b16 %v2591, %v2588
          %v2616 = vpack.c.b16 %v2592, %v2589
          %v2689 = vunpack.c.l.b16 %v2465
          %v2690 = vunpack.c.h.b16 %v2465
          %v2691 = vunpack.c.l.b16 %v2466
          %v2692 = vunpack.c.h.b16 %v2466
          %v2693 = vunpack.c.l.b16 %v2467
          %v2694 = vunpack.c.h.b16 %v2467
          %v2695 = vunpack.c.l.b16 %v2468
          %v2696 = vunpack.c.h.b16 %v2468
          %v2697 = vunpack.c.l.b16 %v2469
          %v2698 = vunpack.c.h.b16 %v2469
          %v2699 = vunpack.c.l.b16 %v2470
          %v2700 = vunpack.c.h.b16 %v2470
          %v2701 = vunpack.c.l.b16 %v2471
          %v2702 = vunpack.c.h.b16 %v2471
          %v2703 = vunpack.c.l.b16 %v2472
          %v2704 = vunpack.c.h.b16 %v2472
          %v2705 = vunpack.c.l.b16 %v2473
          %v2706 = vunpack.c.h.b16 %v2473
          %v2707 = vunpack.c.l.b16 %v2474
          %v2708 = vunpack.c.h.b16 %v2474
          %v2709 = vunpack.c.l.b16 %v2475
          %v2710 = vunpack.c.h.b16 %v2475
          %v2711 = vunpack.c.l.b16 %v2476
          %v2712 = vunpack.c.h.b16 %v2476
          %v2713 = vunpack.c.l.b16 %v2477
          %v2714 = vunpack.c.h.b16 %v2477
          %v2715 = vunpack.c.l.b16 %v2478
          %v2716 = vunpack.c.h.b16 %v2478
          %v2717 = vunpack.c.l.b16 %v2479
          %v2718 = vunpack.c.h.b16 %v2479
          %v2719 = vunpack.c.l.b16 %v2480
          %v2720 = vunpack.c.h.b16 %v2480
          %v2721 = vunpack.c.l.b16 %v2481
          %v2722 = vunpack.c.h.b16 %v2481
          %v2723 = vunpack.c.l.b16 %v2482
          %v2724 = vunpack.c.h.b16 %v2482
          %v2725 = vunpack.c.l.b16 %v2483
          %v2726 = vunpack.c.h.b16 %v2483
          %v2727 = vunpack.c.l.b16 %v2484
          %v2728 = vunpack.c.h.b16 %v2484
          %v2729 = vunpack.c.l.b16 %v2485
          %v2730 = vunpack.c.h.b16 %v2485
          %v2731 = vunpack.c.l.b16 %v2486
          %v2732 = vunpack.c.h.b16 %v2486
          %v2733 = vunpack.c.l.b16 %v2487
          %v2734 = vunpack.c.h.b16 %v2487
          %v2735 = vunpack.c.l.b16 %v2488
          %v2736 = vunpack.c.h.b16 %v2488
          %v2737 = vunpack.c.l.b16 %v2489
          %v2738 = vunpack.c.h.b16 %v2489
          %v2739 = vunpack.c.l.b16 %v2490
          %v2740 = vunpack.c.h.b16 %v2490
          %v2741 = vunpack.c.l.b16 %v2491
          %v2742 = vunpack.c.h.b16 %v2491
          %v2743 = vunpack.c.l.b16 %v2492
          %v2744 = vunpack.c.h.b16 %v2492
          %v2745 = vunpack.c.l.b16 %v2493
          %v2746 = vunpack.c.h.b16 %v2493
          %v2747 = vunpack.c.l.b16 %v2494
          %v2748 = vunpack.c.h.b16 %v2494
          %v2749 = vunpack.c.l.b16 %v2495
          %v2750 = vunpack.c.h.b16 %v2495
          %v2751 = vunpack.c.l.b16 %v2496
          %v2752 = vunpack.c.h.b16 %v2496
          %v2753 = vunpack.c.l.b16 %v2497
          %v2754 = vunpack.c.h.b16 %v2497
          %v2755 = vunpack.c.l.b16 %v2498
          %v2756 = vunpack.c.h.b16 %v2498
          %v2757 = vunpack.c.l.b16 %v2499
          %v2758 = vunpack.c.h.b16 %v2499
          %v2759 = vunpack.c.l.b16 %v2500
          %v2760 = vunpack.c.h.b16 %v2500
          %v2761 = vunpack.c.l.b16 %v2501
          %v2762 = vunpack.c.h.b16 %v2501
          %v2763 = vunpack.c.l.b16 %v2502
          %v2764 = vunpack.c.h.b16 %v2502
          %v2765 = vunpack.c.l.b16 %v2503
          %v2766 = vunpack.c.h.b16 %v2503
          %v2767 = vunpack.c.l.b16 %v2504
          %v2768 = vunpack.c.h.b16 %v2504
          %v2769 = vunpack.c.l.b16 %v2505
          %v2770 = vunpack.c.h.b16 %v2505
          %v2771 = vunpack.c.l.b16 %v2506
          %v2772 = vunpack.c.h.b16 %v2506
          %v2773 = vunpack.c.l.b16 %v2507
          %v2774 = vunpack.c.h.b16 %v2507
          %v2775 = vunpack.c.l.b16 %v2508
          %v2776 = vunpack.c.h.b16 %v2508
          %v2777 = vunpack.c.l.b16 %v2509
          %v2778 = vunpack.c.h.b16 %v2509
          %v2779 = vunpack.c.l.b16 %v2510
          %v2780 = vunpack.c.h.b16 %v2510
          %v2781 = vunpack.c.l.b16 %v2511
          %v2782 = vunpack.c.h.b16 %v2511
          %v2783 = vunpack.c.l.b16 %v2512
          %v2784 = vunpack.c.h.b16 %v2512
          %v2785 = vpack.c.b16 %v2691, %v2689
          %v2786 = vpack.c.b16 %v2692, %v2690
          %v2787 = vpack.c.b16 %v2695, %v2693
          %v2788 = vpack.c.b16 %v2696, %v2694
          %v2789 = vpack.c.b16 %v2699, %v2697
          %v2790 = vpack.c.b16 %v2700, %v2698
          %v2791 = vpack.c.b16 %v2703, %v2701
          %v2792 = vpack.c.b16 %v2704, %v2702
          %v2793 = vpack.c.b16 %v2707, %v2705
          %v2794 = vpack.c.b16 %v2708, %v2706
          %v2795 = vpack.c.b16 %v2711, %v2709
          %v2796 = vpack.c.b16 %v2712, %v2710
          %v2797 = vpack.c.b16 %v2715, %v2713
          %v2798 = vpack.c.b16 %v2716, %v2714
          %v2799 = vpack.c.b16 %v2719, %v2717
          %v2800 = vpack.c.b16 %v2720, %v2718
          %v2801 = vpack.c.b16 %v2723, %v2721
          %v2802 = vpack.c.b16 %v2724, %v2722
          %v2803 = vpack.c.b16 %v2727, %v2725
          %v2804 = vpack.c.b16 %v2728, %v2726
          %v2805 = vpack.c.b16 %v2731, %v2729
          %v2806 = vpack.c.b16 %v2732, %v2730
          %v2807 = vpack.c.b16 %v2735, %v2733
          %v2808 = vpack.c.b16 %v2736, %v2734
          %v2809 = vpack.c.b16 %v2739, %v2737
          %v2810 = vpack.c.b16 %v2740, %v2738
          %v2811 = vpack.c.b16 %v2743, %v2741
          %v2812 = vpack.c.b16 %v2744, %v2742
          %v2813 = vpack.c.b16 %v2747, %v2745
          %v2814 = vpack.c.b16 %v2748, %v2746
          %v2815 = vpack.c.b16 %v2751, %v2749
          %v2816 = vpack.c.b16 %v2752, %v2750
          %v2817 = vpack.c.b16 %v2755, %v2753
          %v2818 = vpack.c.b16 %v2756, %v2754
          %v2819 = vpack.c.b16 %v2759, %v2757
          %v2820 = vpack.c.b16 %v2760, %v2758
          %v2821 = vpack.c.b16 %v2763, %v2761
          %v2822 = vpack.c.b16 %v2764, %v2762
          %v2823 = vpack.c.b16 %v2767, %v2765
          %v2824 = vpack.c.b16 %v2768, %v2766
          %v2825 = vpack.c.b16 %v2771, %v2769
          %v2826 = vpack.c.b16 %v2772, %v2770
          %v2827 = vpack.c.b16 %v2775, %v2773
          %v2828 = vpack.c.b16 %v2776, %v2774
          %v2829 = vpack.c.b16 %v2779, %v2777
          %v2830 = vpack.c.b16 %v2780, %v2778
          %v2831 = vpack.c.b16 %v2783, %v2781
          %v2832 = vpack.c.b16 %v2784, %v2782
          %2881 = vmatprep.subr.bf16.mxu0 %v2800
          %2882 = vmatpush1.bf16.msra.mxu0 %v2799
          %2883 = vmatprep.subr.bf16.mxu0 %v2798
          %2884 = vmatpush1.bf16.msra.mxu0 %v2797
          %2885 = vmatprep.subr.bf16.mxu0 %v2796
          %2886 = vmatpush1.bf16.msra.mxu0 %v2795
          %2887 = vmatprep.subr.bf16.mxu0 %v2794
          %2888 = vmatpush1.bf16.msra.mxu0 %v2793
          %2889 = vmatprep.subr.bf16.mxu0 %v2792
          %2890 = vmatpush1.bf16.msra.mxu0 %v2791
          %2891 = vmatprep.subr.bf16.mxu0 %v2790
          %2892 = vmatpush1.bf16.msra.mxu0 %v2789
          %2893 = vmatprep.subr.bf16.mxu0 %v2788
          %2894 = vmatpush1.bf16.msra.mxu0 %v2787
          %2895 = vmatprep.subr.bf16.mxu0 %v2786
          %2896 = vmatpush1.bf16.msra.mxu0 %v2785
          %2897 = vmatprep.subr.bf16.mxu0 %v2816
          %2898 = vmatpush2.bf16.msra.mxu0 %v2815
          %2899 = vmatprep.subr.bf16.mxu0 %v2814
          %2900 = vmatpush2.bf16.msra.mxu0 %v2813
          %2901 = vmatprep.subr.bf16.mxu0 %v2812
          %2902 = vmatpush2.bf16.msra.mxu0 %v2811
          %2903 = vmatprep.subr.bf16.mxu0 %v2810
          %2904 = vmatpush2.bf16.msra.mxu0 %v2809
          %2905 = vmatprep.subr.bf16.mxu0 %v2808
          %2906 = vmatpush2.bf16.msra.mxu0 %v2807
          %2907 = vmatprep.subr.bf16.mxu0 %v2806
          %2908 = vmatpush2.bf16.msra.mxu0 %v2805
          %2909 = vmatprep.subr.bf16.mxu0 %v2804
          %2910 = vmatpush2.bf16.msra.mxu0 %v2803
          %2911 = vmatprep.subr.bf16.mxu0 %v2802
          %2912 = vmatpush2.bf16.msra.mxu0 %v2801
          %2913 = vmatprep.mubr.bf16.mxu0 %v2594
          %2914 = vmatmul.mubr.bf16.gmra.mxu0 %v2593
          %v2915 = vpop.f32.mrf.mxu0
          %v2916 = vadd.f32 0.0, %v2915
          %v2917 = vpop.f32.mrf.mxu0
          %v2918 = vadd.f32 0.0, %v2917
          %v2919 = vpop.f32.mrf.mxu0
          %v2920 = vadd.f32 0.0, %v2919
          %v2921 = vpop.f32.mrf.mxu0
          %v2922 = vadd.f32 0.0, %v2921
          %2923 = vmatprep.mubr.bf16.mxu0 %v2597
          %2924 = vmatmul.mubr.bf16.gmra.mxu0 %v2596
          %v2925 = vpop.f32.mrf.mxu0
          %v2926 = vadd.f32 0.0, %v2925
          %v2927 = vpop.f32.mrf.mxu0
          %v2928 = vadd.f32 0.0, %v2927
          %v2929 = vpop.f32.mrf.mxu0
          %v2930 = vadd.f32 0.0, %v2929
          %v2931 = vpop.f32.mrf.mxu0
          %v2932 = vadd.f32 0.0, %v2931
          %2933 = vmatprep.mubr.bf16.mxu0 %v2600
          %2934 = vmatmul.mubr.bf16.gmra.mxu0 %v2599
          %v2935 = vpop.f32.mrf.mxu0
          %v2936 = vadd.f32 0.0, %v2935
          %v2937 = vpop.f32.mrf.mxu0
          %v2938 = vadd.f32 0.0, %v2937
          %v2939 = vpop.f32.mrf.mxu0
          %v2940 = vadd.f32 0.0, %v2939
          %v2941 = vpop.f32.mrf.mxu0
          %v2942 = vadd.f32 0.0, %v2941
          %2943 = vmatprep.mubr.bf16.mxu0 %v2603
          %2944 = vmatmul.mubr.bf16.gmra.mxu0 %v2602
          %v2945 = vpop.f32.mrf.mxu0
          %v2946 = vadd.f32 0.0, %v2945
          %v2947 = vpop.f32.mrf.mxu0
          %v2948 = vadd.f32 0.0, %v2947
          %v2949 = vpop.f32.mrf.mxu0
          %v2950 = vadd.f32 0.0, %v2949
          %v2951 = vpop.f32.mrf.mxu0
          %v2952 = vadd.f32 0.0, %v2951
          %2953 = vmatprep.mubr.bf16.mxu0 %v2606
          %2954 = vmatmul.mubr.bf16.gmra.mxu0 %v2605
          %v2955 = vpop.f32.mrf.mxu0
          %v2956 = vadd.f32 0.0, %v2955
          %v2957 = vpop.f32.mrf.mxu0
          %v2958 = vadd.f32 0.0, %v2957
          %v2959 = vpop.f32.mrf.mxu0
          %v2960 = vadd.f32 0.0, %v2959
          %v2961 = vpop.f32.mrf.mxu0
          %v2962 = vadd.f32 0.0, %v2961
          %2963 = vmatprep.mubr.bf16.mxu0 %v2609
          %2964 = vmatmul.mubr.bf16.gmra.mxu0 %v2608
          %v2965 = vpop.f32.mrf.mxu0
          %v2966 = vadd.f32 0.0, %v2965
          %v2967 = vpop.f32.mrf.mxu0
          %v2968 = vadd.f32 0.0, %v2967
          %v2969 = vpop.f32.mrf.mxu0
          %v2970 = vadd.f32 0.0, %v2969
          %v2971 = vpop.f32.mrf.mxu0
          %v2972 = vadd.f32 0.0, %v2971
          %2973 = vmatprep.mubr.bf16.mxu0 %v2612
          %2974 = vmatmul.mubr.bf16.gmra.mxu0 %v2611
          %v2975 = vpop.f32.mrf.mxu0
          %v2976 = vadd.f32 0.0, %v2975
          %v2977 = vpop.f32.mrf.mxu0
          %v2978 = vadd.f32 0.0, %v2977
          %v2979 = vpop.f32.mrf.mxu0
          %v2980 = vadd.f32 0.0, %v2979
          %v2981 = vpop.f32.mrf.mxu0
          %v2982 = vadd.f32 0.0, %v2981
          %2983 = vmatprep.mubr.bf16.mxu0 %v2615
          %2984 = vmatmul.mubr.bf16.gmra.mxu0 %v2614
          %v2985 = vpop.f32.mrf.mxu0
          %v2986 = vadd.f32 0.0, %v2985
          %v2987 = vpop.f32.mrf.mxu0
          %v2988 = vadd.f32 0.0, %v2987
          %v2989 = vpop.f32.mrf.mxu0
          %v2990 = vadd.f32 0.0, %v2989
          %v2991 = vpop.f32.mrf.mxu0
          %v2992 = vadd.f32 0.0, %v2991
          %2993 = vdwg.mxu0
          %2994 = vmatprep.subr.bf16.mxu0 %v2832
          %2995 = vmatpush1.bf16.msra.mxu0 %v2831
          %2996 = vmatprep.subr.bf16.mxu0 %v2830
          %2997 = vmatpush1.bf16.msra.mxu0 %v2829
          %2998 = vmatprep.subr.bf16.mxu0 %v2828
          %2999 = vmatpush1.bf16.msra.mxu0 %v2827
          %3000 = vmatprep.subr.bf16.mxu0 %v2826
          %3001 = vmatpush1.bf16.msra.mxu0 %v2825
          %3002 = vmatprep.subr.bf16.mxu0 %v2824
          %3003 = vmatpush1.bf16.msra.mxu0 %v2823
          %3004 = vmatprep.subr.bf16.mxu0 %v2822
          %3005 = vmatpush1.bf16.msra.mxu0 %v2821
          %3006 = vmatprep.subr.bf16.mxu0 %v2820
          %3007 = vmatpush1.bf16.msra.mxu0 %v2819
          %3008 = vmatprep.subr.bf16.mxu0 %v2818
          %3009 = vmatpush1.bf16.msra.mxu0 %v2817
          %3010 = vmatprep.subr.bf16.mxu0 0
          %3011 = vmatpush2.bf16.msra.mxu0 0
          %3012 = vmatprep.subr.bf16.mxu0 0
          %3013 = vmatpush2.bf16.msra.mxu0 0
          %3014 = vmatprep.subr.bf16.mxu0 0
          %3015 = vmatpush2.bf16.msra.mxu0 0
          %3016 = vmatprep.subr.bf16.mxu0 0
          %3017 = vmatpush2.bf16.msra.mxu0 0
          %3018 = vmatprep.subr.bf16.mxu0 0
          %3019 = vmatpush2.bf16.msra.mxu0 0
          %3020 = vmatprep.subr.bf16.mxu0 0
          %3021 = vmatpush2.bf16.msra.mxu0 0
          %3022 = vmatprep.subr.bf16.mxu0 0
          %3023 = vmatpush2.bf16.msra.mxu0 0
          %3024 = vmatprep.subr.bf16.mxu0 0
          %3025 = vmatpush2.bf16.msra.mxu0 0
          %3026 = vmatprep.mubr.bf16.mxu0 0
          %3027 = vmatmul.mubr.bf16.gmra.mxu0 %v2595
          %v3028 = vpop.f32.mrf.mxu0
          %v3029 = vadd.f32 %v2916, %v3028
          %v3030 = vpop.f32.mrf.mxu0
          %v3031 = vadd.f32 %v2918, %v3030
          %v3032 = vpop.f32.mrf.mxu0
          %v3033 = vadd.f32 %v2920, %v3032
          %v3034 = vpop.f32.mrf.mxu0
          %v3035 = vadd.f32 %v2922, %v3034
          %3036 = vmatprep.mubr.bf16.mxu0 0
          %3037 = vmatmul.mubr.bf16.gmra.mxu0 %v2598
          %v3038 = vpop.f32.mrf.mxu0
          %v3039 = vadd.f32 %v2926, %v3038
          %v3040 = vpop.f32.mrf.mxu0
          %v3041 = vadd.f32 %v2928, %v3040
          %v3042 = vpop.f32.mrf.mxu0
          %v3043 = vadd.f32 %v2930, %v3042
          %v3044 = vpop.f32.mrf.mxu0
          %v3045 = vadd.f32 %v2932, %v3044
          %3046 = vmatprep.mubr.bf16.mxu0 0
          %3047 = vmatmul.mubr.bf16.gmra.mxu0 %v2601
          %v3048 = vpop.f32.mrf.mxu0
          %v3049 = vadd.f32 %v2936, %v3048
          %v3050 = vpop.f32.mrf.mxu0
          %v3051 = vadd.f32 %v2938, %v3050
          %v3052 = vpop.f32.mrf.mxu0
          %v3053 = vadd.f32 %v2940, %v3052
          %v3054 = vpop.f32.mrf.mxu0
          %v3055 = vadd.f32 %v2942, %v3054
          %3056 = vmatprep.mubr.bf16.mxu0 0
          %3057 = vmatmul.mubr.bf16.gmra.mxu0 %v2604
          %v3058 = vpop.f32.mrf.mxu0
          %v3059 = vadd.f32 %v2946, %v3058
          %v3060 = vpop.f32.mrf.mxu0
          %v3061 = vadd.f32 %v2948, %v3060
          %v3062 = vpop.f32.mrf.mxu0
          %v3063 = vadd.f32 %v2950, %v3062
          %v3064 = vpop.f32.mrf.mxu0
          %v3065 = vadd.f32 %v2952, %v3064
          %3066 = vmatprep.mubr.bf16.mxu0 0
          %3067 = vmatmul.mubr.bf16.gmra.mxu0 %v2607
          %v3068 = vpop.f32.mrf.mxu0
          %v3069 = vadd.f32 %v2956, %v3068
          %v3070 = vpop.f32.mrf.mxu0
          %v3071 = vadd.f32 %v2958, %v3070
          %v3072 = vpop.f32.mrf.mxu0
          %v3073 = vadd.f32 %v2960, %v3072
          %v3074 = vpop.f32.mrf.mxu0
          %v3075 = vadd.f32 %v2962, %v3074
          %3076 = vmatprep.mubr.bf16.mxu0 0
          %3077 = vmatmul.mubr.bf16.gmra.mxu0 %v2610
          %v3078 = vpop.f32.mrf.mxu0
          %v3079 = vadd.f32 %v2966, %v3078
          %v3080 = vpop.f32.mrf.mxu0
          %v3081 = vadd.f32 %v2968, %v3080
          %v3082 = vpop.f32.mrf.mxu0
          %v3083 = vadd.f32 %v2970, %v3082
          %v3084 = vpop.f32.mrf.mxu0
          %v3085 = vadd.f32 %v2972, %v3084
          %3086 = vmatprep.mubr.bf16.mxu0 0
          %3087 = vmatmul.mubr.bf16.gmra.mxu0 %v2613
          %v3088 = vpop.f32.mrf.mxu0
          %v3089 = vadd.f32 %v2976, %v3088
          %v3090 = vpop.f32.mrf.mxu0
          %v3091 = vadd.f32 %v2978, %v3090
          %v3092 = vpop.f32.mrf.mxu0
          %v3093 = vadd.f32 %v2980, %v3092
          %v3094 = vpop.f32.mrf.mxu0
          %v3095 = vadd.f32 %v2982, %v3094
          %3096 = vmatprep.mubr.bf16.mxu0 0
          %3097 = vmatmul.mubr.bf16.gmra.mxu0 %v2616
          %v3098 = vpop.f32.mrf.mxu0
          %v3099 = vadd.f32 %v2986, %v3098
          %v3100 = vpop.f32.mrf.mxu0
          %v3101 = vadd.f32 %v2988, %v3100
          %v3102 = vpop.f32.mrf.mxu0
          %v3103 = vadd.f32 %v2990, %v3102
          %v3104 = vpop.f32.mrf.mxu0
          %v3105 = vadd.f32 %v2992, %v3104
          %3106 = vdwg.mxu0
          %v3107 = vmax.f32 %v3029, 0.0
          %v3108 = vmax.f32 %v3031, 0.0
          %v3109 = vmax.f32 %v3033, 0.0
          %v3110 = vmax.f32 %v3035, 0.0
          %v3111 = vmax.f32 %v3039, 0.0
          %v3112 = vmax.f32 %v3041, 0.0
          %v3113 = vmax.f32 %v3043, 0.0
          %v3114 = vmax.f32 %v3045, 0.0
          %v3115 = vmax.f32 %v3049, 0.0
          %v3116 = vmax.f32 %v3051, 0.0
          %v3117 = vmax.f32 %v3053, 0.0
          %v3118 = vmax.f32 %v3055, 0.0
          %v3119 = vmax.f32 %v3059, 0.0
          %v3120 = vmax.f32 %v3061, 0.0
          %v3121 = vmax.f32 %v3063, 0.0
          %v3122 = vmax.f32 %v3065, 0.0
          %v3123 = vmax.f32 %v3069, 0.0
          %v3124 = vmax.f32 %v3071, 0.0
          %v3125 = vmax.f32 %v3073, 0.0
          %v3126 = vmax.f32 %v3075, 0.0
          %v3127 = vmax.f32 %v3079, 0.0
          %v3128 = vmax.f32 %v3081, 0.0
          %v3129 = vmax.f32 %v3083, 0.0
          %v3130 = vmax.f32 %v3085, 0.0
          %v3131 = vmax.f32 %v3089, 0.0
          %v3132 = vmax.f32 %v3091, 0.0
          %v3133 = vmax.f32 %v3093, 0.0
          %v3134 = vmax.f32 %v3095, 0.0
          %v3135 = vmax.f32 %v3099, 0.0
          %v3136 = vmax.f32 %v3101, 0.0
          %v3137 = vmax.f32 %v3103, 0.0
          %v3138 = vmax.f32 %v3105, 0.0
          %v3139 = vld [vmem:[#allocation15] sm:$0xff]
          %v3140 = vld [vmem:[#allocation15 + $0x8] sm:$0xff]
          %v3141 = vld [vmem:[#allocation15 + $0x10] sm:$0xff]
          %v3142 = vld [vmem:[#allocation15 + $0x18] sm:$0xff]
          %v3143 = vld [vmem:[#allocation15 + $0x20] sm:$0xff]
          %v3144 = vld [vmem:[#allocation15 + $0x28] sm:$0xff]
          %v3145 = vld [vmem:[#allocation15 + $0x30] sm:$0xff]
          %v3146 = vld [vmem:[#allocation15 + $0x38] sm:$0xff]
          %v3147 = vld [vmem:[#allocation15 + $0x40] sm:$0xff]
          %v3148 = vld [vmem:[#allocation15 + $0x48] sm:$0xff]
          %v3149 = vld [vmem:[#allocation15 + $0x50] sm:$0xff]
          %v3150 = vld [vmem:[#allocation15 + $0x58] sm:$0xff]
          %v3151 = vld [vmem:[#allocation15 + $0x60] sm:$0xff]
          %v3152 = vld [vmem:[#allocation15 + $0x68] sm:$0xff]
          %v3153 = vld [vmem:[#allocation15 + $0x70] sm:$0xff]
          %v3154 = vld [vmem:[#allocation15 + $0x78] sm:$0xff]
          %v3155 = vld [vmem:[#allocation15 + $0x80] sm:$0xff]
          %v3156 = vld [vmem:[#allocation15 + $0x88] sm:$0xff]
          %v3157 = vld [vmem:[#allocation15 + $0x90] sm:$0xff]
          %v3158 = vld [vmem:[#allocation15 + $0x98] sm:$0xff]
          %v3159 = vld [vmem:[#allocation15 + $0xa0] sm:$0xff]
          %v3160 = vld [vmem:[#allocation15 + $0xa8] sm:$0xff]
          %v3161 = vld [vmem:[#allocation15 + $0xb0] sm:$0xff]
          %v3162 = vld [vmem:[#allocation15 + $0xb8] sm:$0xff]
          %v3163 = vld [vmem:[#allocation15 + $0xc0] sm:$0xff]
          %v3164 = vld [vmem:[#allocation15 + $0xc8] sm:$0xff]
          %v3165 = vld [vmem:[#allocation15 + $0xd0] sm:$0xff]
          %v3166 = vld [vmem:[#allocation15 + $0xd8] sm:$0xff]
          %v3167 = vld [vmem:[#allocation15 + $0xe0] sm:$0xff]
          %v3168 = vld [vmem:[#allocation15 + $0xe8] sm:$0xff]
          %v3169 = vld [vmem:[#allocation15 + $0xf0] sm:$0xff]
          %v3170 = vld [vmem:[#allocation15 + $0xf8] sm:$0xff]
          %v3171 = vld [vmem:[#allocation15 + $0x100] sm:$0xff]
          %v3172 = vld [vmem:[#allocation15 + $0x108] sm:$0xff]
          %v3173 = vld [vmem:[#allocation15 + $0x110] sm:$0xff]
          %v3174 = vld [vmem:[#allocation15 + $0x118] sm:$0xff]
          %v3175 = vld [vmem:[#allocation15 + $0x120] sm:$0xff]
          %v3176 = vld [vmem:[#allocation15 + $0x128] sm:$0xff]
          %v3177 = vld [vmem:[#allocation15 + $0x130] sm:$0xff]
          %v3178 = vld [vmem:[#allocation15 + $0x138] sm:$0xff]
          %v3179 = vld [vmem:[#allocation15 + $0x140] sm:$0xff]
          %v3180 = vld [vmem:[#allocation15 + $0x148] sm:$0xff]
          %v3181 = vld [vmem:[#allocation15 + $0x150] sm:$0xff]
          %v3182 = vld [vmem:[#allocation15 + $0x158] sm:$0xff]
          %v3183 = vld [vmem:[#allocation15 + $0x160] sm:$0xff]
          %v3184 = vld [vmem:[#allocation15 + $0x168] sm:$0xff]
          %v3185 = vld [vmem:[#allocation15 + $0x170] sm:$0xff]
          %v3186 = vld [vmem:[#allocation15 + $0x178] sm:$0xff]
          %v3235 = vunpack.c.l.b16 %v3139
          %v3236 = vunpack.c.h.b16 %v3139
          %v3237 = vunpack.c.l.b16 %v3140
          %v3238 = vunpack.c.h.b16 %v3140
          %v3239 = vunpack.c.l.b16 %v3141
          %v3240 = vunpack.c.h.b16 %v3141
          %v3241 = vunpack.c.l.b16 %v3142
          %v3242 = vunpack.c.h.b16 %v3142
          %v3243 = vunpack.c.l.b16 %v3143
          %v3244 = vunpack.c.h.b16 %v3143
          %v3245 = vunpack.c.l.b16 %v3144
          %v3246 = vunpack.c.h.b16 %v3144
          %v3247 = vunpack.c.l.b16 %v3145
          %v3248 = vunpack.c.h.b16 %v3145
          %v3249 = vunpack.c.l.b16 %v3146
          %v3250 = vunpack.c.h.b16 %v3146
          %v3251 = vunpack.c.l.b16 %v3147
          %v3252 = vunpack.c.h.b16 %v3147
          %v3253 = vunpack.c.l.b16 %v3148
          %v3254 = vunpack.c.h.b16 %v3148
          %v3255 = vunpack.c.l.b16 %v3149
          %v3256 = vunpack.c.h.b16 %v3149
          %v3257 = vunpack.c.l.b16 %v3150
          %v3258 = vunpack.c.h.b16 %v3150
          %v3259 = vunpack.c.l.b16 %v3151
          %v3260 = vunpack.c.h.b16 %v3151
          %v3261 = vunpack.c.l.b16 %v3152
          %v3262 = vunpack.c.h.b16 %v3152
          %v3263 = vunpack.c.l.b16 %v3153
          %v3264 = vunpack.c.h.b16 %v3153
          %v3265 = vunpack.c.l.b16 %v3154
          %v3266 = vunpack.c.h.b16 %v3154
          %v3267 = vunpack.c.l.b16 %v3155
          %v3268 = vunpack.c.h.b16 %v3155
          %v3269 = vunpack.c.l.b16 %v3156
          %v3270 = vunpack.c.h.b16 %v3156
          %v3271 = vunpack.c.l.b16 %v3157
          %v3272 = vunpack.c.h.b16 %v3157
          %v3273 = vunpack.c.l.b16 %v3158
          %v3274 = vunpack.c.h.b16 %v3158
          %v3275 = vunpack.c.l.b16 %v3159
          %v3276 = vunpack.c.h.b16 %v3159
          %v3277 = vunpack.c.l.b16 %v3160
          %v3278 = vunpack.c.h.b16 %v3160
          %v3279 = vunpack.c.l.b16 %v3161
          %v3280 = vunpack.c.h.b16 %v3161
          %v3281 = vunpack.c.l.b16 %v3162
          %v3282 = vunpack.c.h.b16 %v3162
          %v3283 = vunpack.c.l.b16 %v3163
          %v3284 = vunpack.c.h.b16 %v3163
          %v3285 = vunpack.c.l.b16 %v3164
          %v3286 = vunpack.c.h.b16 %v3164
          %v3287 = vunpack.c.l.b16 %v3165
          %v3288 = vunpack.c.h.b16 %v3165
          %v3289 = vunpack.c.l.b16 %v3166
          %v3290 = vunpack.c.h.b16 %v3166
          %v3291 = vunpack.c.l.b16 %v3167
          %v3292 = vunpack.c.h.b16 %v3167
          %v3293 = vunpack.c.l.b16 %v3168
          %v3294 = vunpack.c.h.b16 %v3168
          %v3295 = vunpack.c.l.b16 %v3169
          %v3296 = vunpack.c.h.b16 %v3169
          %v3297 = vunpack.c.l.b16 %v3170
          %v3298 = vunpack.c.h.b16 %v3170
          %v3299 = vunpack.c.l.b16 %v3171
          %v3300 = vunpack.c.h.b16 %v3171
          %v3301 = vunpack.c.l.b16 %v3172
          %v3302 = vunpack.c.h.b16 %v3172
          %v3303 = vunpack.c.l.b16 %v3173
          %v3304 = vunpack.c.h.b16 %v3173
          %v3305 = vunpack.c.l.b16 %v3174
          %v3306 = vunpack.c.h.b16 %v3174
          %v3307 = vunpack.c.l.b16 %v3175
          %v3308 = vunpack.c.h.b16 %v3175
          %v3309 = vunpack.c.l.b16 %v3176
          %v3310 = vunpack.c.h.b16 %v3176
          %v3311 = vunpack.c.l.b16 %v3177
          %v3312 = vunpack.c.h.b16 %v3177
          %v3313 = vunpack.c.l.b16 %v3178
          %v3314 = vunpack.c.h.b16 %v3178
          %v3315 = vunpack.c.l.b16 %v3179
          %v3316 = vunpack.c.h.b16 %v3179
          %v3317 = vunpack.c.l.b16 %v3180
          %v3318 = vunpack.c.h.b16 %v3180
          %v3319 = vunpack.c.l.b16 %v3181
          %v3320 = vunpack.c.h.b16 %v3181
          %v3321 = vunpack.c.l.b16 %v3182
          %v3322 = vunpack.c.h.b16 %v3182
          %v3323 = vunpack.c.l.b16 %v3183
          %v3324 = vunpack.c.h.b16 %v3183
          %v3325 = vunpack.c.l.b16 %v3184
          %v3326 = vunpack.c.h.b16 %v3184
          %v3327 = vunpack.c.l.b16 %v3185
          %v3328 = vunpack.c.h.b16 %v3185
          %v3329 = vunpack.c.l.b16 %v3186
          %v3330 = vunpack.c.h.b16 %v3186
          %v3331 = vpack.c.b16 %v3237, %v3235
          %v3332 = vpack.c.b16 %v3238, %v3236
          %v3333 = vpack.c.b16 %v3241, %v3239
          %v3334 = vpack.c.b16 %v3242, %v3240
          %v3335 = vpack.c.b16 %v3245, %v3243
          %v3336 = vpack.c.b16 %v3246, %v3244
          %v3337 = vpack.c.b16 %v3249, %v3247
          %v3338 = vpack.c.b16 %v3250, %v3248
          %v3339 = vpack.c.b16 %v3253, %v3251
          %v3340 = vpack.c.b16 %v3254, %v3252
          %v3341 = vpack.c.b16 %v3257, %v3255
          %v3342 = vpack.c.b16 %v3258, %v3256
          %v3343 = vpack.c.b16 %v3261, %v3259
          %v3344 = vpack.c.b16 %v3262, %v3260
          %v3345 = vpack.c.b16 %v3265, %v3263
          %v3346 = vpack.c.b16 %v3266, %v3264
          %v3347 = vpack.c.b16 %v3269, %v3267
          %v3348 = vpack.c.b16 %v3270, %v3268
          %v3349 = vpack.c.b16 %v3273, %v3271
          %v3350 = vpack.c.b16 %v3274, %v3272
          %v3351 = vpack.c.b16 %v3277, %v3275
          %v3352 = vpack.c.b16 %v3278, %v3276
          %v3353 = vpack.c.b16 %v3281, %v3279
          %v3354 = vpack.c.b16 %v3282, %v3280
          %v3355 = vpack.c.b16 %v3285, %v3283
          %v3356 = vpack.c.b16 %v3286, %v3284
          %v3357 = vpack.c.b16 %v3289, %v3287
          %v3358 = vpack.c.b16 %v3290, %v3288
          %v3359 = vpack.c.b16 %v3293, %v3291
          %v3360 = vpack.c.b16 %v3294, %v3292
          %v3361 = vpack.c.b16 %v3297, %v3295
          %v3362 = vpack.c.b16 %v3298, %v3296
          %v3363 = vpack.c.b16 %v3301, %v3299
          %v3364 = vpack.c.b16 %v3302, %v3300
          %v3365 = vpack.c.b16 %v3305, %v3303
          %v3366 = vpack.c.b16 %v3306, %v3304
          %v3367 = vpack.c.b16 %v3309, %v3307
          %v3368 = vpack.c.b16 %v3310, %v3308
          %v3369 = vpack.c.b16 %v3313, %v3311
          %v3370 = vpack.c.b16 %v3314, %v3312
          %v3371 = vpack.c.b16 %v3317, %v3315
          %v3372 = vpack.c.b16 %v3318, %v3316
          %v3373 = vpack.c.b16 %v3321, %v3319
          %v3374 = vpack.c.b16 %v3322, %v3320
          %v3375 = vpack.c.b16 %v3325, %v3323
          %v3376 = vpack.c.b16 %v3326, %v3324
          %v3377 = vpack.c.b16 %v3329, %v3327
          %v3378 = vpack.c.b16 %v3330, %v3328
          %3427 = vmatprep.subr.bf16.mxu0 %v3346
          %3428 = vmatpush1.bf16.msra.mxu0 %v3345
          %3429 = vmatprep.subr.bf16.mxu0 %v3344
          %3430 = vmatpush1.bf16.msra.mxu0 %v3343
          %3431 = vmatprep.subr.bf16.mxu0 %v3342
          %3432 = vmatpush1.bf16.msra.mxu0 %v3341
          %3433 = vmatprep.subr.bf16.mxu0 %v3340
          %3434 = vmatpush1.bf16.msra.mxu0 %v3339
          %3435 = vmatprep.subr.bf16.mxu0 %v3338
          %3436 = vmatpush1.bf16.msra.mxu0 %v3337
          %3437 = vmatprep.subr.bf16.mxu0 %v3336
          %3438 = vmatpush1.bf16.msra.mxu0 %v3335
          %3439 = vmatprep.subr.bf16.mxu0 %v3334
          %3440 = vmatpush1.bf16.msra.mxu0 %v3333
          %3441 = vmatprep.subr.bf16.mxu0 %v3332
          %3442 = vmatpush1.bf16.msra.mxu0 %v3331
          %3443 = vmatprep.subr.bf16.mxu0 %v3362
          %3444 = vmatpush2.bf16.msra.mxu0 %v3361
          %3445 = vmatprep.subr.bf16.mxu0 %v3360
          %3446 = vmatpush2.bf16.msra.mxu0 %v3359
          %3447 = vmatprep.subr.bf16.mxu0 %v3358
          %3448 = vmatpush2.bf16.msra.mxu0 %v3357
          %3449 = vmatprep.subr.bf16.mxu0 %v3356
          %3450 = vmatpush2.bf16.msra.mxu0 %v3355
          %3451 = vmatprep.subr.bf16.mxu0 %v3354
          %3452 = vmatpush2.bf16.msra.mxu0 %v3353
          %3453 = vmatprep.subr.bf16.mxu0 %v3352
          %3454 = vmatpush2.bf16.msra.mxu0 %v3351
          %3455 = vmatprep.subr.bf16.mxu0 %v3350
          %3456 = vmatpush2.bf16.msra.mxu0 %v3349
          %3457 = vmatprep.subr.bf16.mxu0 %v3348
          %3458 = vmatpush2.bf16.msra.mxu0 %v3347
          %3459 = vmatprep.mubr.bf16.mxu0 %v2410
          %3460 = vmatmul.mubr.bf16.gmra.mxu0 %v2409
          %v3461 = vpop.f32.mrf.mxu0
          %v3462 = vadd.f32 0.0, %v3461
          %v3463 = vpop.f32.mrf.mxu0
          %v3464 = vadd.f32 0.0, %v3463
          %v3465 = vpop.f32.mrf.mxu0
          %v3466 = vadd.f32 0.0, %v3465
          %v3467 = vpop.f32.mrf.mxu0
          %v3468 = vadd.f32 0.0, %v3467
          %3469 = vmatprep.mubr.bf16.mxu0 %v2413
          %3470 = vmatmul.mubr.bf16.gmra.mxu0 %v2412
          %v3471 = vpop.f32.mrf.mxu0
          %v3472 = vadd.f32 0.0, %v3471
          %v3473 = vpop.f32.mrf.mxu0
          %v3474 = vadd.f32 0.0, %v3473
          %v3475 = vpop.f32.mrf.mxu0
          %v3476 = vadd.f32 0.0, %v3475
          %v3477 = vpop.f32.mrf.mxu0
          %v3478 = vadd.f32 0.0, %v3477
          %3479 = vmatprep.mubr.bf16.mxu0 %v2416
          %3480 = vmatmul.mubr.bf16.gmra.mxu0 %v2415
          %v3481 = vpop.f32.mrf.mxu0
          %v3482 = vadd.f32 0.0, %v3481
          %v3483 = vpop.f32.mrf.mxu0
          %v3484 = vadd.f32 0.0, %v3483
          %v3485 = vpop.f32.mrf.mxu0
          %v3486 = vadd.f32 0.0, %v3485
          %v3487 = vpop.f32.mrf.mxu0
          %v3488 = vadd.f32 0.0, %v3487
          %3489 = vmatprep.mubr.bf16.mxu0 %v2419
          %3490 = vmatmul.mubr.bf16.gmra.mxu0 %v2418
          %v3491 = vpop.f32.mrf.mxu0
          %v3492 = vadd.f32 0.0, %v3491
          %v3493 = vpop.f32.mrf.mxu0
          %v3494 = vadd.f32 0.0, %v3493
          %v3495 = vpop.f32.mrf.mxu0
          %v3496 = vadd.f32 0.0, %v3495
          %v3497 = vpop.f32.mrf.mxu0
          %v3498 = vadd.f32 0.0, %v3497
          %3499 = vmatprep.mubr.bf16.mxu0 %v2422
          %3500 = vmatmul.mubr.bf16.gmra.mxu0 %v2421
          %v3501 = vpop.f32.mrf.mxu0
          %v3502 = vadd.f32 0.0, %v3501
          %v3503 = vpop.f32.mrf.mxu0
          %v3504 = vadd.f32 0.0, %v3503
          %v3505 = vpop.f32.mrf.mxu0
          %v3506 = vadd.f32 0.0, %v3505
          %v3507 = vpop.f32.mrf.mxu0
          %v3508 = vadd.f32 0.0, %v3507
          %3509 = vmatprep.mubr.bf16.mxu0 %v2425
          %3510 = vmatmul.mubr.bf16.gmra.mxu0 %v2424
          %v3511 = vpop.f32.mrf.mxu0
          %v3512 = vadd.f32 0.0, %v3511
          %v3513 = vpop.f32.mrf.mxu0
          %v3514 = vadd.f32 0.0, %v3513
          %v3515 = vpop.f32.mrf.mxu0
          %v3516 = vadd.f32 0.0, %v3515
          %v3517 = vpop.f32.mrf.mxu0
          %v3518 = vadd.f32 0.0, %v3517
          %3519 = vmatprep.mubr.bf16.mxu0 %v2428
          %3520 = vmatmul.mubr.bf16.gmra.mxu0 %v2427
          %v3521 = vpop.f32.mrf.mxu0
          %v3522 = vadd.f32 0.0, %v3521
          %v3523 = vpop.f32.mrf.mxu0
          %v3524 = vadd.f32 0.0, %v3523
          %v3525 = vpop.f32.mrf.mxu0
          %v3526 = vadd.f32 0.0, %v3525
          %v3527 = vpop.f32.mrf.mxu0
          %v3528 = vadd.f32 0.0, %v3527
          %3529 = vmatprep.mubr.bf16.mxu0 %v2431
          %3530 = vmatmul.mubr.bf16.gmra.mxu0 %v2430
          %v3531 = vpop.f32.mrf.mxu0
          %v3532 = vadd.f32 0.0, %v3531
          %v3533 = vpop.f32.mrf.mxu0
          %v3534 = vadd.f32 0.0, %v3533
          %v3535 = vpop.f32.mrf.mxu0
          %v3536 = vadd.f32 0.0, %v3535
          %v3537 = vpop.f32.mrf.mxu0
          %v3538 = vadd.f32 0.0, %v3537
          %3539 = vdwg.mxu0
          %3540 = vmatprep.subr.bf16.mxu0 %v3378
          %3541 = vmatpush1.bf16.msra.mxu0 %v3377
          %3542 = vmatprep.subr.bf16.mxu0 %v3376
          %3543 = vmatpush1.bf16.msra.mxu0 %v3375
          %3544 = vmatprep.subr.bf16.mxu0 %v3374
          %3545 = vmatpush1.bf16.msra.mxu0 %v3373
          %3546 = vmatprep.subr.bf16.mxu0 %v3372
          %3547 = vmatpush1.bf16.msra.mxu0 %v3371
          %3548 = vmatprep.subr.bf16.mxu0 %v3370
          %3549 = vmatpush1.bf16.msra.mxu0 %v3369
          %3550 = vmatprep.subr.bf16.mxu0 %v3368
          %3551 = vmatpush1.bf16.msra.mxu0 %v3367
          %3552 = vmatprep.subr.bf16.mxu0 %v3366
          %3553 = vmatpush1.bf16.msra.mxu0 %v3365
          %3554 = vmatprep.subr.bf16.mxu0 %v3364
          %3555 = vmatpush1.bf16.msra.mxu0 %v3363
          %3556 = vmatprep.subr.bf16.mxu0 0
          %3557 = vmatpush2.bf16.msra.mxu0 0
          %3558 = vmatprep.subr.bf16.mxu0 0
          %3559 = vmatpush2.bf16.msra.mxu0 0
          %3560 = vmatprep.subr.bf16.mxu0 0
          %3561 = vmatpush2.bf16.msra.mxu0 0
          %3562 = vmatprep.subr.bf16.mxu0 0
          %3563 = vmatpush2.bf16.msra.mxu0 0
          %3564 = vmatprep.subr.bf16.mxu0 0
          %3565 = vmatpush2.bf16.msra.mxu0 0
          %3566 = vmatprep.subr.bf16.mxu0 0
          %3567 = vmatpush2.bf16.msra.mxu0 0
          %3568 = vmatprep.subr.bf16.mxu0 0
          %3569 = vmatpush2.bf16.msra.mxu0 0
          %3570 = vmatprep.subr.bf16.mxu0 0
          %3571 = vmatpush2.bf16.msra.mxu0 0
          %3572 = vmatprep.mubr.bf16.mxu0 0
          %3573 = vmatmul.mubr.bf16.gmra.mxu0 %v2411
          %v3574 = vpop.f32.mrf.mxu0
          %v3575 = vadd.f32 %v3462, %v3574
          %v3576 = vpop.f32.mrf.mxu0
          %v3577 = vadd.f32 %v3464, %v3576
          %v3578 = vpop.f32.mrf.mxu0
          %v3579 = vadd.f32 %v3466, %v3578
          %v3580 = vpop.f32.mrf.mxu0
          %v3581 = vadd.f32 %v3468, %v3580
          %3582 = vmatprep.mubr.bf16.mxu0 0
          %3583 = vmatmul.mubr.bf16.gmra.mxu0 %v2414
          %v3584 = vpop.f32.mrf.mxu0
          %v3585 = vadd.f32 %v3472, %v3584
          %v3586 = vpop.f32.mrf.mxu0
          %v3587 = vadd.f32 %v3474, %v3586
          %v3588 = vpop.f32.mrf.mxu0
          %v3589 = vadd.f32 %v3476, %v3588
          %v3590 = vpop.f32.mrf.mxu0
          %v3591 = vadd.f32 %v3478, %v3590
          %3592 = vmatprep.mubr.bf16.mxu0 0
          %3593 = vmatmul.mubr.bf16.gmra.mxu0 %v2417
          %v3594 = vpop.f32.mrf.mxu0
          %v3595 = vadd.f32 %v3482, %v3594
          %v3596 = vpop.f32.mrf.mxu0
          %v3597 = vadd.f32 %v3484, %v3596
          %v3598 = vpop.f32.mrf.mxu0
          %v3599 = vadd.f32 %v3486, %v3598
          %v3600 = vpop.f32.mrf.mxu0
          %v3601 = vadd.f32 %v3488, %v3600
          %3602 = vmatprep.mubr.bf16.mxu0 0
          %3603 = vmatmul.mubr.bf16.gmra.mxu0 %v2420
          %v3604 = vpop.f32.mrf.mxu0
          %v3605 = vadd.f32 %v3492, %v3604
          %v3606 = vpop.f32.mrf.mxu0
          %v3607 = vadd.f32 %v3494, %v3606
          %v3608 = vpop.f32.mrf.mxu0
          %v3609 = vadd.f32 %v3496, %v3608
          %v3610 = vpop.f32.mrf.mxu0
          %v3611 = vadd.f32 %v3498, %v3610
          %3612 = vmatprep.mubr.bf16.mxu0 0
          %3613 = vmatmul.mubr.bf16.gmra.mxu0 %v2423
          %v3614 = vpop.f32.mrf.mxu0
          %v3615 = vadd.f32 %v3502, %v3614
          %v3616 = vpop.f32.mrf.mxu0
          %v3617 = vadd.f32 %v3504, %v3616
          %v3618 = vpop.f32.mrf.mxu0
          %v3619 = vadd.f32 %v3506, %v3618
          %v3620 = vpop.f32.mrf.mxu0
          %v3621 = vadd.f32 %v3508, %v3620
          %3622 = vmatprep.mubr.bf16.mxu0 0
          %3623 = vmatmul.mubr.bf16.gmra.mxu0 %v2426
          %v3624 = vpop.f32.mrf.mxu0
          %v3625 = vadd.f32 %v3512, %v3624
          %v3626 = vpop.f32.mrf.mxu0
          %v3627 = vadd.f32 %v3514, %v3626
          %v3628 = vpop.f32.mrf.mxu0
          %v3629 = vadd.f32 %v3516, %v3628
          %v3630 = vpop.f32.mrf.mxu0
          %v3631 = vadd.f32 %v3518, %v3630
          %3632 = vmatprep.mubr.bf16.mxu0 0
          %3633 = vmatmul.mubr.bf16.gmra.mxu0 %v2429
          %v3634 = vpop.f32.mrf.mxu0
          %v3635 = vadd.f32 %v3522, %v3634
          %v3636 = vpop.f32.mrf.mxu0
          %v3637 = vadd.f32 %v3524, %v3636
          %v3638 = vpop.f32.mrf.mxu0
          %v3639 = vadd.f32 %v3526, %v3638
          %v3640 = vpop.f32.mrf.mxu0
          %v3641 = vadd.f32 %v3528, %v3640
          %3642 = vmatprep.mubr.bf16.mxu0 0
          %3643 = vmatmul.mubr.bf16.gmra.mxu0 %v2432
          %v3644 = vpop.f32.mrf.mxu0
          %v3645 = vadd.f32 %v3532, %v3644
          %v3646 = vpop.f32.mrf.mxu0
          %v3647 = vadd.f32 %v3534, %v3646
          %v3648 = vpop.f32.mrf.mxu0
          %v3649 = vadd.f32 %v3536, %v3648
          %v3650 = vpop.f32.mrf.mxu0
          %v3651 = vadd.f32 %v3538, %v3650
          %3652 = vdwg.mxu0
          %v3653 = vmax.f32 %v3575, 0.0
          %v3654 = vmax.f32 %v3577, 0.0
          %v3655 = vmax.f32 %v3579, 0.0
          %v3656 = vmax.f32 %v3581, 0.0
          %v3657 = vmax.f32 %v3585, 0.0
          %v3658 = vmax.f32 %v3587, 0.0
          %v3659 = vmax.f32 %v3589, 0.0
          %v3660 = vmax.f32 %v3591, 0.0
          %v3661 = vmax.f32 %v3595, 0.0
          %v3662 = vmax.f32 %v3597, 0.0
          %v3663 = vmax.f32 %v3599, 0.0
          %v3664 = vmax.f32 %v3601, 0.0
          %v3665 = vmax.f32 %v3605, 0.0
          %v3666 = vmax.f32 %v3607, 0.0
          %v3667 = vmax.f32 %v3609, 0.0
          %v3668 = vmax.f32 %v3611, 0.0
          %v3669 = vmax.f32 %v3615, 0.0
          %v3670 = vmax.f32 %v3617, 0.0
          %v3671 = vmax.f32 %v3619, 0.0
          %v3672 = vmax.f32 %v3621, 0.0
          %v3673 = vmax.f32 %v3625, 0.0
          %v3674 = vmax.f32 %v3627, 0.0
          %v3675 = vmax.f32 %v3629, 0.0
          %v3676 = vmax.f32 %v3631, 0.0
          %v3677 = vmax.f32 %v3635, 0.0
          %v3678 = vmax.f32 %v3637, 0.0
          %v3679 = vmax.f32 %v3639, 0.0
          %v3680 = vmax.f32 %v3641, 0.0
          %v3681 = vmax.f32 %v3645, 0.0
          %v3682 = vmax.f32 %v3647, 0.0
          %v3683 = vmax.f32 %v3649, 0.0
          %v3684 = vmax.f32 %v3651, 0.0
          %v3685 = vmul.f32 %v3107, %v3653
          %v3686 = vmul.f32 %v3108, %v3654
          %v3687 = vmul.f32 %v3109, %v3655
          %v3688 = vmul.f32 %v3110, %v3656
          %v3689 = vmul.f32 %v3111, %v3657
          %v3690 = vmul.f32 %v3112, %v3658
          %v3691 = vmul.f32 %v3113, %v3659
          %v3692 = vmul.f32 %v3114, %v3660
          %v3693 = vmul.f32 %v3115, %v3661
          %v3694 = vmul.f32 %v3116, %v3662
          %v3695 = vmul.f32 %v3117, %v3663
          %v3696 = vmul.f32 %v3118, %v3664
          %v3697 = vmul.f32 %v3119, %v3665
          %v3698 = vmul.f32 %v3120, %v3666
          %v3699 = vmul.f32 %v3121, %v3667
          %v3700 = vmul.f32 %v3122, %v3668
          %v3701 = vmul.f32 %v3123, %v3669
          %v3702 = vmul.f32 %v3124, %v3670
          %v3703 = vmul.f32 %v3125, %v3671
          %v3704 = vmul.f32 %v3126, %v3672
          %v3705 = vmul.f32 %v3127, %v3673
          %v3706 = vmul.f32 %v3128, %v3674
          %v3707 = vmul.f32 %v3129, %v3675
          %v3708 = vmul.f32 %v3130, %v3676
          %v3709 = vmul.f32 %v3131, %v3677
          %v3710 = vmul.f32 %v3132, %v3678
          %v3711 = vmul.f32 %v3133, %v3679
          %v3712 = vmul.f32 %v3134, %v3680
          %v3713 = vmul.f32 %v3135, %v3681
          %v3714 = vmul.f32 %v3136, %v3682
          %v3715 = vmul.f32 %v3137, %v3683
          %v3716 = vmul.f32 %v3138, %v3684
          %v3717 = vpack.c.bf16 %v3687, %v3685
          %v3718 = vpack.c.bf16 %v3688, %v3686
          %v3719 = vpack.c.bf16 %v3691, %v3689
          %v3720 = vpack.c.bf16 %v3692, %v3690
          %v3721 = vpack.c.bf16 %v3695, %v3693
          %v3722 = vpack.c.bf16 %v3696, %v3694
          %v3723 = vpack.c.bf16 %v3699, %v3697
          %v3724 = vpack.c.bf16 %v3700, %v3698
          %v3725 = vpack.c.bf16 %v3703, %v3701
          %v3726 = vpack.c.bf16 %v3704, %v3702
          %v3727 = vpack.c.bf16 %v3707, %v3705
          %v3728 = vpack.c.bf16 %v3708, %v3706
          %v3729 = vpack.c.bf16 %v3711, %v3709
          %v3730 = vpack.c.bf16 %v3712, %v3710
          %v3731 = vpack.c.bf16 %v3715, %v3713
          %v3732 = vpack.c.bf16 %v3716, %v3714
          %v3733 = vld [vmem:[#allocation17] sm:$0xff]
          %v3734 = vld [vmem:[#allocation17 + $0x8] sm:$0xff]
          %v3735 = vld [vmem:[#allocation17 + $0x10] sm:$0xff]
          %v3736 = vld [vmem:[#allocation17 + $0x18] sm:$0xff]
          %v3737 = vld [vmem:[#allocation17 + $0x20] sm:$0xff]
          %v3738 = vld [vmem:[#allocation17 + $0x28] sm:$0xff]
          %v3739 = vld [vmem:[#allocation17 + $0x30] sm:$0xff]
          %v3740 = vld [vmem:[#allocation17 + $0x38] sm:$0xff]
          %v3741 = vld [vmem:[#allocation17 + $0x40] sm:$0xff]
          %v3742 = vld [vmem:[#allocation17 + $0x48] sm:$0xff]
          %v3743 = vld [vmem:[#allocation17 + $0x50] sm:$0xff]
          %v3744 = vld [vmem:[#allocation17 + $0x58] sm:$0xff]
          %v3745 = vld [vmem:[#allocation17 + $0x60] sm:$0xff]
          %v3746 = vld [vmem:[#allocation17 + $0x68] sm:$0xff]
          %v3747 = vld [vmem:[#allocation17 + $0x70] sm:$0xff]
          %v3748 = vld [vmem:[#allocation17 + $0x78] sm:$0xff]
          %v3749 = vld [vmem:[#allocation17 + $0x80] sm:$0xff]
          %v3750 = vld [vmem:[#allocation17 + $0x88] sm:$0xff]
          %v3751 = vld [vmem:[#allocation17 + $0x90] sm:$0xff]
          %v3752 = vld [vmem:[#allocation17 + $0x98] sm:$0xff]
          %v3753 = vld [vmem:[#allocation17 + $0xa0] sm:$0xff]
          %v3754 = vld [vmem:[#allocation17 + $0xa8] sm:$0xff]
          %v3755 = vld [vmem:[#allocation17 + $0xb0] sm:$0xff]
          %v3756 = vld [vmem:[#allocation17 + $0xb8] sm:$0xff]
          %v3757 = vld [vmem:[#allocation17 + $0xc0] sm:$0xff]
          %v3758 = vld [vmem:[#allocation17 + $0xc8] sm:$0xff]
          %v3759 = vld [vmem:[#allocation17 + $0xd0] sm:$0xff]
          %v3760 = vld [vmem:[#allocation17 + $0xd8] sm:$0xff]
          %v3761 = vld [vmem:[#allocation17 + $0xe0] sm:$0xff]
          %v3762 = vld [vmem:[#allocation17 + $0xe8] sm:$0xff]
          %v3763 = vld [vmem:[#allocation17 + $0xf0] sm:$0xff]
          %v3764 = vld [vmem:[#allocation17 + $0xf8] sm:$0xff]
          %v3765 = vld [vmem:[#allocation17 + $0x100] sm:$0xff]
          %v3766 = vld [vmem:[#allocation17 + $0x108] sm:$0xff]
          %v3767 = vld [vmem:[#allocation17 + $0x110] sm:$0xff]
          %v3768 = vld [vmem:[#allocation17 + $0x118] sm:$0xff]
          %v3769 = vld [vmem:[#allocation17 + $0x120] sm:$0xff]
          %v3770 = vld [vmem:[#allocation17 + $0x128] sm:$0xff]
          %v3771 = vld [vmem:[#allocation17 + $0x130] sm:$0xff]
          %v3772 = vld [vmem:[#allocation17 + $0x138] sm:$0xff]
          %v3773 = vld [vmem:[#allocation17 + $0x140] sm:$0xff]
          %v3774 = vld [vmem:[#allocation17 + $0x148] sm:$0xff]
          %v3775 = vld [vmem:[#allocation17 + $0x150] sm:$0xff]
          %v3776 = vld [vmem:[#allocation17 + $0x158] sm:$0xff]
          %v3777 = vld [vmem:[#allocation17 + $0x160] sm:$0xff]
          %v3778 = vld [vmem:[#allocation17 + $0x168] sm:$0xff]
          %v3779 = vld [vmem:[#allocation17 + $0x170] sm:$0xff]
          %v3780 = vld [vmem:[#allocation17 + $0x178] sm:$0xff]
          %v3781 = vld [vmem:[#allocation17 + $0x180] sm:$0xff]
          %v3782 = vld [vmem:[#allocation17 + $0x188] sm:$0xff]
          %v3783 = vld [vmem:[#allocation17 + $0x190] sm:$0xff]
          %v3784 = vld [vmem:[#allocation17 + $0x198] sm:$0xff]
          %v3785 = vld [vmem:[#allocation17 + $0x1a0] sm:$0xff]
          %v3786 = vld [vmem:[#allocation17 + $0x1a8] sm:$0xff]
          %v3787 = vld [vmem:[#allocation17 + $0x1b0] sm:$0xff]
          %v3788 = vld [vmem:[#allocation17 + $0x1b8] sm:$0xff]
          %v3789 = vld [vmem:[#allocation17 + $0x1c0] sm:$0xff]
          %v3790 = vld [vmem:[#allocation17 + $0x1c8] sm:$0xff]
          %v3791 = vld [vmem:[#allocation17 + $0x1d0] sm:$0xff]
          %v3792 = vld [vmem:[#allocation17 + $0x1d8] sm:$0xff]
          %v3793 = vld [vmem:[#allocation17 + $0x1e0] sm:$0xff]
          %v3794 = vld [vmem:[#allocation17 + $0x1e8] sm:$0xff]
          %v3795 = vld [vmem:[#allocation17 + $0x1f0] sm:$0xff]
          %v3796 = vld [vmem:[#allocation17 + $0x1f8] sm:$0xff]
          %v3797 = vld [vmem:[%s10] sm:$0xf]
          %v3799 = vlaneseq
          %v3800 = vshrl.u32 %v3799, 7
          %v3801 = vsub.s32 0, %v3800
          %v3802 = vrot.slane %v3797, %v3801
          %v3803 = vlaneseq
          %v3804 = vshrl.u32 %v3803, 7
          %v3805 = vsub.s32 1, %v3804
          %v3806 = vrot.slane %v3797, %v3805
          %v3807 = vlaneseq
          %v3808 = vshrl.u32 %v3807, 7
          %v3809 = vsub.s32 2, %v3808
          %v3810 = vrot.slane %v3797, %v3809
          %v3811 = vlaneseq
          %v3812 = vshrl.u32 %v3811, 7
          %v3813 = vsub.s32 3, %v3812
          %v3814 = vrot.slane %v3797, %v3813
          %v3883 = vunpack.c.l.b16 %v3733
          %v3884 = vunpack.c.h.b16 %v3733
          %v3885 = vunpack.c.l.b16 %v3734
          %v3886 = vunpack.c.h.b16 %v3734
          %v3887 = vunpack.c.l.b16 %v3735
          %v3888 = vunpack.c.h.b16 %v3735
          %v3889 = vunpack.c.l.b16 %v3736
          %v3890 = vunpack.c.h.b16 %v3736
          %v3891 = vunpack.c.l.b16 %v3737
          %v3892 = vunpack.c.h.b16 %v3737
          %v3893 = vunpack.c.l.b16 %v3738
          %v3894 = vunpack.c.h.b16 %v3738
          %v3895 = vunpack.c.l.b16 %v3739
          %v3896 = vunpack.c.h.b16 %v3739
          %v3897 = vunpack.c.l.b16 %v3740
          %v3898 = vunpack.c.h.b16 %v3740
          %v3899 = vunpack.c.l.b16 %v3741
          %v3900 = vunpack.c.h.b16 %v3741
          %v3901 = vunpack.c.l.b16 %v3742
          %v3902 = vunpack.c.h.b16 %v3742
          %v3903 = vunpack.c.l.b16 %v3743
          %v3904 = vunpack.c.h.b16 %v3743
          %v3905 = vunpack.c.l.b16 %v3744
          %v3906 = vunpack.c.h.b16 %v3744
          %v3907 = vunpack.c.l.b16 %v3745
          %v3908 = vunpack.c.h.b16 %v3745
          %v3909 = vunpack.c.l.b16 %v3746
          %v3910 = vunpack.c.h.b16 %v3746
          %v3911 = vunpack.c.l.b16 %v3747
          %v3912 = vunpack.c.h.b16 %v3747
          %v3913 = vunpack.c.l.b16 %v3748
          %v3914 = vunpack.c.h.b16 %v3748
          %v3915 = vunpack.c.l.b16 %v3749
          %v3916 = vunpack.c.h.b16 %v3749
          %v3917 = vunpack.c.l.b16 %v3750
          %v3918 = vunpack.c.h.b16 %v3750
          %v3919 = vunpack.c.l.b16 %v3751
          %v3920 = vunpack.c.h.b16 %v3751
          %v3921 = vunpack.c.l.b16 %v3752
          %v3922 = vunpack.c.h.b16 %v3752
          %v3923 = vunpack.c.l.b16 %v3753
          %v3924 = vunpack.c.h.b16 %v3753
          %v3925 = vunpack.c.l.b16 %v3754
          %v3926 = vunpack.c.h.b16 %v3754
          %v3927 = vunpack.c.l.b16 %v3755
          %v3928 = vunpack.c.h.b16 %v3755
          %v3929 = vunpack.c.l.b16 %v3756
          %v3930 = vunpack.c.h.b16 %v3756
          %v3931 = vunpack.c.l.b16 %v3757
          %v3932 = vunpack.c.h.b16 %v3757
          %v3933 = vunpack.c.l.b16 %v3758
          %v3934 = vunpack.c.h.b16 %v3758
          %v3935 = vunpack.c.l.b16 %v3759
          %v3936 = vunpack.c.h.b16 %v3759
          %v3937 = vunpack.c.l.b16 %v3760
          %v3938 = vunpack.c.h.b16 %v3760
          %v3939 = vunpack.c.l.b16 %v3761
          %v3940 = vunpack.c.h.b16 %v3761
          %v3941 = vunpack.c.l.b16 %v3762
          %v3942 = vunpack.c.h.b16 %v3762
          %v3943 = vunpack.c.l.b16 %v3763
          %v3944 = vunpack.c.h.b16 %v3763
          %v3945 = vunpack.c.l.b16 %v3764
          %v3946 = vunpack.c.h.b16 %v3764
          %v3947 = vunpack.c.l.b16 %v3765
          %v3948 = vunpack.c.h.b16 %v3765
          %v3949 = vunpack.c.l.b16 %v3766
          %v3950 = vunpack.c.h.b16 %v3766
          %v3951 = vunpack.c.l.b16 %v3767
          %v3952 = vunpack.c.h.b16 %v3767
          %v3953 = vunpack.c.l.b16 %v3768
          %v3954 = vunpack.c.h.b16 %v3768
          %v3955 = vunpack.c.l.b16 %v3769
          %v3956 = vunpack.c.h.b16 %v3769
          %v3957 = vunpack.c.l.b16 %v3770
          %v3958 = vunpack.c.h.b16 %v3770
          %v3959 = vunpack.c.l.b16 %v3771
          %v3960 = vunpack.c.h.b16 %v3771
          %v3961 = vunpack.c.l.b16 %v3772
          %v3962 = vunpack.c.h.b16 %v3772
          %v3963 = vunpack.c.l.b16 %v3773
          %v3964 = vunpack.c.h.b16 %v3773
          %v3965 = vunpack.c.l.b16 %v3774
          %v3966 = vunpack.c.h.b16 %v3774
          %v3967 = vunpack.c.l.b16 %v3775
          %v3968 = vunpack.c.h.b16 %v3775
          %v3969 = vunpack.c.l.b16 %v3776
          %v3970 = vunpack.c.h.b16 %v3776
          %v3971 = vunpack.c.l.b16 %v3777
          %v3972 = vunpack.c.h.b16 %v3777
          %v3973 = vunpack.c.l.b16 %v3778
          %v3974 = vunpack.c.h.b16 %v3778
          %v3975 = vunpack.c.l.b16 %v3779
          %v3976 = vunpack.c.h.b16 %v3779
          %v3977 = vunpack.c.l.b16 %v3780
          %v3978 = vunpack.c.h.b16 %v3780
          %v3979 = vunpack.c.l.b16 %v3781
          %v3980 = vunpack.c.h.b16 %v3781
          %v3981 = vunpack.c.l.b16 %v3782
          %v3982 = vunpack.c.h.b16 %v3782
          %v3983 = vunpack.c.l.b16 %v3783
          %v3984 = vunpack.c.h.b16 %v3783
          %v3985 = vunpack.c.l.b16 %v3784
          %v3986 = vunpack.c.h.b16 %v3784
          %v3987 = vunpack.c.l.b16 %v3785
          %v3988 = vunpack.c.h.b16 %v3785
          %v3989 = vunpack.c.l.b16 %v3786
          %v3990 = vunpack.c.h.b16 %v3786
          %v3991 = vunpack.c.l.b16 %v3787
          %v3992 = vunpack.c.h.b16 %v3787
          %v3993 = vunpack.c.l.b16 %v3788
          %v3994 = vunpack.c.h.b16 %v3788
          %v3995 = vunpack.c.l.b16 %v3789
          %v3996 = vunpack.c.h.b16 %v3789
          %v3997 = vunpack.c.l.b16 %v3790
          %v3998 = vunpack.c.h.b16 %v3790
          %v3999 = vunpack.c.l.b16 %v3791
          %v4000 = vunpack.c.h.b16 %v3791
          %v4001 = vunpack.c.l.b16 %v3792
          %v4002 = vunpack.c.h.b16 %v3792
          %v4003 = vunpack.c.l.b16 %v3793
          %v4004 = vunpack.c.h.b16 %v3793
          %v4005 = vunpack.c.l.b16 %v3794
          %v4006 = vunpack.c.h.b16 %v3794
          %v4007 = vunpack.c.l.b16 %v3795
          %v4008 = vunpack.c.h.b16 %v3795
          %v4009 = vunpack.c.l.b16 %v3796
          %v4010 = vunpack.c.h.b16 %v3796
          %v4011 = vpack.c.b16 %v3887, %v3883
          %v4012 = vpack.c.b16 %v3888, %v3884
          %v4013 = vpack.c.b16 %v3889, %v3885
          %v4014 = vpack.c.b16 %v3890, %v3886
          %v4015 = vpack.c.b16 %v3895, %v3891
          %v4016 = vpack.c.b16 %v3896, %v3892
          %v4017 = vpack.c.b16 %v3897, %v3893
          %v4018 = vpack.c.b16 %v3898, %v3894
          %v4019 = vpack.c.b16 %v3903, %v3899
          %v4020 = vpack.c.b16 %v3904, %v3900
          %v4021 = vpack.c.b16 %v3905, %v3901
          %v4022 = vpack.c.b16 %v3906, %v3902
          %v4023 = vpack.c.b16 %v3911, %v3907
          %v4024 = vpack.c.b16 %v3912, %v3908
          %v4025 = vpack.c.b16 %v3913, %v3909
          %v4026 = vpack.c.b16 %v3914, %v3910
          %v4027 = vpack.c.b16 %v3919, %v3915
          %v4028 = vpack.c.b16 %v3920, %v3916
          %v4029 = vpack.c.b16 %v3921, %v3917
          %v4030 = vpack.c.b16 %v3922, %v3918
          %v4031 = vpack.c.b16 %v3927, %v3923
          %v4032 = vpack.c.b16 %v3928, %v3924
          %v4033 = vpack.c.b16 %v3929, %v3925
          %v4034 = vpack.c.b16 %v3930, %v3926
          %v4035 = vpack.c.b16 %v3935, %v3931
          %v4036 = vpack.c.b16 %v3936, %v3932
          %v4037 = vpack.c.b16 %v3937, %v3933
          %v4038 = vpack.c.b16 %v3938, %v3934
          %v4039 = vpack.c.b16 %v3943, %v3939
          %v4040 = vpack.c.b16 %v3944, %v3940
          %v4041 = vpack.c.b16 %v3945, %v3941
          %v4042 = vpack.c.b16 %v3946, %v3942
          %v4043 = vpack.c.b16 %v3951, %v3947
          %v4044 = vpack.c.b16 %v3952, %v3948
          %v4045 = vpack.c.b16 %v3953, %v3949
          %v4046 = vpack.c.b16 %v3954, %v3950
          %v4047 = vpack.c.b16 %v3959, %v3955
          %v4048 = vpack.c.b16 %v3960, %v3956
          %v4049 = vpack.c.b16 %v3961, %v3957
          %v4050 = vpack.c.b16 %v3962, %v3958
          %v4051 = vpack.c.b16 %v3967, %v3963
          %v4052 = vpack.c.b16 %v3968, %v3964
          %v4053 = vpack.c.b16 %v3969, %v3965
          %v4054 = vpack.c.b16 %v3970, %v3966
          %v4055 = vpack.c.b16 %v3975, %v3971
          %v4056 = vpack.c.b16 %v3976, %v3972
          %v4057 = vpack.c.b16 %v3977, %v3973
          %v4058 = vpack.c.b16 %v3978, %v3974
          %v4059 = vpack.c.b16 %v3983, %v3979
          %v4060 = vpack.c.b16 %v3984, %v3980
          %v4061 = vpack.c.b16 %v3985, %v3981
          %v4062 = vpack.c.b16 %v3986, %v3982
          %v4063 = vpack.c.b16 %v3991, %v3987
          %v4064 = vpack.c.b16 %v3992, %v3988
          %v4065 = vpack.c.b16 %v3993, %v3989
          %v4066 = vpack.c.b16 %v3994, %v3990
          %v4067 = vpack.c.b16 %v3999, %v3995
          %v4068 = vpack.c.b16 %v4000, %v3996
          %v4069 = vpack.c.b16 %v4001, %v3997
          %v4070 = vpack.c.b16 %v4002, %v3998
          %v4071 = vpack.c.b16 %v4007, %v4003
          %v4072 = vpack.c.b16 %v4008, %v4004
          %v4073 = vpack.c.b16 %v4009, %v4005
          %v4074 = vpack.c.b16 %v4010, %v4006
          %4139 = vmatprep.subr.bf16.mxu0 %v4040
          %4140 = vmatpush1.bf16.msra.mxu0 %v4039
          %4141 = vmatprep.subr.bf16.mxu0 %v4036
          %4142 = vmatpush1.bf16.msra.mxu0 %v4035
          %4143 = vmatprep.subr.bf16.mxu0 %v4032
          %4144 = vmatpush1.bf16.msra.mxu0 %v4031
          %4145 = vmatprep.subr.bf16.mxu0 %v4028
          %4146 = vmatpush1.bf16.msra.mxu0 %v4027
          %4147 = vmatprep.subr.bf16.mxu0 %v4024
          %4148 = vmatpush1.bf16.msra.mxu0 %v4023
          %4149 = vmatprep.subr.bf16.mxu0 %v4020
          %4150 = vmatpush1.bf16.msra.mxu0 %v4019
          %4151 = vmatprep.subr.bf16.mxu0 %v4016
          %4152 = vmatpush1.bf16.msra.mxu0 %v4015
          %4153 = vmatprep.subr.bf16.mxu0 %v4012
          %4154 = vmatpush1.bf16.msra.mxu0 %v4011
          %4155 = vmatprep.subr.bf16.mxu0 %v4072
          %4156 = vmatpush2.bf16.msra.mxu0 %v4071
          %4157 = vmatprep.subr.bf16.mxu0 %v4068
          %4158 = vmatpush2.bf16.msra.mxu0 %v4067
          %4159 = vmatprep.subr.bf16.mxu0 %v4064
          %4160 = vmatpush2.bf16.msra.mxu0 %v4063
          %4161 = vmatprep.subr.bf16.mxu0 %v4060
          %4162 = vmatpush2.bf16.msra.mxu0 %v4059
          %4163 = vmatprep.subr.bf16.mxu0 %v4056
          %4164 = vmatpush2.bf16.msra.mxu0 %v4055
          %4165 = vmatprep.subr.bf16.mxu0 %v4052
          %4166 = vmatpush2.bf16.msra.mxu0 %v4051
          %4167 = vmatprep.subr.bf16.mxu0 %v4048
          %4168 = vmatpush2.bf16.msra.mxu0 %v4047
          %4169 = vmatprep.subr.bf16.mxu0 %v4044
          %4170 = vmatpush2.bf16.msra.mxu0 %v4043
          %4171 = vmatprep.mubr.bf16.mxu0 %v3718
          %4172 = vmatmul.mubr.bf16.gmra.mxu0 %v3717
          %v4173 = vpop.f32.mrf.mxu0
          %v4174 = vadd.f32 %v3802, %v4173
          %v4175 = vpop.f32.mrf.mxu0
          %v4176 = vadd.f32 %v3806, %v4175
          %v4177 = vpop.f32.mrf.mxu0
          %v4178 = vadd.f32 %v3802, %v4177
          %v4179 = vpop.f32.mrf.mxu0
          %v4180 = vadd.f32 %v3806, %v4179
          %4181 = vmatprep.mubr.bf16.mxu0 %v3720
          %4182 = vmatmul.mubr.bf16.gmra.mxu0 %v3719
          %v4183 = vpop.f32.mrf.mxu0
          %v4184 = vadd.f32 %v3802, %v4183
          %v4185 = vpop.f32.mrf.mxu0
          %v4186 = vadd.f32 %v3806, %v4185
          %v4187 = vpop.f32.mrf.mxu0
          %v4188 = vadd.f32 %v3802, %v4187
          %v4189 = vpop.f32.mrf.mxu0
          %v4190 = vadd.f32 %v3806, %v4189
          %4191 = vmatprep.mubr.bf16.mxu0 %v3722
          %4192 = vmatmul.mubr.bf16.gmra.mxu0 %v3721
          %v4193 = vpop.f32.mrf.mxu0
          %v4194 = vadd.f32 %v3802, %v4193
          %v4195 = vpop.f32.mrf.mxu0
          %v4196 = vadd.f32 %v3806, %v4195
          %v4197 = vpop.f32.mrf.mxu0
          %v4198 = vadd.f32 %v3802, %v4197
          %v4199 = vpop.f32.mrf.mxu0
          %v4200 = vadd.f32 %v3806, %v4199
          %4201 = vmatprep.mubr.bf16.mxu0 %v3724
          %4202 = vmatmul.mubr.bf16.gmra.mxu0 %v3723
          %v4203 = vpop.f32.mrf.mxu0
          %v4204 = vadd.f32 %v3802, %v4203
          %v4205 = vpop.f32.mrf.mxu0
          %v4206 = vadd.f32 %v3806, %v4205
          %v4207 = vpop.f32.mrf.mxu0
          %v4208 = vadd.f32 %v3802, %v4207
          %v4209 = vpop.f32.mrf.mxu0
          %v4210 = vadd.f32 %v3806, %v4209
          %4211 = vmatprep.mubr.bf16.mxu0 %v3726
          %4212 = vmatmul.mubr.bf16.gmra.mxu0 %v3725
          %v4213 = vpop.f32.mrf.mxu0
          %v4214 = vadd.f32 %v3802, %v4213
          %v4215 = vpop.f32.mrf.mxu0
          %v4216 = vadd.f32 %v3806, %v4215
          %v4217 = vpop.f32.mrf.mxu0
          %v4218 = vadd.f32 %v3802, %v4217
          %v4219 = vpop.f32.mrf.mxu0
          %v4220 = vadd.f32 %v3806, %v4219
          %4221 = vmatprep.mubr.bf16.mxu0 %v3728
          %4222 = vmatmul.mubr.bf16.gmra.mxu0 %v3727
          %v4223 = vpop.f32.mrf.mxu0
          %v4224 = vadd.f32 %v3802, %v4223
          %v4225 = vpop.f32.mrf.mxu0
          %v4226 = vadd.f32 %v3806, %v4225
          %v4227 = vpop.f32.mrf.mxu0
          %v4228 = vadd.f32 %v3802, %v4227
          %v4229 = vpop.f32.mrf.mxu0
          %v4230 = vadd.f32 %v3806, %v4229
          %4231 = vmatprep.mubr.bf16.mxu0 %v3730
          %4232 = vmatmul.mubr.bf16.gmra.mxu0 %v3729
          %v4233 = vpop.f32.mrf.mxu0
          %v4234 = vadd.f32 %v3802, %v4233
          %v4235 = vpop.f32.mrf.mxu0
          %v4236 = vadd.f32 %v3806, %v4235
          %v4237 = vpop.f32.mrf.mxu0
          %v4238 = vadd.f32 %v3802, %v4237
          %v4239 = vpop.f32.mrf.mxu0
          %v4240 = vadd.f32 %v3806, %v4239
          %4241 = vmatprep.mubr.bf16.mxu0 %v3732
          %4242 = vmatmul.mubr.bf16.gmra.mxu0 %v3731
          %v4243 = vpop.f32.mrf.mxu0
          %v4244 = vadd.f32 %v3802, %v4243
          %v4245 = vpop.f32.mrf.mxu0
          %v4246 = vadd.f32 %v3806, %v4245
          %v4247 = vpop.f32.mrf.mxu0
          %v4248 = vadd.f32 %v3802, %v4247
          %v4249 = vpop.f32.mrf.mxu0
          %v4250 = vadd.f32 %v3806, %v4249
          %4251 = vdwg.mxu0
          %4252 = vmatprep.subr.bf16.mxu0 %v4042
          %4253 = vmatpush1.bf16.msra.mxu0 %v4041
          %4254 = vmatprep.subr.bf16.mxu0 %v4038
          %4255 = vmatpush1.bf16.msra.mxu0 %v4037
          %4256 = vmatprep.subr.bf16.mxu0 %v4034
          %4257 = vmatpush1.bf16.msra.mxu0 %v4033
          %4258 = vmatprep.subr.bf16.mxu0 %v4030
          %4259 = vmatpush1.bf16.msra.mxu0 %v4029
          %4260 = vmatprep.subr.bf16.mxu0 %v4026
          %4261 = vmatpush1.bf16.msra.mxu0 %v4025
          %4262 = vmatprep.subr.bf16.mxu0 %v4022
          %4263 = vmatpush1.bf16.msra.mxu0 %v4021
          %4264 = vmatprep.subr.bf16.mxu0 %v4018
          %4265 = vmatpush1.bf16.msra.mxu0 %v4017
          %4266 = vmatprep.subr.bf16.mxu0 %v4014
          %4267 = vmatpush1.bf16.msra.mxu0 %v4013
          %4268 = vmatprep.subr.bf16.mxu0 %v4074
          %4269 = vmatpush2.bf16.msra.mxu0 %v4073
          %4270 = vmatprep.subr.bf16.mxu0 %v4070
          %4271 = vmatpush2.bf16.msra.mxu0 %v4069
          %4272 = vmatprep.subr.bf16.mxu0 %v4066
          %4273 = vmatpush2.bf16.msra.mxu0 %v4065
          %4274 = vmatprep.subr.bf16.mxu0 %v4062
          %4275 = vmatpush2.bf16.msra.mxu0 %v4061
          %4276 = vmatprep.subr.bf16.mxu0 %v4058
          %4277 = vmatpush2.bf16.msra.mxu0 %v4057
          %4278 = vmatprep.subr.bf16.mxu0 %v4054
          %4279 = vmatpush2.bf16.msra.mxu0 %v4053
          %4280 = vmatprep.subr.bf16.mxu0 %v4050
          %4281 = vmatpush2.bf16.msra.mxu0 %v4049
          %4282 = vmatprep.subr.bf16.mxu0 %v4046
          %4283 = vmatpush2.bf16.msra.mxu0 %v4045
          %4284 = vmatprep.mubr.bf16.mxu0 %v3718
          %4285 = vmatmul.mubr.bf16.gmra.mxu0 %v3717
          %v4286 = vpop.f32.mrf.mxu0
          %v4287 = vadd.f32 %v3810, %v4286
          %v4288 = vpop.f32.mrf.mxu0
          %v4289 = vadd.f32 %v3814, %v4288
          %v4290 = vpop.f32.mrf.mxu0
          %v4291 = vadd.f32 %v3810, %v4290
          %v4292 = vpop.f32.mrf.mxu0
          %v4293 = vadd.f32 %v3814, %v4292
          %4294 = vmatprep.mubr.bf16.mxu0 %v3720
          %4295 = vmatmul.mubr.bf16.gmra.mxu0 %v3719
          %v4296 = vpop.f32.mrf.mxu0
          %v4297 = vadd.f32 %v3810, %v4296
          %v4298 = vpop.f32.mrf.mxu0
          %v4299 = vadd.f32 %v3814, %v4298
          %v4300 = vpop.f32.mrf.mxu0
          %v4301 = vadd.f32 %v3810, %v4300
          %v4302 = vpop.f32.mrf.mxu0
          %v4303 = vadd.f32 %v3814, %v4302
          %4304 = vmatprep.mubr.bf16.mxu0 %v3722
          %4305 = vmatmul.mubr.bf16.gmra.mxu0 %v3721
          %v4306 = vpop.f32.mrf.mxu0
          %v4307 = vadd.f32 %v3810, %v4306
          %v4308 = vpop.f32.mrf.mxu0
          %v4309 = vadd.f32 %v3814, %v4308
          %v4310 = vpop.f32.mrf.mxu0
          %v4311 = vadd.f32 %v3810, %v4310
          %v4312 = vpop.f32.mrf.mxu0
          %v4313 = vadd.f32 %v3814, %v4312
          %4314 = vmatprep.mubr.bf16.mxu0 %v3724
          %4315 = vmatmul.mubr.bf16.gmra.mxu0 %v3723
          %v4316 = vpop.f32.mrf.mxu0
          %v4317 = vadd.f32 %v3810, %v4316
          %v4318 = vpop.f32.mrf.mxu0
          %v4319 = vadd.f32 %v3814, %v4318
          %v4320 = vpop.f32.mrf.mxu0
          %v4321 = vadd.f32 %v3810, %v4320
          %v4322 = vpop.f32.mrf.mxu0
          %v4323 = vadd.f32 %v3814, %v4322
          %4324 = vmatprep.mubr.bf16.mxu0 %v3726
          %4325 = vmatmul.mubr.bf16.gmra.mxu0 %v3725
          %v4326 = vpop.f32.mrf.mxu0
          %v4327 = vadd.f32 %v3810, %v4326
          %v4328 = vpop.f32.mrf.mxu0
          %v4329 = vadd.f32 %v3814, %v4328
          %v4330 = vpop.f32.mrf.mxu0
          %v4331 = vadd.f32 %v3810, %v4330
          %v4332 = vpop.f32.mrf.mxu0
          %v4333 = vadd.f32 %v3814, %v4332
          %4334 = vmatprep.mubr.bf16.mxu0 %v3728
          %4335 = vmatmul.mubr.bf16.gmra.mxu0 %v3727
          %v4336 = vpop.f32.mrf.mxu0
          %v4337 = vadd.f32 %v3810, %v4336
          %v4338 = vpop.f32.mrf.mxu0
          %v4339 = vadd.f32 %v3814, %v4338
          %v4340 = vpop.f32.mrf.mxu0
          %v4341 = vadd.f32 %v3810, %v4340
          %v4342 = vpop.f32.mrf.mxu0
          %v4343 = vadd.f32 %v3814, %v4342
          %4344 = vmatprep.mubr.bf16.mxu0 %v3730
          %4345 = vmatmul.mubr.bf16.gmra.mxu0 %v3729
          %v4346 = vpop.f32.mrf.mxu0
          %v4347 = vadd.f32 %v3810, %v4346
          %v4348 = vpop.f32.mrf.mxu0
          %v4349 = vadd.f32 %v3814, %v4348
          %v4350 = vpop.f32.mrf.mxu0
          %v4351 = vadd.f32 %v3810, %v4350
          %v4352 = vpop.f32.mrf.mxu0
          %v4353 = vadd.f32 %v3814, %v4352
          %4354 = vmatprep.mubr.bf16.mxu0 %v3732
          %4355 = vmatmul.mubr.bf16.gmra.mxu0 %v3731
          %v4356 = vpop.f32.mrf.mxu0
          %v4357 = vadd.f32 %v3810, %v4356
          %v4358 = vpop.f32.mrf.mxu0
          %v4359 = vadd.f32 %v3814, %v4358
          %v4360 = vpop.f32.mrf.mxu0
          %v4361 = vadd.f32 %v3810, %v4360
          %v4362 = vpop.f32.mrf.mxu0
          %v4363 = vadd.f32 %v3814, %v4362
          %4364 = vdwg.mxu0
          %v4365 = vmax.f32 %v4174, 0.0
          %v4366 = vmax.f32 %v4176, 0.0
          %v4367 = vmax.f32 %v4287, 0.0
          %v4368 = vmax.f32 %v4289, 0.0
          %v4369 = vmax.f32 %v4178, 0.0
          %v4370 = vmax.f32 %v4180, 0.0
          %v4371 = vmax.f32 %v4291, 0.0
          %v4372 = vmax.f32 %v4293, 0.0
          %v4373 = vmax.f32 %v4184, 0.0
          %v4374 = vmax.f32 %v4186, 0.0
          %v4375 = vmax.f32 %v4297, 0.0
          %v4376 = vmax.f32 %v4299, 0.0
          %v4377 = vmax.f32 %v4188, 0.0
          %v4378 = vmax.f32 %v4190, 0.0
          %v4379 = vmax.f32 %v4301, 0.0
          %v4380 = vmax.f32 %v4303, 0.0
          %v4381 = vmax.f32 %v4194, 0.0
          %v4382 = vmax.f32 %v4196, 0.0
          %v4383 = vmax.f32 %v4307, 0.0
          %v4384 = vmax.f32 %v4309, 0.0
          %v4385 = vmax.f32 %v4198, 0.0
          %v4386 = vmax.f32 %v4200, 0.0
          %v4387 = vmax.f32 %v4311, 0.0
          %v4388 = vmax.f32 %v4313, 0.0
          %v4389 = vmax.f32 %v4204, 0.0
          %v4390 = vmax.f32 %v4206, 0.0
          %v4391 = vmax.f32 %v4317, 0.0
          %v4392 = vmax.f32 %v4319, 0.0
          %v4393 = vmax.f32 %v4208, 0.0
          %v4394 = vmax.f32 %v4210, 0.0
          %v4395 = vmax.f32 %v4321, 0.0
          %v4396 = vmax.f32 %v4323, 0.0
          %v4397 = vmax.f32 %v4214, 0.0
          %v4398 = vmax.f32 %v4216, 0.0
          %v4399 = vmax.f32 %v4327, 0.0
          %v4400 = vmax.f32 %v4329, 0.0
          %v4401 = vmax.f32 %v4218, 0.0
          %v4402 = vmax.f32 %v4220, 0.0
          %v4403 = vmax.f32 %v4331, 0.0
          %v4404 = vmax.f32 %v4333, 0.0
          %v4405 = vmax.f32 %v4224, 0.0
          %v4406 = vmax.f32 %v4226, 0.0
          %v4407 = vmax.f32 %v4337, 0.0
          %v4408 = vmax.f32 %v4339, 0.0
          %v4409 = vmax.f32 %v4228, 0.0
          %v4410 = vmax.f32 %v4230, 0.0
          %v4411 = vmax.f32 %v4341, 0.0
          %v4412 = vmax.f32 %v4343, 0.0
          %v4413 = vmax.f32 %v4234, 0.0
          %v4414 = vmax.f32 %v4236, 0.0
          %v4415 = vmax.f32 %v4347, 0.0
          %v4416 = vmax.f32 %v4349, 0.0
          %v4417 = vmax.f32 %v4238, 0.0
          %v4418 = vmax.f32 %v4240, 0.0
          %v4419 = vmax.f32 %v4351, 0.0
          %v4420 = vmax.f32 %v4353, 0.0
          %v4421 = vmax.f32 %v4244, 0.0
          %v4422 = vmax.f32 %v4246, 0.0
          %v4423 = vmax.f32 %v4357, 0.0
          %v4424 = vmax.f32 %v4359, 0.0
          %v4425 = vmax.f32 %v4248, 0.0
          %v4426 = vmax.f32 %v4250, 0.0
          %v4427 = vmax.f32 %v4361, 0.0
          %v4428 = vmax.f32 %v4363, 0.0
          %v4429 = vpack.c.bf16 %v4369, %v4365
          %v4430 = vpack.c.bf16 %v4370, %v4366
          %v4431 = vpack.c.bf16 %v4371, %v4367
          %v4432 = vpack.c.bf16 %v4372, %v4368
          %v4433 = vpack.c.bf16 %v4377, %v4373
          %v4434 = vpack.c.bf16 %v4378, %v4374
          %v4435 = vpack.c.bf16 %v4379, %v4375
          %v4436 = vpack.c.bf16 %v4380, %v4376
          %v4437 = vpack.c.bf16 %v4385, %v4381
          %v4438 = vpack.c.bf16 %v4386, %v4382
          %v4439 = vpack.c.bf16 %v4387, %v4383
          %v4440 = vpack.c.bf16 %v4388, %v4384
          %v4441 = vpack.c.bf16 %v4393, %v4389
          %v4442 = vpack.c.bf16 %v4394, %v4390
          %v4443 = vpack.c.bf16 %v4395, %v4391
          %v4444 = vpack.c.bf16 %v4396, %v4392
          %v4445 = vpack.c.bf16 %v4401, %v4397
          %v4446 = vpack.c.bf16 %v4402, %v4398
          %v4447 = vpack.c.bf16 %v4403, %v4399
          %v4448 = vpack.c.bf16 %v4404, %v4400
          %v4449 = vpack.c.bf16 %v4409, %v4405
          %v4450 = vpack.c.bf16 %v4410, %v4406
          %v4451 = vpack.c.bf16 %v4411, %v4407
          %v4452 = vpack.c.bf16 %v4412, %v4408
          %v4453 = vpack.c.bf16 %v4417, %v4413
          %v4454 = vpack.c.bf16 %v4418, %v4414
          %v4455 = vpack.c.bf16 %v4419, %v4415
          %v4456 = vpack.c.bf16 %v4420, %v4416
          %v4457 = vpack.c.bf16 %v4425, %v4421
          %v4458 = vpack.c.bf16 %v4426, %v4422
          %v4459 = vpack.c.bf16 %v4427, %v4423
          %v4460 = vpack.c.bf16 %v4428, %v4424
          %v4461 = vld [vmem:[#allocation18] sm:$0xff]
          %v4462 = vld [vmem:[#allocation18 + $0x8] sm:$0xff]
          %v4463 = vld [vmem:[#allocation18 + $0x10] sm:$0xff]
          %v4464 = vld [vmem:[#allocation18 + $0x18] sm:$0xff]
          %v4465 = vld [vmem:[#allocation18 + $0x20] sm:$0xff]
          %v4466 = vld [vmem:[#allocation18 + $0x28] sm:$0xff]
          %v4467 = vld [vmem:[#allocation18 + $0x30] sm:$0xff]
          %v4468 = vld [vmem:[#allocation18 + $0x38] sm:$0xff]
          %v4469 = vld [vmem:[#allocation18 + $0x40] sm:$0xff]
          %v4470 = vld [vmem:[#allocation18 + $0x48] sm:$0xff]
          %v4471 = vld [vmem:[#allocation18 + $0x50] sm:$0xff]
          %v4472 = vld [vmem:[#allocation18 + $0x58] sm:$0xff]
          %v4473 = vld [vmem:[#allocation18 + $0x60] sm:$0xff]
          %v4474 = vld [vmem:[#allocation18 + $0x68] sm:$0xff]
          %v4475 = vld [vmem:[#allocation18 + $0x70] sm:$0xff]
          %v4476 = vld [vmem:[#allocation18 + $0x78] sm:$0xff]
          %v4477 = vld [vmem:[#allocation18 + $0x80] sm:$0xff]
          %v4478 = vld [vmem:[#allocation18 + $0x88] sm:$0xff]
          %v4479 = vld [vmem:[#allocation18 + $0x90] sm:$0xff]
          %v4480 = vld [vmem:[#allocation18 + $0x98] sm:$0xff]
          %v4481 = vld [vmem:[#allocation18 + $0xa0] sm:$0xff]
          %v4482 = vld [vmem:[#allocation18 + $0xa8] sm:$0xff]
          %v4483 = vld [vmem:[#allocation18 + $0xb0] sm:$0xff]
          %v4484 = vld [vmem:[#allocation18 + $0xb8] sm:$0xff]
          %v4485 = vld [vmem:[#allocation18 + $0xc0] sm:$0xff]
          %v4486 = vld [vmem:[#allocation18 + $0xc8] sm:$0xff]
          %v4487 = vld [vmem:[#allocation18 + $0xd0] sm:$0xff]
          %v4488 = vld [vmem:[#allocation18 + $0xd8] sm:$0xff]
          %v4489 = vld [vmem:[#allocation18 + $0xe0] sm:$0xff]
          %v4490 = vld [vmem:[#allocation18 + $0xe8] sm:$0xff]
          %v4491 = vld [vmem:[#allocation18 + $0xf0] sm:$0xff]
          %v4492 = vld [vmem:[#allocation18 + $0xf8] sm:$0xff]
          %v4493 = vld [vmem:[#allocation18 + $0x100] sm:$0xff]
          %v4494 = vld [vmem:[#allocation18 + $0x108] sm:$0xff]
          %v4495 = vld [vmem:[#allocation18 + $0x110] sm:$0xff]
          %v4496 = vld [vmem:[#allocation18 + $0x118] sm:$0xff]
          %v4497 = vld [vmem:[#allocation18 + $0x120] sm:$0xff]
          %v4498 = vld [vmem:[#allocation18 + $0x128] sm:$0xff]
          %v4499 = vld [vmem:[#allocation18 + $0x130] sm:$0xff]
          %v4500 = vld [vmem:[#allocation18 + $0x138] sm:$0xff]
          %v4501 = vld [vmem:[#allocation18 + $0x140] sm:$0xff]
          %v4502 = vld [vmem:[#allocation18 + $0x148] sm:$0xff]
          %v4503 = vld [vmem:[#allocation18 + $0x150] sm:$0xff]
          %v4504 = vld [vmem:[#allocation18 + $0x158] sm:$0xff]
          %v4505 = vld [vmem:[#allocation18 + $0x160] sm:$0xff]
          %v4506 = vld [vmem:[#allocation18 + $0x168] sm:$0xff]
          %v4507 = vld [vmem:[#allocation18 + $0x170] sm:$0xff]
          %v4508 = vld [vmem:[#allocation18 + $0x178] sm:$0xff]
          %v4509 = vld [vmem:[#allocation18 + $0x180] sm:$0xff]
          %v4510 = vld [vmem:[#allocation18 + $0x188] sm:$0xff]
          %v4511 = vld [vmem:[#allocation18 + $0x190] sm:$0xff]
          %v4512 = vld [vmem:[#allocation18 + $0x198] sm:$0xff]
          %v4513 = vld [vmem:[#allocation18 + $0x1a0] sm:$0xff]
          %v4514 = vld [vmem:[#allocation18 + $0x1a8] sm:$0xff]
          %v4515 = vld [vmem:[#allocation18 + $0x1b0] sm:$0xff]
          %v4516 = vld [vmem:[#allocation18 + $0x1b8] sm:$0xff]
          %v4517 = vld [vmem:[#allocation18 + $0x1c0] sm:$0xff]
          %v4518 = vld [vmem:[#allocation18 + $0x1c8] sm:$0xff]
          %v4519 = vld [vmem:[#allocation18 + $0x1d0] sm:$0xff]
          %v4520 = vld [vmem:[#allocation18 + $0x1d8] sm:$0xff]
          %v4521 = vld [vmem:[#allocation18 + $0x1e0] sm:$0xff]
          %v4522 = vld [vmem:[#allocation18 + $0x1e8] sm:$0xff]
          %v4523 = vld [vmem:[#allocation18 + $0x1f0] sm:$0xff]
          %v4524 = vld [vmem:[#allocation18 + $0x1f8] sm:$0xff]
          %v4525 = vld [vmem:[%s12] sm:$0x3]
          %v4527 = vlaneseq
          %v4528 = vshrl.u32 %v4527, 7
          %v4529 = vsub.s32 0, %v4528
          %v4530 = vrot.slane %v4525, %v4529
          %v4531 = vlaneseq
          %v4532 = vshrl.u32 %v4531, 7
          %v4533 = vsub.s32 1, %v4532
          %v4534 = vrot.slane %v4525, %v4533
          %v4601 = vunpack.c.l.b16 %v4461
          %v4602 = vunpack.c.h.b16 %v4461
          %v4603 = vunpack.c.l.b16 %v4462
          %v4604 = vunpack.c.h.b16 %v4462
          %v4605 = vunpack.c.l.b16 %v4463
          %v4606 = vunpack.c.h.b16 %v4463
          %v4607 = vunpack.c.l.b16 %v4464
          %v4608 = vunpack.c.h.b16 %v4464
          %v4609 = vunpack.c.l.b16 %v4465
          %v4610 = vunpack.c.h.b16 %v4465
          %v4611 = vunpack.c.l.b16 %v4466
          %v4612 = vunpack.c.h.b16 %v4466
          %v4613 = vunpack.c.l.b16 %v4467
          %v4614 = vunpack.c.h.b16 %v4467
          %v4615 = vunpack.c.l.b16 %v4468
          %v4616 = vunpack.c.h.b16 %v4468
          %v4617 = vunpack.c.l.b16 %v4469
          %v4618 = vunpack.c.h.b16 %v4469
          %v4619 = vunpack.c.l.b16 %v4470
          %v4620 = vunpack.c.h.b16 %v4470
          %v4621 = vunpack.c.l.b16 %v4471
          %v4622 = vunpack.c.h.b16 %v4471
          %v4623 = vunpack.c.l.b16 %v4472
          %v4624 = vunpack.c.h.b16 %v4472
          %v4625 = vunpack.c.l.b16 %v4473
          %v4626 = vunpack.c.h.b16 %v4473
          %v4627 = vunpack.c.l.b16 %v4474
          %v4628 = vunpack.c.h.b16 %v4474
          %v4629 = vunpack.c.l.b16 %v4475
          %v4630 = vunpack.c.h.b16 %v4475
          %v4631 = vunpack.c.l.b16 %v4476
          %v4632 = vunpack.c.h.b16 %v4476
          %v4633 = vunpack.c.l.b16 %v4477
          %v4634 = vunpack.c.h.b16 %v4477
          %v4635 = vunpack.c.l.b16 %v4478
          %v4636 = vunpack.c.h.b16 %v4478
          %v4637 = vunpack.c.l.b16 %v4479
          %v4638 = vunpack.c.h.b16 %v4479
          %v4639 = vunpack.c.l.b16 %v4480
          %v4640 = vunpack.c.h.b16 %v4480
          %v4641 = vunpack.c.l.b16 %v4481
          %v4642 = vunpack.c.h.b16 %v4481
          %v4643 = vunpack.c.l.b16 %v4482
          %v4644 = vunpack.c.h.b16 %v4482
          %v4645 = vunpack.c.l.b16 %v4483
          %v4646 = vunpack.c.h.b16 %v4483
          %v4647 = vunpack.c.l.b16 %v4484
          %v4648 = vunpack.c.h.b16 %v4484
          %v4649 = vunpack.c.l.b16 %v4485
          %v4650 = vunpack.c.h.b16 %v4485
          %v4651 = vunpack.c.l.b16 %v4486
          %v4652 = vunpack.c.h.b16 %v4486
          %v4653 = vunpack.c.l.b16 %v4487
          %v4654 = vunpack.c.h.b16 %v4487
          %v4655 = vunpack.c.l.b16 %v4488
          %v4656 = vunpack.c.h.b16 %v4488
          %v4657 = vunpack.c.l.b16 %v4489
          %v4658 = vunpack.c.h.b16 %v4489
          %v4659 = vunpack.c.l.b16 %v4490
          %v4660 = vunpack.c.h.b16 %v4490
          %v4661 = vunpack.c.l.b16 %v4491
          %v4662 = vunpack.c.h.b16 %v4491
          %v4663 = vunpack.c.l.b16 %v4492
          %v4664 = vunpack.c.h.b16 %v4492
          %v4665 = vunpack.c.l.b16 %v4493
          %v4666 = vunpack.c.h.b16 %v4493
          %v4667 = vunpack.c.l.b16 %v4494
          %v4668 = vunpack.c.h.b16 %v4494
          %v4669 = vunpack.c.l.b16 %v4495
          %v4670 = vunpack.c.h.b16 %v4495
          %v4671 = vunpack.c.l.b16 %v4496
          %v4672 = vunpack.c.h.b16 %v4496
          %v4673 = vunpack.c.l.b16 %v4497
          %v4674 = vunpack.c.h.b16 %v4497
          %v4675 = vunpack.c.l.b16 %v4498
          %v4676 = vunpack.c.h.b16 %v4498
          %v4677 = vunpack.c.l.b16 %v4499
          %v4678 = vunpack.c.h.b16 %v4499
          %v4679 = vunpack.c.l.b16 %v4500
          %v4680 = vunpack.c.h.b16 %v4500
          %v4681 = vunpack.c.l.b16 %v4501
          %v4682 = vunpack.c.h.b16 %v4501
          %v4683 = vunpack.c.l.b16 %v4502
          %v4684 = vunpack.c.h.b16 %v4502
          %v4685 = vunpack.c.l.b16 %v4503
          %v4686 = vunpack.c.h.b16 %v4503
          %v4687 = vunpack.c.l.b16 %v4504
          %v4688 = vunpack.c.h.b16 %v4504
          %v4689 = vunpack.c.l.b16 %v4505
          %v4690 = vunpack.c.h.b16 %v4505
          %v4691 = vunpack.c.l.b16 %v4506
          %v4692 = vunpack.c.h.b16 %v4506
          %v4693 = vunpack.c.l.b16 %v4507
          %v4694 = vunpack.c.h.b16 %v4507
          %v4695 = vunpack.c.l.b16 %v4508
          %v4696 = vunpack.c.h.b16 %v4508
          %v4697 = vunpack.c.l.b16 %v4509
          %v4698 = vunpack.c.h.b16 %v4509
          %v4699 = vunpack.c.l.b16 %v4510
          %v4700 = vunpack.c.h.b16 %v4510
          %v4701 = vunpack.c.l.b16 %v4511
          %v4702 = vunpack.c.h.b16 %v4511
          %v4703 = vunpack.c.l.b16 %v4512
          %v4704 = vunpack.c.h.b16 %v4512
          %v4705 = vunpack.c.l.b16 %v4513
          %v4706 = vunpack.c.h.b16 %v4513
          %v4707 = vunpack.c.l.b16 %v4514
          %v4708 = vunpack.c.h.b16 %v4514
          %v4709 = vunpack.c.l.b16 %v4515
          %v4710 = vunpack.c.h.b16 %v4515
          %v4711 = vunpack.c.l.b16 %v4516
          %v4712 = vunpack.c.h.b16 %v4516
          %v4713 = vunpack.c.l.b16 %v4517
          %v4714 = vunpack.c.h.b16 %v4517
          %v4715 = vunpack.c.l.b16 %v4518
          %v4716 = vunpack.c.h.b16 %v4518
          %v4717 = vunpack.c.l.b16 %v4519
          %v4718 = vunpack.c.h.b16 %v4519
          %v4719 = vunpack.c.l.b16 %v4520
          %v4720 = vunpack.c.h.b16 %v4520
          %v4721 = vunpack.c.l.b16 %v4521
          %v4722 = vunpack.c.h.b16 %v4521
          %v4723 = vunpack.c.l.b16 %v4522
          %v4724 = vunpack.c.h.b16 %v4522
          %v4725 = vunpack.c.l.b16 %v4523
          %v4726 = vunpack.c.h.b16 %v4523
          %v4727 = vunpack.c.l.b16 %v4524
          %v4728 = vunpack.c.h.b16 %v4524
          %v4729 = vpack.c.b16 %v4603, %v4601
          %v4730 = vpack.c.b16 %v4604, %v4602
          %v4731 = vpack.c.b16 %v4607, %v4605
          %v4732 = vpack.c.b16 %v4608, %v4606
          %v4733 = vpack.c.b16 %v4611, %v4609
          %v4734 = vpack.c.b16 %v4612, %v4610
          %v4735 = vpack.c.b16 %v4615, %v4613
          %v4736 = vpack.c.b16 %v4616, %v4614
          %v4737 = vpack.c.b16 %v4619, %v4617
          %v4738 = vpack.c.b16 %v4620, %v4618
          %v4739 = vpack.c.b16 %v4623, %v4621
          %v4740 = vpack.c.b16 %v4624, %v4622
          %v4741 = vpack.c.b16 %v4627, %v4625
          %v4742 = vpack.c.b16 %v4628, %v4626
          %v4743 = vpack.c.b16 %v4631, %v4629
          %v4744 = vpack.c.b16 %v4632, %v4630
          %v4745 = vpack.c.b16 %v4635, %v4633
          %v4746 = vpack.c.b16 %v4636, %v4634
          %v4747 = vpack.c.b16 %v4639, %v4637
          %v4748 = vpack.c.b16 %v4640, %v4638
          %v4749 = vpack.c.b16 %v4643, %v4641
          %v4750 = vpack.c.b16 %v4644, %v4642
          %v4751 = vpack.c.b16 %v4647, %v4645
          %v4752 = vpack.c.b16 %v4648, %v4646
          %v4753 = vpack.c.b16 %v4651, %v4649
          %v4754 = vpack.c.b16 %v4652, %v4650
          %v4755 = vpack.c.b16 %v4655, %v4653
          %v4756 = vpack.c.b16 %v4656, %v4654
          %v4757 = vpack.c.b16 %v4659, %v4657
          %v4758 = vpack.c.b16 %v4660, %v4658
          %v4759 = vpack.c.b16 %v4663, %v4661
          %v4760 = vpack.c.b16 %v4664, %v4662
          %v4761 = vpack.c.b16 %v4667, %v4665
          %v4762 = vpack.c.b16 %v4668, %v4666
          %v4763 = vpack.c.b16 %v4671, %v4669
          %v4764 = vpack.c.b16 %v4672, %v4670
          %v4765 = vpack.c.b16 %v4675, %v4673
          %v4766 = vpack.c.b16 %v4676, %v4674
          %v4767 = vpack.c.b16 %v4679, %v4677
          %v4768 = vpack.c.b16 %v4680, %v4678
          %v4769 = vpack.c.b16 %v4683, %v4681
          %v4770 = vpack.c.b16 %v4684, %v4682
          %v4771 = vpack.c.b16 %v4687, %v4685
          %v4772 = vpack.c.b16 %v4688, %v4686
          %v4773 = vpack.c.b16 %v4691, %v4689
          %v4774 = vpack.c.b16 %v4692, %v4690
          %v4775 = vpack.c.b16 %v4695, %v4693
          %v4776 = vpack.c.b16 %v4696, %v4694
          %v4777 = vpack.c.b16 %v4699, %v4697
          %v4778 = vpack.c.b16 %v4700, %v4698
          %v4779 = vpack.c.b16 %v4703, %v4701
          %v4780 = vpack.c.b16 %v4704, %v4702
          %v4781 = vpack.c.b16 %v4707, %v4705
          %v4782 = vpack.c.b16 %v4708, %v4706
          %v4783 = vpack.c.b16 %v4711, %v4709
          %v4784 = vpack.c.b16 %v4712, %v4710
          %v4785 = vpack.c.b16 %v4715, %v4713
          %v4786 = vpack.c.b16 %v4716, %v4714
          %v4787 = vpack.c.b16 %v4719, %v4717
          %v4788 = vpack.c.b16 %v4720, %v4718
          %v4789 = vpack.c.b16 %v4723, %v4721
          %v4790 = vpack.c.b16 %v4724, %v4722
          %v4791 = vpack.c.b16 %v4727, %v4725
          %v4792 = vpack.c.b16 %v4728, %v4726
          %4857 = vmatprep.subr.bf16.mxu0 %v4744
          %4858 = vmatpush1.bf16.msra.mxu0 %v4743
          %4859 = vmatprep.subr.bf16.mxu0 %v4742
          %4860 = vmatpush1.bf16.msra.mxu0 %v4741
          %4861 = vmatprep.subr.bf16.mxu0 %v4740
          %4862 = vmatpush1.bf16.msra.mxu0 %v4739
          %4863 = vmatprep.subr.bf16.mxu0 %v4738
          %4864 = vmatpush1.bf16.msra.mxu0 %v4737
          %4865 = vmatprep.subr.bf16.mxu0 %v4736
          %4866 = vmatpush1.bf16.msra.mxu0 %v4735
          %4867 = vmatprep.subr.bf16.mxu0 %v4734
          %4868 = vmatpush1.bf16.msra.mxu0 %v4733
          %4869 = vmatprep.subr.bf16.mxu0 %v4732
          %4870 = vmatpush1.bf16.msra.mxu0 %v4731
          %4871 = vmatprep.subr.bf16.mxu0 %v4730
          %4872 = vmatpush1.bf16.msra.mxu0 %v4729
          %4873 = vmatprep.subr.bf16.mxu0 %v4760
          %4874 = vmatpush2.bf16.msra.mxu0 %v4759
          %4875 = vmatprep.subr.bf16.mxu0 %v4758
          %4876 = vmatpush2.bf16.msra.mxu0 %v4757
          %4877 = vmatprep.subr.bf16.mxu0 %v4756
          %4878 = vmatpush2.bf16.msra.mxu0 %v4755
          %4879 = vmatprep.subr.bf16.mxu0 %v4754
          %4880 = vmatpush2.bf16.msra.mxu0 %v4753
          %4881 = vmatprep.subr.bf16.mxu0 %v4752
          %4882 = vmatpush2.bf16.msra.mxu0 %v4751
          %4883 = vmatprep.subr.bf16.mxu0 %v4750
          %4884 = vmatpush2.bf16.msra.mxu0 %v4749
          %4885 = vmatprep.subr.bf16.mxu0 %v4748
          %4886 = vmatpush2.bf16.msra.mxu0 %v4747
          %4887 = vmatprep.subr.bf16.mxu0 %v4746
          %4888 = vmatpush2.bf16.msra.mxu0 %v4745
          %4889 = vmatprep.mubr.bf16.mxu0 %v4430
          %4890 = vmatmul.mubr.bf16.gmra.mxu0 %v4429
          %v4891 = vpop.f32.mrf.mxu0
          %v4892 = vadd.f32 %v4530, %v4891
          %v4893 = vpop.f32.mrf.mxu0
          %v4894 = vadd.f32 %v4534, %v4893
          %v4895 = vpop.f32.mrf.mxu0
          %v4896 = vadd.f32 %v4530, %v4895
          %v4897 = vpop.f32.mrf.mxu0
          %v4898 = vadd.f32 %v4534, %v4897
          %4899 = vmatprep.mubr.bf16.mxu0 %v4434
          %4900 = vmatmul.mubr.bf16.gmra.mxu0 %v4433
          %v4901 = vpop.f32.mrf.mxu0
          %v4902 = vadd.f32 %v4530, %v4901
          %v4903 = vpop.f32.mrf.mxu0
          %v4904 = vadd.f32 %v4534, %v4903
          %v4905 = vpop.f32.mrf.mxu0
          %v4906 = vadd.f32 %v4530, %v4905
          %v4907 = vpop.f32.mrf.mxu0
          %v4908 = vadd.f32 %v4534, %v4907
          %4909 = vmatprep.mubr.bf16.mxu0 %v4438
          %4910 = vmatmul.mubr.bf16.gmra.mxu0 %v4437
          %v4911 = vpop.f32.mrf.mxu0
          %v4912 = vadd.f32 %v4530, %v4911
          %v4913 = vpop.f32.mrf.mxu0
          %v4914 = vadd.f32 %v4534, %v4913
          %v4915 = vpop.f32.mrf.mxu0
          %v4916 = vadd.f32 %v4530, %v4915
          %v4917 = vpop.f32.mrf.mxu0
          %v4918 = vadd.f32 %v4534, %v4917
          %4919 = vmatprep.mubr.bf16.mxu0 %v4442
          %4920 = vmatmul.mubr.bf16.gmra.mxu0 %v4441
          %v4921 = vpop.f32.mrf.mxu0
          %v4922 = vadd.f32 %v4530, %v4921
          %v4923 = vpop.f32.mrf.mxu0
          %v4924 = vadd.f32 %v4534, %v4923
          %v4925 = vpop.f32.mrf.mxu0
          %v4926 = vadd.f32 %v4530, %v4925
          %v4927 = vpop.f32.mrf.mxu0
          %v4928 = vadd.f32 %v4534, %v4927
          %4929 = vmatprep.mubr.bf16.mxu0 %v4446
          %4930 = vmatmul.mubr.bf16.gmra.mxu0 %v4445
          %v4931 = vpop.f32.mrf.mxu0
          %v4932 = vadd.f32 %v4530, %v4931
          %v4933 = vpop.f32.mrf.mxu0
          %v4934 = vadd.f32 %v4534, %v4933
          %v4935 = vpop.f32.mrf.mxu0
          %v4936 = vadd.f32 %v4530, %v4935
          %v4937 = vpop.f32.mrf.mxu0
          %v4938 = vadd.f32 %v4534, %v4937
          %4939 = vmatprep.mubr.bf16.mxu0 %v4450
          %4940 = vmatmul.mubr.bf16.gmra.mxu0 %v4449
          %v4941 = vpop.f32.mrf.mxu0
          %v4942 = vadd.f32 %v4530, %v4941
          %v4943 = vpop.f32.mrf.mxu0
          %v4944 = vadd.f32 %v4534, %v4943
          %v4945 = vpop.f32.mrf.mxu0
          %v4946 = vadd.f32 %v4530, %v4945
          %v4947 = vpop.f32.mrf.mxu0
          %v4948 = vadd.f32 %v4534, %v4947
          %4949 = vmatprep.mubr.bf16.mxu0 %v4454
          %4950 = vmatmul.mubr.bf16.gmra.mxu0 %v4453
          %v4951 = vpop.f32.mrf.mxu0
          %v4952 = vadd.f32 %v4530, %v4951
          %v4953 = vpop.f32.mrf.mxu0
          %v4954 = vadd.f32 %v4534, %v4953
          %v4955 = vpop.f32.mrf.mxu0
          %v4956 = vadd.f32 %v4530, %v4955
          %v4957 = vpop.f32.mrf.mxu0
          %v4958 = vadd.f32 %v4534, %v4957
          %4959 = vmatprep.mubr.bf16.mxu0 %v4458
          %4960 = vmatmul.mubr.bf16.gmra.mxu0 %v4457
          %v4961 = vpop.f32.mrf.mxu0
          %v4962 = vadd.f32 %v4530, %v4961
          %v4963 = vpop.f32.mrf.mxu0
          %v4964 = vadd.f32 %v4534, %v4963
          %v4965 = vpop.f32.mrf.mxu0
          %v4966 = vadd.f32 %v4530, %v4965
          %v4967 = vpop.f32.mrf.mxu0
          %v4968 = vadd.f32 %v4534, %v4967
          %4969 = vdwg.mxu0
          %4970 = vmatprep.subr.bf16.mxu0 %v4776
          %4971 = vmatpush1.bf16.msra.mxu0 %v4775
          %4972 = vmatprep.subr.bf16.mxu0 %v4774
          %4973 = vmatpush1.bf16.msra.mxu0 %v4773
          %4974 = vmatprep.subr.bf16.mxu0 %v4772
          %4975 = vmatpush1.bf16.msra.mxu0 %v4771
          %4976 = vmatprep.subr.bf16.mxu0 %v4770
          %4977 = vmatpush1.bf16.msra.mxu0 %v4769
          %4978 = vmatprep.subr.bf16.mxu0 %v4768
          %4979 = vmatpush1.bf16.msra.mxu0 %v4767
          %4980 = vmatprep.subr.bf16.mxu0 %v4766
          %4981 = vmatpush1.bf16.msra.mxu0 %v4765
          %4982 = vmatprep.subr.bf16.mxu0 %v4764
          %4983 = vmatpush1.bf16.msra.mxu0 %v4763
          %4984 = vmatprep.subr.bf16.mxu0 %v4762
          %4985 = vmatpush1.bf16.msra.mxu0 %v4761
          %4986 = vmatprep.subr.bf16.mxu0 %v4792
          %4987 = vmatpush2.bf16.msra.mxu0 %v4791
          %4988 = vmatprep.subr.bf16.mxu0 %v4790
          %4989 = vmatpush2.bf16.msra.mxu0 %v4789
          %4990 = vmatprep.subr.bf16.mxu0 %v4788
          %4991 = vmatpush2.bf16.msra.mxu0 %v4787
          %4992 = vmatprep.subr.bf16.mxu0 %v4786
          %4993 = vmatpush2.bf16.msra.mxu0 %v4785
          %4994 = vmatprep.subr.bf16.mxu0 %v4784
          %4995 = vmatpush2.bf16.msra.mxu0 %v4783
          %4996 = vmatprep.subr.bf16.mxu0 %v4782
          %4997 = vmatpush2.bf16.msra.mxu0 %v4781
          %4998 = vmatprep.subr.bf16.mxu0 %v4780
          %4999 = vmatpush2.bf16.msra.mxu0 %v4779
          %5000 = vmatprep.subr.bf16.mxu0 %v4778
          %5001 = vmatpush2.bf16.msra.mxu0 %v4777
          %5002 = vmatprep.mubr.bf16.mxu0 %v4432
          %5003 = vmatmul.mubr.bf16.gmra.mxu0 %v4431
          %v5004 = vpop.f32.mrf.mxu0
          %v5005 = vadd.f32 %v4892, %v5004
          %v5006 = vpop.f32.mrf.mxu0
          %v5007 = vadd.f32 %v4894, %v5006
          %v5008 = vpop.f32.mrf.mxu0
          %v5009 = vadd.f32 %v4896, %v5008
          %v5010 = vpop.f32.mrf.mxu0
          %v5011 = vadd.f32 %v4898, %v5010
          %5012 = vmatprep.mubr.bf16.mxu0 %v4436
          %5013 = vmatmul.mubr.bf16.gmra.mxu0 %v4435
          %v5014 = vpop.f32.mrf.mxu0
          %v5015 = vadd.f32 %v4902, %v5014
          %v5016 = vpop.f32.mrf.mxu0
          %v5017 = vadd.f32 %v4904, %v5016
          %v5018 = vpop.f32.mrf.mxu0
          %v5019 = vadd.f32 %v4906, %v5018
          %v5020 = vpop.f32.mrf.mxu0
          %v5021 = vadd.f32 %v4908, %v5020
          %5022 = vmatprep.mubr.bf16.mxu0 %v4440
          %5023 = vmatmul.mubr.bf16.gmra.mxu0 %v4439
          %v5024 = vpop.f32.mrf.mxu0
          %v5025 = vadd.f32 %v4912, %v5024
          %v5026 = vpop.f32.mrf.mxu0
          %v5027 = vadd.f32 %v4914, %v5026
          %v5028 = vpop.f32.mrf.mxu0
          %v5029 = vadd.f32 %v4916, %v5028
          %v5030 = vpop.f32.mrf.mxu0
          %v5031 = vadd.f32 %v4918, %v5030
          %5032 = vmatprep.mubr.bf16.mxu0 %v4444
          %5033 = vmatmul.mubr.bf16.gmra.mxu0 %v4443
          %v5034 = vpop.f32.mrf.mxu0
          %v5035 = vadd.f32 %v4922, %v5034
          %v5036 = vpop.f32.mrf.mxu0
          %v5037 = vadd.f32 %v4924, %v5036
          %v5038 = vpop.f32.mrf.mxu0
          %v5039 = vadd.f32 %v4926, %v5038
          %v5040 = vpop.f32.mrf.mxu0
          %v5041 = vadd.f32 %v4928, %v5040
          %5042 = vmatprep.mubr.bf16.mxu0 %v4448
          %5043 = vmatmul.mubr.bf16.gmra.mxu0 %v4447
          %v5044 = vpop.f32.mrf.mxu0
          %v5045 = vadd.f32 %v4932, %v5044
          %v5046 = vpop.f32.mrf.mxu0
          %v5047 = vadd.f32 %v4934, %v5046
          %v5048 = vpop.f32.mrf.mxu0
          %v5049 = vadd.f32 %v4936, %v5048
          %v5050 = vpop.f32.mrf.mxu0
          %v5051 = vadd.f32 %v4938, %v5050
          %5052 = vmatprep.mubr.bf16.mxu0 %v4452
          %5053 = vmatmul.mubr.bf16.gmra.mxu0 %v4451
          %v5054 = vpop.f32.mrf.mxu0
          %v5055 = vadd.f32 %v4942, %v5054
          %v5056 = vpop.f32.mrf.mxu0
          %v5057 = vadd.f32 %v4944, %v5056
          %v5058 = vpop.f32.mrf.mxu0
          %v5059 = vadd.f32 %v4946, %v5058
          %v5060 = vpop.f32.mrf.mxu0
          %v5061 = vadd.f32 %v4948, %v5060
          %5062 = vmatprep.mubr.bf16.mxu0 %v4456
          %5063 = vmatmul.mubr.bf16.gmra.mxu0 %v4455
          %v5064 = vpop.f32.mrf.mxu0
          %v5065 = vadd.f32 %v4952, %v5064
          %v5066 = vpop.f32.mrf.mxu0
          %v5067 = vadd.f32 %v4954, %v5066
          %v5068 = vpop.f32.mrf.mxu0
          %v5069 = vadd.f32 %v4956, %v5068
          %v5070 = vpop.f32.mrf.mxu0
          %v5071 = vadd.f32 %v4958, %v5070
          %5072 = vmatprep.mubr.bf16.mxu0 %v4460
          %5073 = vmatmul.mubr.bf16.gmra.mxu0 %v4459
          %v5074 = vpop.f32.mrf.mxu0
          %v5075 = vadd.f32 %v4962, %v5074
          %v5076 = vpop.f32.mrf.mxu0
          %v5077 = vadd.f32 %v4964, %v5076
          %v5078 = vpop.f32.mrf.mxu0
          %v5079 = vadd.f32 %v4966, %v5078
          %v5080 = vpop.f32.mrf.mxu0
          %v5081 = vadd.f32 %v4968, %v5080
          %5082 = vdwg.mxu0
          %v5083 = vmax.f32 %v5005, 0.0
          %v5084 = vmax.f32 %v5007, 0.0
          %v5085 = vmax.f32 %v5009, 0.0
          %v5086 = vmax.f32 %v5011, 0.0
          %v5087 = vmax.f32 %v5015, 0.0
          %v5088 = vmax.f32 %v5017, 0.0
          %v5089 = vmax.f32 %v5019, 0.0
          %v5090 = vmax.f32 %v5021, 0.0
          %v5091 = vmax.f32 %v5025, 0.0
          %v5092 = vmax.f32 %v5027, 0.0
          %v5093 = vmax.f32 %v5029, 0.0
          %v5094 = vmax.f32 %v5031, 0.0
          %v5095 = vmax.f32 %v5035, 0.0
          %v5096 = vmax.f32 %v5037, 0.0
          %v5097 = vmax.f32 %v5039, 0.0
          %v5098 = vmax.f32 %v5041, 0.0
          %v5099 = vmax.f32 %v5045, 0.0
          %v5100 = vmax.f32 %v5047, 0.0
          %v5101 = vmax.f32 %v5049, 0.0
          %v5102 = vmax.f32 %v5051, 0.0
          %v5103 = vmax.f32 %v5055, 0.0
          %v5104 = vmax.f32 %v5057, 0.0
          %v5105 = vmax.f32 %v5059, 0.0
          %v5106 = vmax.f32 %v5061, 0.0
          %v5107 = vmax.f32 %v5065, 0.0
          %v5108 = vmax.f32 %v5067, 0.0
          %v5109 = vmax.f32 %v5069, 0.0
          %v5110 = vmax.f32 %v5071, 0.0
          %v5111 = vmax.f32 %v5075, 0.0
          %v5112 = vmax.f32 %v5077, 0.0
          %v5113 = vmax.f32 %v5079, 0.0
          %v5114 = vmax.f32 %v5081, 0.0
          %v5115 = vpack.c.bf16 %v5085, %v5083
          %v5116 = vpack.c.bf16 %v5086, %v5084
          %v5117 = vpack.c.bf16 %v5089, %v5087
          %v5118 = vpack.c.bf16 %v5090, %v5088
          %v5119 = vpack.c.bf16 %v5093, %v5091
          %v5120 = vpack.c.bf16 %v5094, %v5092
          %v5121 = vpack.c.bf16 %v5097, %v5095
          %v5122 = vpack.c.bf16 %v5098, %v5096
          %v5123 = vpack.c.bf16 %v5101, %v5099
          %v5124 = vpack.c.bf16 %v5102, %v5100
          %v5125 = vpack.c.bf16 %v5105, %v5103
          %v5126 = vpack.c.bf16 %v5106, %v5104
          %v5127 = vpack.c.bf16 %v5109, %v5107
          %v5128 = vpack.c.bf16 %v5110, %v5108
          %v5129 = vpack.c.bf16 %v5113, %v5111
          %v5130 = vpack.c.bf16 %v5114, %v5112
          %v5131 = vld [vmem:[#allocation20] sm:$0xf]
          %v5132 = vld [vmem:[#allocation20 + $0x4] sm:$0xf]
          %v5133 = vld [vmem:[#allocation20 + $0x8] sm:$0xf]
          %v5134 = vld [vmem:[#allocation20 + $0xc] sm:$0xf]
          %v5135 = vld [vmem:[#allocation20 + $0x10] sm:$0xf]
          %v5136 = vld [vmem:[#allocation20 + $0x14] sm:$0xf]
          %v5137 = vld [vmem:[#allocation20 + $0x18] sm:$0xf]
          %v5138 = vld [vmem:[#allocation20 + $0x1c] sm:$0xf]
          %v5139 = vld [vmem:[#allocation20 + $0x20] sm:$0xf]
          %v5140 = vld [vmem:[#allocation20 + $0x24] sm:$0xf]
          %v5141 = vld [vmem:[#allocation20 + $0x28] sm:$0xf]
          %v5142 = vld [vmem:[#allocation20 + $0x2c] sm:$0xf]
          %v5143 = vld [vmem:[#allocation20 + $0x30] sm:$0xf]
          %v5144 = vld [vmem:[#allocation20 + $0x34] sm:$0xf]
          %v5145 = vld [vmem:[#allocation20 + $0x38] sm:$0xf]
          %v5146 = vld [vmem:[#allocation20 + $0x3c] sm:$0xf]
          %v5147 = vld [vmem:[#allocation20 + $0x40] sm:$0xf]
          %v5148 = vld [vmem:[#allocation20 + $0x44] sm:$0xf]
          %v5149 = vld [vmem:[#allocation20 + $0x48] sm:$0xf]
          %v5150 = vld [vmem:[#allocation20 + $0x4c] sm:$0xf]
          %v5151 = vld [vmem:[#allocation20 + $0x50] sm:$0xf]
          %v5152 = vld [vmem:[#allocation20 + $0x54] sm:$0xf]
          %v5153 = vld [vmem:[#allocation20 + $0x58] sm:$0xf]
          %v5154 = vld [vmem:[#allocation20 + $0x5c] sm:$0xf]
          %v5155 = vld [vmem:[#allocation20 + $0x60] sm:$0xf]
          %v5156 = vld [vmem:[#allocation20 + $0x64] sm:$0xf]
          %v5157 = vld [vmem:[#allocation20 + $0x68] sm:$0xf]
          %v5158 = vld [vmem:[#allocation20 + $0x6c] sm:$0xf]
          %v5159 = vld [vmem:[#allocation20 + $0x70] sm:$0xf]
          %v5160 = vld [vmem:[#allocation20 + $0x74] sm:$0xf]
          %v5161 = vld [vmem:[#allocation20 + $0x78] sm:$0xf]
          %v5162 = vld [vmem:[#allocation20 + $0x7c] sm:$0xf]
          %v5163 = vld [vmem:[%s14] sm:$0x1]
          %v5165 = vlaneseq
          %v5166 = vshrl.u32 %v5165, 7
          %v5167 = vsub.s32 0, %v5166
          %v5168 = vrot.slane %v5163, %v5167
          %v5202 = vunpack.c.l.b16 %v5131
          %v5203 = vunpack.c.l.b16 %v5132
          %v5204 = vunpack.c.l.b16 %v5133
          %v5205 = vunpack.c.l.b16 %v5134
          %v5206 = vunpack.c.l.b16 %v5135
          %v5207 = vunpack.c.l.b16 %v5136
          %v5208 = vunpack.c.l.b16 %v5137
          %v5209 = vunpack.c.l.b16 %v5138
          %v5210 = vunpack.c.l.b16 %v5139
          %v5211 = vunpack.c.l.b16 %v5140
          %v5212 = vunpack.c.l.b16 %v5141
          %v5213 = vunpack.c.l.b16 %v5142
          %v5214 = vunpack.c.l.b16 %v5143
          %v5215 = vunpack.c.l.b16 %v5144
          %v5216 = vunpack.c.l.b16 %v5145
          %v5217 = vunpack.c.l.b16 %v5146
          %v5218 = vunpack.c.l.b16 %v5147
          %v5219 = vunpack.c.l.b16 %v5148
          %v5220 = vunpack.c.l.b16 %v5149
          %v5221 = vunpack.c.l.b16 %v5150
          %v5222 = vunpack.c.l.b16 %v5151
          %v5223 = vunpack.c.l.b16 %v5152
          %v5224 = vunpack.c.l.b16 %v5153
          %v5225 = vunpack.c.l.b16 %v5154
          %v5226 = vunpack.c.l.b16 %v5155
          %v5227 = vunpack.c.l.b16 %v5156
          %v5228 = vunpack.c.l.b16 %v5157
          %v5229 = vunpack.c.l.b16 %v5158
          %v5230 = vunpack.c.l.b16 %v5159
          %v5231 = vunpack.c.l.b16 %v5160
          %v5232 = vunpack.c.l.b16 %v5161
          %v5233 = vunpack.c.l.b16 %v5162
          %v5234 = vpack.c.b16 %v5203, %v5202
          %v5235 = vpack.c.b16 %v5205, %v5204
          %v5236 = vpack.c.b16 %v5207, %v5206
          %v5237 = vpack.c.b16 %v5209, %v5208
          %v5238 = vpack.c.b16 %v5211, %v5210
          %v5239 = vpack.c.b16 %v5213, %v5212
          %v5240 = vpack.c.b16 %v5215, %v5214
          %v5241 = vpack.c.b16 %v5217, %v5216
          %v5242 = vpack.c.b16 %v5219, %v5218
          %v5243 = vpack.c.b16 %v5221, %v5220
          %v5244 = vpack.c.b16 %v5223, %v5222
          %v5245 = vpack.c.b16 %v5225, %v5224
          %v5246 = vpack.c.b16 %v5227, %v5226
          %v5247 = vpack.c.b16 %v5229, %v5228
          %v5248 = vpack.c.b16 %v5231, %v5230
          %v5249 = vpack.c.b16 %v5233, %v5232
          %5266 = vmatprep.subr.bf16.mxu0 0
          %5267 = vmatpush1.bf16.msra.mxu0 %v5241
          %5268 = vmatprep.subr.bf16.mxu0 0
          %5269 = vmatpush1.bf16.msra.mxu0 %v5240
          %5270 = vmatprep.subr.bf16.mxu0 0
          %5271 = vmatpush1.bf16.msra.mxu0 %v5239
          %5272 = vmatprep.subr.bf16.mxu0 0
          %5273 = vmatpush1.bf16.msra.mxu0 %v5238
          %5274 = vmatprep.subr.bf16.mxu0 0
          %5275 = vmatpush1.bf16.msra.mxu0 %v5237
          %5276 = vmatprep.subr.bf16.mxu0 0
          %5277 = vmatpush1.bf16.msra.mxu0 %v5236
          %5278 = vmatprep.subr.bf16.mxu0 0
          %5279 = vmatpush1.bf16.msra.mxu0 %v5235
          %5280 = vmatprep.subr.bf16.mxu0 0
          %5281 = vmatpush1.bf16.msra.mxu0 %v5234
          %5282 = vmatprep.subr.bf16.mxu0 0
          %5283 = vmatpush2.bf16.msra.mxu0 %v5249
          %5284 = vmatprep.subr.bf16.mxu0 0
          %5285 = vmatpush2.bf16.msra.mxu0 %v5248
          %5286 = vmatprep.subr.bf16.mxu0 0
          %5287 = vmatpush2.bf16.msra.mxu0 %v5247
          %5288 = vmatprep.subr.bf16.mxu0 0
          %5289 = vmatpush2.bf16.msra.mxu0 %v5246
          %5290 = vmatprep.subr.bf16.mxu0 0
          %5291 = vmatpush2.bf16.msra.mxu0 %v5245
          %5292 = vmatprep.subr.bf16.mxu0 0
          %5293 = vmatpush2.bf16.msra.mxu0 %v5244
          %5294 = vmatprep.subr.bf16.mxu0 0
          %5295 = vmatpush2.bf16.msra.mxu0 %v5243
          %5296 = vmatprep.subr.bf16.mxu0 0
          %5297 = vmatpush2.bf16.msra.mxu0 %v5242
          %5298 = vmatprep.mubr.bf16.mxu0 %v5116
          %5299 = vmatmul.mubr.bf16.gmra.mxu0 %v5115
          %v5300 = vpop.f32.mrf.mxu0
          %v5301 = vadd.f32 %v5168, %v5300
          %v5302 = vpop.f32.mrf.mxu0
          %v5303 = vpop.f32.mrf.mxu0
          %v5304 = vadd.f32 %v5168, %v5303
          %v5305 = vpop.f32.mrf.mxu0
          %5306 = vmatprep.mubr.bf16.mxu0 %v5118
          %5307 = vmatmul.mubr.bf16.gmra.mxu0 %v5117
          %v5308 = vpop.f32.mrf.mxu0
          %v5309 = vadd.f32 %v5168, %v5308
          %v5310 = vpop.f32.mrf.mxu0
          %v5311 = vpop.f32.mrf.mxu0
          %v5312 = vadd.f32 %v5168, %v5311
          %v5313 = vpop.f32.mrf.mxu0
          %5314 = vmatprep.mubr.bf16.mxu0 %v5120
          %5315 = vmatmul.mubr.bf16.gmra.mxu0 %v5119
          %v5316 = vpop.f32.mrf.mxu0
          %v5317 = vadd.f32 %v5168, %v5316
          %v5318 = vpop.f32.mrf.mxu0
          %v5319 = vpop.f32.mrf.mxu0
          %v5320 = vadd.f32 %v5168, %v5319
          %v5321 = vpop.f32.mrf.mxu0
          %5322 = vmatprep.mubr.bf16.mxu0 %v5122
          %5323 = vmatmul.mubr.bf16.gmra.mxu0 %v5121
          %v5324 = vpop.f32.mrf.mxu0
          %v5325 = vadd.f32 %v5168, %v5324
          %v5326 = vpop.f32.mrf.mxu0
          %v5327 = vpop.f32.mrf.mxu0
          %v5328 = vadd.f32 %v5168, %v5327
          %v5329 = vpop.f32.mrf.mxu0
          %5330 = vmatprep.mubr.bf16.mxu0 %v5124
          %5331 = vmatmul.mubr.bf16.gmra.mxu0 %v5123
          %v5332 = vpop.f32.mrf.mxu0
          %v5333 = vadd.f32 %v5168, %v5332
          %v5334 = vpop.f32.mrf.mxu0
          %v5335 = vpop.f32.mrf.mxu0
          %v5336 = vadd.f32 %v5168, %v5335
          %v5337 = vpop.f32.mrf.mxu0
          %5338 = vmatprep.mubr.bf16.mxu0 %v5126
          %5339 = vmatmul.mubr.bf16.gmra.mxu0 %v5125
          %v5340 = vpop.f32.mrf.mxu0
          %v5341 = vadd.f32 %v5168, %v5340
          %v5342 = vpop.f32.mrf.mxu0
          %v5343 = vpop.f32.mrf.mxu0
          %v5344 = vadd.f32 %v5168, %v5343
          %v5345 = vpop.f32.mrf.mxu0
          %5346 = vmatprep.mubr.bf16.mxu0 %v5128
          %5347 = vmatmul.mubr.bf16.gmra.mxu0 %v5127
          %v5348 = vpop.f32.mrf.mxu0
          %v5349 = vadd.f32 %v5168, %v5348
          %v5350 = vpop.f32.mrf.mxu0
          %v5351 = vpop.f32.mrf.mxu0
          %v5352 = vadd.f32 %v5168, %v5351
          %v5353 = vpop.f32.mrf.mxu0
          %5354 = vmatprep.mubr.bf16.mxu0 %v5130
          %5355 = vmatmul.mubr.bf16.gmra.mxu0 %v5129
          %v5356 = vpop.f32.mrf.mxu0
          %v5357 = vadd.f32 %v5168, %v5356
          %v5358 = vpop.f32.mrf.mxu0
          %v5359 = vpop.f32.mrf.mxu0
          %v5360 = vadd.f32 %v5168, %v5359
          %v5361 = vpop.f32.mrf.mxu0
          %5362 = vdwg.mxu0
          %v5363 = vmax.f32 %v5301, 0.0
          %v5364 = vmax.f32 %v5304, 0.0
          %v5365 = vmax.f32 %v5309, 0.0
          %v5366 = vmax.f32 %v5312, 0.0
          %v5367 = vmax.f32 %v5317, 0.0
          %v5368 = vmax.f32 %v5320, 0.0
          %v5369 = vmax.f32 %v5325, 0.0
          %v5370 = vmax.f32 %v5328, 0.0
          %v5371 = vmax.f32 %v5333, 0.0
          %v5372 = vmax.f32 %v5336, 0.0
          %v5373 = vmax.f32 %v5341, 0.0
          %v5374 = vmax.f32 %v5344, 0.0
          %v5375 = vmax.f32 %v5349, 0.0
          %v5376 = vmax.f32 %v5352, 0.0
          %v5377 = vmax.f32 %v5357, 0.0
          %v5378 = vmax.f32 %v5360, 0.0
          %v5379 = vpack.c.bf16 %v5364, %v5363
          %v5380 = vpack.c.bf16 %v5366, %v5365
          %v5381 = vpack.c.bf16 %v5368, %v5367
          %v5382 = vpack.c.bf16 %v5370, %v5369
          %v5383 = vpack.c.bf16 %v5372, %v5371
          %v5384 = vpack.c.bf16 %v5374, %v5373
          %v5385 = vpack.c.bf16 %v5376, %v5375
          %v5386 = vpack.c.bf16 %v5378, %v5377
          %v5387 = vld [vmem:[#allocation21] sm:$0xf]
          %v5388 = vld [vmem:[#allocation21 + $0x4] sm:$0xf]
          %v5389 = vld [vmem:[#allocation21 + $0x8] sm:$0xf]
          %v5390 = vld [vmem:[#allocation21 + $0xc] sm:$0xf]
          %v5391 = vld [vmem:[#allocation21 + $0x10] sm:$0xf]
          %v5392 = vld [vmem:[#allocation21 + $0x14] sm:$0xf]
          %v5393 = vld [vmem:[#allocation21 + $0x18] sm:$0xf]
          %v5394 = vld [vmem:[#allocation21 + $0x1c] sm:$0xf]
          %v5395 = vld [vmem:[#allocation21 + $0x20] sm:$0xf]
          %v5396 = vld [vmem:[#allocation21 + $0x24] sm:$0xf]
          %v5397 = vld [vmem:[#allocation21 + $0x28] sm:$0xf]
          %v5398 = vld [vmem:[#allocation21 + $0x2c] sm:$0xf]
          %v5399 = vld [vmem:[#allocation21 + $0x30] sm:$0xf]
          %v5400 = vld [vmem:[#allocation21 + $0x34] sm:$0xf]
          %v5401 = vld [vmem:[#allocation21 + $0x38] sm:$0xf]
          %v5402 = vld [vmem:[#allocation21 + $0x3c] sm:$0xf]
          %v5403 = vld [vmem:[%s16] sm:$0x1]
          %v5405 = vlaneseq
          %v5406 = vshrl.u32 %v5405, 7
          %v5407 = vsub.s32 0, %v5406
          %v5408 = vrot.slane %v5403, %v5407
          %v5426 = vunpack.c.l.b16 %v5387
          %v5427 = vunpack.c.l.b16 %v5388
          %v5428 = vunpack.c.l.b16 %v5389
          %v5429 = vunpack.c.l.b16 %v5390
          %v5430 = vunpack.c.l.b16 %v5391
          %v5431 = vunpack.c.l.b16 %v5392
          %v5432 = vunpack.c.l.b16 %v5393
          %v5433 = vunpack.c.l.b16 %v5394
          %v5434 = vunpack.c.l.b16 %v5395
          %v5435 = vunpack.c.l.b16 %v5396
          %v5436 = vunpack.c.l.b16 %v5397
          %v5437 = vunpack.c.l.b16 %v5398
          %v5438 = vunpack.c.l.b16 %v5399
          %v5439 = vunpack.c.l.b16 %v5400
          %v5440 = vunpack.c.l.b16 %v5401
          %v5441 = vunpack.c.l.b16 %v5402
          %v5442 = vpack.c.b16 %v5427, %v5426
          %v5443 = vpack.c.b16 %v5429, %v5428
          %v5444 = vpack.c.b16 %v5431, %v5430
          %v5445 = vpack.c.b16 %v5433, %v5432
          %v5446 = vpack.c.b16 %v5435, %v5434
          %v5447 = vpack.c.b16 %v5437, %v5436
          %v5448 = vpack.c.b16 %v5439, %v5438
          %v5449 = vpack.c.b16 %v5441, %v5440
          %5458 = vmatprep.subr.bf16.mxu0 0
          %5459 = vmatpush1.bf16.msra.mxu0 %v5449
          %5460 = vmatprep.subr.bf16.mxu0 0
          %5461 = vmatpush1.bf16.msra.mxu0 %v5448
          %5462 = vmatprep.subr.bf16.mxu0 0
          %5463 = vmatpush1.bf16.msra.mxu0 %v5447
          %5464 = vmatprep.subr.bf16.mxu0 0
          %5465 = vmatpush1.bf16.msra.mxu0 %v5446
          %5466 = vmatprep.subr.bf16.mxu0 0
          %5467 = vmatpush1.bf16.msra.mxu0 %v5445
          %5468 = vmatprep.subr.bf16.mxu0 0
          %5469 = vmatpush1.bf16.msra.mxu0 %v5444
          %5470 = vmatprep.subr.bf16.mxu0 0
          %5471 = vmatpush1.bf16.msra.mxu0 %v5443
          %5472 = vmatprep.subr.bf16.mxu0 0
          %5473 = vmatpush1.bf16.msra.mxu0 %v5442
          %5474 = vmatprep.subr.bf16.mxu0 0
          %5475 = vmatpush2.bf16.msra.mxu0 0
          %5476 = vmatprep.subr.bf16.mxu0 0
          %5477 = vmatpush2.bf16.msra.mxu0 0
          %5478 = vmatprep.subr.bf16.mxu0 0
          %5479 = vmatpush2.bf16.msra.mxu0 0
          %5480 = vmatprep.subr.bf16.mxu0 0
          %5481 = vmatpush2.bf16.msra.mxu0 0
          %5482 = vmatprep.subr.bf16.mxu0 0
          %5483 = vmatpush2.bf16.msra.mxu0 0
          %5484 = vmatprep.subr.bf16.mxu0 0
          %5485 = vmatpush2.bf16.msra.mxu0 0
          %5486 = vmatprep.subr.bf16.mxu0 0
          %5487 = vmatpush2.bf16.msra.mxu0 0
          %5488 = vmatprep.subr.bf16.mxu0 0
          %5489 = vmatpush2.bf16.msra.mxu0 0
          %5490 = vmatprep.mubr.bf16.mxu0 0
          %5491 = vmatmul.mubr.bf16.gmra.mxu0 %v5379
          %v5492 = vpop.f32.mrf.mxu0
          %v5493 = vadd.f32 %v5408, %v5492
          %v5494 = vpop.f32.mrf.mxu0
          %v5495 = vpop.f32.mrf.mxu0
          %v5496 = vadd.f32 %v5408, %v5495
          %v5497 = vpop.f32.mrf.mxu0
          %5498 = vmatprep.mubr.bf16.mxu0 0
          %5499 = vmatmul.mubr.bf16.gmra.mxu0 %v5380
          %v5500 = vpop.f32.mrf.mxu0
          %v5501 = vadd.f32 %v5408, %v5500
          %v5502 = vpop.f32.mrf.mxu0
          %v5503 = vpop.f32.mrf.mxu0
          %v5504 = vadd.f32 %v5408, %v5503
          %v5505 = vpop.f32.mrf.mxu0
          %5506 = vmatprep.mubr.bf16.mxu0 0
          %5507 = vmatmul.mubr.bf16.gmra.mxu0 %v5381
          %v5508 = vpop.f32.mrf.mxu0
          %v5509 = vadd.f32 %v5408, %v5508
          %v5510 = vpop.f32.mrf.mxu0
          %v5511 = vpop.f32.mrf.mxu0
          %v5512 = vadd.f32 %v5408, %v5511
          %v5513 = vpop.f32.mrf.mxu0
          %5514 = vmatprep.mubr.bf16.mxu0 0
          %5515 = vmatmul.mubr.bf16.gmra.mxu0 %v5382
          %v5516 = vpop.f32.mrf.mxu0
          %v5517 = vadd.f32 %v5408, %v5516
          %v5518 = vpop.f32.mrf.mxu0
          %v5519 = vpop.f32.mrf.mxu0
          %v5520 = vadd.f32 %v5408, %v5519
          %v5521 = vpop.f32.mrf.mxu0
          %5522 = vmatprep.mubr.bf16.mxu0 0
          %5523 = vmatmul.mubr.bf16.gmra.mxu0 %v5383
          %v5524 = vpop.f32.mrf.mxu0
          %v5525 = vadd.f32 %v5408, %v5524
          %v5526 = vpop.f32.mrf.mxu0
          %v5527 = vpop.f32.mrf.mxu0
          %v5528 = vadd.f32 %v5408, %v5527
          %v5529 = vpop.f32.mrf.mxu0
          %5530 = vmatprep.mubr.bf16.mxu0 0
          %5531 = vmatmul.mubr.bf16.gmra.mxu0 %v5384
          %v5532 = vpop.f32.mrf.mxu0
          %v5533 = vadd.f32 %v5408, %v5532
          %v5534 = vpop.f32.mrf.mxu0
          %v5535 = vpop.f32.mrf.mxu0
          %v5536 = vadd.f32 %v5408, %v5535
          %v5537 = vpop.f32.mrf.mxu0
          %5538 = vmatprep.mubr.bf16.mxu0 0
          %5539 = vmatmul.mubr.bf16.gmra.mxu0 %v5385
          %v5540 = vpop.f32.mrf.mxu0
          %v5541 = vadd.f32 %v5408, %v5540
          %v5542 = vpop.f32.mrf.mxu0
          %v5543 = vpop.f32.mrf.mxu0
          %v5544 = vadd.f32 %v5408, %v5543
          %v5545 = vpop.f32.mrf.mxu0
          %5546 = vmatprep.mubr.bf16.mxu0 0
          %5547 = vmatmul.mubr.bf16.gmra.mxu0 %v5386
          %v5548 = vpop.f32.mrf.mxu0
          %v5549 = vadd.f32 %v5408, %v5548
          %v5550 = vpop.f32.mrf.mxu0
          %v5551 = vpop.f32.mrf.mxu0
          %v5552 = vadd.f32 %v5408, %v5551
          %v5553 = vpop.f32.mrf.mxu0
          %5554 = vdwg.mxu0
          %v5555 = vmax.f32 %v5493, 0.0
          %v5556 = vmax.f32 %v5496, 0.0
          %v5557 = vmax.f32 %v5501, 0.0
          %v5558 = vmax.f32 %v5504, 0.0
          %v5559 = vmax.f32 %v5509, 0.0
          %v5560 = vmax.f32 %v5512, 0.0
          %v5561 = vmax.f32 %v5517, 0.0
          %v5562 = vmax.f32 %v5520, 0.0
          %v5563 = vmax.f32 %v5525, 0.0
          %v5564 = vmax.f32 %v5528, 0.0
          %v5565 = vmax.f32 %v5533, 0.0
          %v5566 = vmax.f32 %v5536, 0.0
          %v5567 = vmax.f32 %v5541, 0.0
          %v5568 = vmax.f32 %v5544, 0.0
          %v5569 = vmax.f32 %v5549, 0.0
          %v5570 = vmax.f32 %v5552, 0.0
          %v5571 = vpack.c.bf16 %v5556, %v5555
          %v5572 = vpack.c.bf16 %v5558, %v5557
          %v5573 = vpack.c.bf16 %v5560, %v5559
          %v5574 = vpack.c.bf16 %v5562, %v5561
          %v5575 = vpack.c.bf16 %v5564, %v5563
          %v5576 = vpack.c.bf16 %v5566, %v5565
          %v5577 = vpack.c.bf16 %v5568, %v5567
          %v5578 = vpack.c.bf16 %v5570, %v5569
          %v5579 = vld [vmem:[#allocation23] sm:$0xf]
          %v5580 = vld [vmem:[#allocation23 + $0x4] sm:$0xf]
          %v5581 = vld [vmem:[#allocation23 + $0x8] sm:$0xf]
          %v5582 = vld [vmem:[#allocation23 + $0xc] sm:$0xf]
          %v5583 = vld [vmem:[#allocation23 + $0x10] sm:$0xf]
          %v5584 = vld [vmem:[#allocation23 + $0x14] sm:$0xf]
          %v5585 = vld [vmem:[#allocation23 + $0x18] sm:$0xf]
          %v5586 = vld [vmem:[#allocation23 + $0x1c] sm:$0xf]
          %v5587 = vld [vmem:[#allocation23 + $0x20] sm:$0xf]
          %v5588 = vld [vmem:[#allocation23 + $0x24] sm:$0xf]
          %v5589 = vld [vmem:[#allocation23 + $0x28] sm:$0xf]
          %v5590 = vld [vmem:[#allocation23 + $0x2c] sm:$0xf]
          %v5591 = vld [vmem:[#allocation23 + $0x30] sm:$0xf]
          %v5592 = vld [vmem:[#allocation23 + $0x34] sm:$0xf]
          %v5593 = vld [vmem:[#allocation23 + $0x38] sm:$0xf]
          %v5594 = vld [vmem:[#allocation23 + $0x3c] sm:$0xf]
          %v5595 = vld [vmem:[%s18] sm:$0x1]
          %v5597 = vlaneseq
          %v5598 = vshrl.u32 %v5597, 7
          %v5599 = vsub.s32 0, %v5598
          %v5600 = vrot.slane %v5595, %v5599
          %v5618 = vunpack.c.l.b16 %v5579
          %v5619 = vunpack.c.l.b16 %v5580
          %v5620 = vunpack.c.l.b16 %v5581
          %v5621 = vunpack.c.l.b16 %v5582
          %v5622 = vunpack.c.l.b16 %v5583
          %v5623 = vunpack.c.l.b16 %v5584
          %v5624 = vunpack.c.l.b16 %v5585
          %v5625 = vunpack.c.l.b16 %v5586
          %v5626 = vunpack.c.l.b16 %v5587
          %v5627 = vunpack.c.l.b16 %v5588
          %v5628 = vunpack.c.l.b16 %v5589
          %v5629 = vunpack.c.l.b16 %v5590
          %v5630 = vunpack.c.l.b16 %v5591
          %v5631 = vunpack.c.l.b16 %v5592
          %v5632 = vunpack.c.l.b16 %v5593
          %v5633 = vunpack.c.l.b16 %v5594
          %v5634 = vpack.c.b16 %v5619, %v5618
          %v5635 = vpack.c.b16 %v5621, %v5620
          %v5636 = vpack.c.b16 %v5623, %v5622
          %v5637 = vpack.c.b16 %v5625, %v5624
          %v5638 = vpack.c.b16 %v5627, %v5626
          %v5639 = vpack.c.b16 %v5629, %v5628
          %v5640 = vpack.c.b16 %v5631, %v5630
          %v5641 = vpack.c.b16 %v5633, %v5632
          %5650 = vmatprep.subr.bf16.mxu0 0
          %5651 = vmatpush1.bf16.msra.mxu0 %v5641
          %5652 = vmatprep.subr.bf16.mxu0 0
          %5653 = vmatpush1.bf16.msra.mxu0 %v5640
          %5654 = vmatprep.subr.bf16.mxu0 0
          %5655 = vmatpush1.bf16.msra.mxu0 %v5639
          %5656 = vmatprep.subr.bf16.mxu0 0
          %5657 = vmatpush1.bf16.msra.mxu0 %v5638
          %5658 = vmatprep.subr.bf16.mxu0 0
          %5659 = vmatpush1.bf16.msra.mxu0 %v5637
          %5660 = vmatprep.subr.bf16.mxu0 0
          %5661 = vmatpush1.bf16.msra.mxu0 %v5636
          %5662 = vmatprep.subr.bf16.mxu0 0
          %5663 = vmatpush1.bf16.msra.mxu0 %v5635
          %5664 = vmatprep.subr.bf16.mxu0 0
          %5665 = vmatpush1.bf16.msra.mxu0 %v5634
          %5666 = vmatprep.subr.bf16.mxu0 0
          %5667 = vmatpush2.bf16.msra.mxu0 0
          %5668 = vmatprep.subr.bf16.mxu0 0
          %5669 = vmatpush2.bf16.msra.mxu0 0
          %5670 = vmatprep.subr.bf16.mxu0 0
          %5671 = vmatpush2.bf16.msra.mxu0 0
          %5672 = vmatprep.subr.bf16.mxu0 0
          %5673 = vmatpush2.bf16.msra.mxu0 0
          %5674 = vmatprep.subr.bf16.mxu0 0
          %5675 = vmatpush2.bf16.msra.mxu0 0
          %5676 = vmatprep.subr.bf16.mxu0 0
          %5677 = vmatpush2.bf16.msra.mxu0 0
          %5678 = vmatprep.subr.bf16.mxu0 0
          %5679 = vmatpush2.bf16.msra.mxu0 0
          %5680 = vmatprep.subr.bf16.mxu0 0
          %5681 = vmatpush2.bf16.msra.mxu0 0
          %5682 = vmatprep.mubr.bf16.mxu0 0
          %5683 = vmatmul.mubr.bf16.gmra.mxu0 %v5571
          %v5684 = vpop.f32.mrf.mxu0
          %v5685 = vadd.f32 %v5600, %v5684
          %v5686 = vpop.f32.mrf.mxu0
          %v5687 = vpop.f32.mrf.mxu0
          %v5688 = vadd.f32 %v5600, %v5687
          %v5689 = vpop.f32.mrf.mxu0
          %5690 = vmatprep.mubr.bf16.mxu0 0
          %5691 = vmatmul.mubr.bf16.gmra.mxu0 %v5572
          %v5692 = vpop.f32.mrf.mxu0
          %v5693 = vadd.f32 %v5600, %v5692
          %v5694 = vpop.f32.mrf.mxu0
          %v5695 = vpop.f32.mrf.mxu0
          %v5696 = vadd.f32 %v5600, %v5695
          %v5697 = vpop.f32.mrf.mxu0
          %5698 = vmatprep.mubr.bf16.mxu0 0
          %5699 = vmatmul.mubr.bf16.gmra.mxu0 %v5573
          %v5700 = vpop.f32.mrf.mxu0
          %v5701 = vadd.f32 %v5600, %v5700
          %v5702 = vpop.f32.mrf.mxu0
          %v5703 = vpop.f32.mrf.mxu0
          %v5704 = vadd.f32 %v5600, %v5703
          %v5705 = vpop.f32.mrf.mxu0
          %5706 = vmatprep.mubr.bf16.mxu0 0
          %5707 = vmatmul.mubr.bf16.gmra.mxu0 %v5574
          %v5708 = vpop.f32.mrf.mxu0
          %v5709 = vadd.f32 %v5600, %v5708
          %v5710 = vpop.f32.mrf.mxu0
          %v5711 = vpop.f32.mrf.mxu0
          %v5712 = vadd.f32 %v5600, %v5711
          %v5713 = vpop.f32.mrf.mxu0
          %5714 = vmatprep.mubr.bf16.mxu0 0
          %5715 = vmatmul.mubr.bf16.gmra.mxu0 %v5575
          %v5716 = vpop.f32.mrf.mxu0
          %v5717 = vadd.f32 %v5600, %v5716
          %v5718 = vpop.f32.mrf.mxu0
          %v5719 = vpop.f32.mrf.mxu0
          %v5720 = vadd.f32 %v5600, %v5719
          %v5721 = vpop.f32.mrf.mxu0
          %5722 = vmatprep.mubr.bf16.mxu0 0
          %5723 = vmatmul.mubr.bf16.gmra.mxu0 %v5576
          %v5724 = vpop.f32.mrf.mxu0
          %v5725 = vadd.f32 %v5600, %v5724
          %v5726 = vpop.f32.mrf.mxu0
          %v5727 = vpop.f32.mrf.mxu0
          %v5728 = vadd.f32 %v5600, %v5727
          %v5729 = vpop.f32.mrf.mxu0
          %5730 = vmatprep.mubr.bf16.mxu0 0
          %5731 = vmatmul.mubr.bf16.gmra.mxu0 %v5577
          %v5732 = vpop.f32.mrf.mxu0
          %v5733 = vadd.f32 %v5600, %v5732
          %v5734 = vpop.f32.mrf.mxu0
          %v5735 = vpop.f32.mrf.mxu0
          %v5736 = vadd.f32 %v5600, %v5735
          %v5737 = vpop.f32.mrf.mxu0
          %5738 = vmatprep.mubr.bf16.mxu0 0
          %5739 = vmatmul.mubr.bf16.gmra.mxu0 %v5578
          %v5740 = vpop.f32.mrf.mxu0
          %v5741 = vadd.f32 %v5600, %v5740
          %v5742 = vpop.f32.mrf.mxu0
          %v5743 = vpop.f32.mrf.mxu0
          %v5744 = vadd.f32 %v5600, %v5743
          %v5745 = vpop.f32.mrf.mxu0
          %5746 = vdwg.mxu0
          %v5747 = vxor.u32 %v5685, 2147483648
          %v5748 = vxor.u32 %v5688, 2147483648
          %v5749 = vxor.u32 %v5693, 2147483648
          %v5750 = vxor.u32 %v5696, 2147483648
          %v5751 = vxor.u32 %v5701, 2147483648
          %v5752 = vxor.u32 %v5704, 2147483648
          %v5753 = vxor.u32 %v5709, 2147483648
          %v5754 = vxor.u32 %v5712, 2147483648
          %v5755 = vxor.u32 %v5717, 2147483648
          %v5756 = vxor.u32 %v5720, 2147483648
          %v5757 = vxor.u32 %v5725, 2147483648
          %v5758 = vxor.u32 %v5728, 2147483648
          %v5759 = vxor.u32 %v5733, 2147483648
          %v5760 = vxor.u32 %v5736, 2147483648
          %v5761 = vxor.u32 %v5741, 2147483648
          %v5762 = vxor.u32 %v5744, 2147483648
          %v5763 = vmul.f32 %v5747, 1.442695
          %v5764 = vpow.pop %v5763
          %v5765 = vmul.f32 %v5748, 1.442695
          %v5766 = vpow.pop %v5765
          %v5767 = vmul.f32 %v5749, 1.442695
          %v5768 = vpow.pop %v5767
          %v5769 = vmul.f32 %v5750, 1.442695
          %v5770 = vpow.pop %v5769
          %v5771 = vmul.f32 %v5751, 1.442695
          %v5772 = vpow.pop %v5771
          %v5773 = vmul.f32 %v5752, 1.442695
          %v5774 = vpow.pop %v5773
          %v5775 = vmul.f32 %v5753, 1.442695
          %v5776 = vpow.pop %v5775
          %v5777 = vmul.f32 %v5754, 1.442695
          %v5778 = vpow.pop %v5777
          %v5779 = vmul.f32 %v5755, 1.442695
          %v5780 = vpow.pop %v5779
          %v5781 = vmul.f32 %v5756, 1.442695
          %v5782 = vpow.pop %v5781
          %v5783 = vmul.f32 %v5757, 1.442695
          %v5784 = vpow.pop %v5783
          %v5785 = vmul.f32 %v5758, 1.442695
          %v5786 = vpow.pop %v5785
          %v5787 = vmul.f32 %v5759, 1.442695
          %v5788 = vpow.pop %v5787
          %v5789 = vmul.f32 %v5760, 1.442695
          %v5790 = vpow.pop %v5789
          %v5791 = vmul.f32 %v5761, 1.442695
          %v5792 = vpow.pop %v5791
          %v5793 = vmul.f32 %v5762, 1.442695
          %v5794 = vpow.pop %v5793
          %v5795 = vadd.f32 %v5764, 1.0
          %v5796 = vadd.f32 %v5766, 1.0
          %v5797 = vadd.f32 %v5768, 1.0
          %v5798 = vadd.f32 %v5770, 1.0
          %v5799 = vadd.f32 %v5772, 1.0
          %v5800 = vadd.f32 %v5774, 1.0
          %v5801 = vadd.f32 %v5776, 1.0
          %v5802 = vadd.f32 %v5778, 1.0
          %v5803 = vadd.f32 %v5780, 1.0
          %v5804 = vadd.f32 %v5782, 1.0
          %v5805 = vadd.f32 %v5784, 1.0
          %v5806 = vadd.f32 %v5786, 1.0
          %v5807 = vadd.f32 %v5788, 1.0
          %v5808 = vadd.f32 %v5790, 1.0
          %v5809 = vadd.f32 %v5792, 1.0
          %v5810 = vadd.f32 %v5794, 1.0
          %v5811 = vrcp.pop %v5795
          %v5812 = vmul.f32 1.0, %v5811
          %v5813 = vrcp.pop %v5796
          %v5814 = vmul.f32 1.0, %v5813
          %v5815 = vrcp.pop %v5797
          %v5816 = vmul.f32 1.0, %v5815
          %v5817 = vrcp.pop %v5798
          %v5818 = vmul.f32 1.0, %v5817
          %v5819 = vrcp.pop %v5799
          %v5820 = vmul.f32 1.0, %v5819
          %v5821 = vrcp.pop %v5800
          %v5822 = vmul.f32 1.0, %v5821
          %v5823 = vrcp.pop %v5801
          %v5824 = vmul.f32 1.0, %v5823
          %v5825 = vrcp.pop %v5802
          %v5826 = vmul.f32 1.0, %v5825
          %v5827 = vrcp.pop %v5803
          %v5828 = vmul.f32 1.0, %v5827
          %v5829 = vrcp.pop %v5804
          %v5830 = vmul.f32 1.0, %v5829
          %v5831 = vrcp.pop %v5805
          %v5832 = vmul.f32 1.0, %v5831
          %v5833 = vrcp.pop %v5806
          %v5834 = vmul.f32 1.0, %v5833
          %v5835 = vrcp.pop %v5807
          %v5836 = vmul.f32 1.0, %v5835
          %v5837 = vrcp.pop %v5808
          %v5838 = vmul.f32 1.0, %v5837
          %v5839 = vrcp.pop %v5809
          %v5840 = vmul.f32 1.0, %v5839
          %v5841 = vrcp.pop %v5810
          %v5842 = vmul.f32 1.0, %v5841
          %5843 = vst [vmem:[%s861] sm:$0xff] %v5812
          %5844 = vst [vmem:[%s861 + $0x8] sm:$0xff] %v5814
          %5845 = vst [vmem:[%s861 + $0x10] sm:$0xff] %v5816
          %5846 = vst [vmem:[%s861 + $0x18] sm:$0xff] %v5818
          %5847 = vst [vmem:[%s861 + $0x20] sm:$0xff] %v5820
          %5848 = vst [vmem:[%s861 + $0x28] sm:$0xff] %v5822
          %5849 = vst [vmem:[%s861 + $0x30] sm:$0xff] %v5824
          %5850 = vst [vmem:[%s861 + $0x38] sm:$0xff] %v5826
          %5851 = vst [vmem:[%s861 + $0x40] sm:$0xff] %v5828
          %5852 = vst [vmem:[%s861 + $0x48] sm:$0xff] %v5830
          %5853 = vst [vmem:[%s861 + $0x50] sm:$0xff] %v5832
          %5854 = vst [vmem:[%s861 + $0x58] sm:$0xff] %v5834
          %5855 = vst [vmem:[%s861 + $0x60] sm:$0xff] %v5836
          %5856 = vst [vmem:[%s861 + $0x68] sm:$0xff] %v5838
          %5857 = vst [vmem:[%s861 + $0x70] sm:$0xff] %v5840
          %5858 = vst [vmem:[%s861 + $0x78] sm:$0xff] %v5842
        $region156: #{tpu_custom_call.1} parent=95 // pred_fallthru
          _
        %s5859 = sand.u32 %s480, 1
        %s5860 = scalar_lea.sflag [#allocation5], %s5859
        %s5861 = sand.u32 %s480, 1
        %s5862 = smul.addr %s5861, 128
        %s5863 = scalar_lea.vmem [#allocation24], %s5862
        // Predicated region
        $region157: #{tpu_custom_call.1} parent=95 // pred_check
          %p5864 = pneg %p490
        $region158: #{tpu_custom_call.1} parent=95 // pred_check_branch
          %5866 = sbr.rel (%p5864) target = $region160
        $region159: #{tpu_custom_call.1} parent=95 // pred_region
          %s5867 = smul.u32 16, %s48
          %s5869 = ssub.s32 2048, 2048
          %5870 = vsyncadd %s5860, %s5869
          %s5871 = smul.addr %s5867, 128
          %s5872 = scalar_lea.hbm %s19, %s5871
          %s5873 = sshll.u32 %s5863, 4
          %s5874 = int_to_ptr.vmem [resolvable:$true] %s5873
          %5879 = dma.vmem_to_hbm [thread:$0]  %s5874, 2048, %s5872, %s5860, 128, 128, 8
        $region160: #{tpu_custom_call.1} parent=95 // pred_fallthru
          _
      $region96: #{tpu_custom_call.1} parent=5 // pred_fallthru
        _
      %p5880 = scmp.le.s32.totalorder 2, %s39
      // Predicated region
      $region161: #{tpu_custom_call.1} parent=5 // pred_check
        %p5881 = pneg %p5880
      $region162: #{tpu_custom_call.1} parent=5 // pred_check_branch
        %5883 = sbr.rel (%p5881) target = $region164
      $region163: #{tpu_custom_call.1} parent=5 // pred_region
        %s5884 = ssub.s32 %s39, 2
        // Predicated region
        $region165: #{tpu_custom_call.1} parent=163 // pred_check
          %p5885 = pneg %p496
        $region166: #{tpu_custom_call.1} parent=163 // pred_check_branch
          %5887 = sbr.rel (%p5885) target = $region168
        $region167: #{tpu_custom_call.1} parent=163 // pred_region
          %s5888 = sand.u32 %s481, 1
          %s5889 = scalar_lea.sflag [#allocation5], %s5888
          %s5890 = sand.u32 %s481, 1
          %s5891 = smul.addr %s5890, 128
          %s5892 = scalar_lea.vmem [#allocation24], %s5891
          %5893 = dma.done %s5889, 2048
        $region168: #{tpu_custom_call.1} parent=163 // pred_fallthru
          _
      $region164: #{tpu_custom_call.1} parent=5 // pred_fallthru
        _
    $region6: #{tpu_custom_call.1} parent=1 // loop_footer
      %s43 = sadd.s32 1, %s39
    $region7: #{tpu_custom_call.1} parent=1 // loop_footer_branch
      %38 = sbr.rel target = $region3
    $region8: #{tpu_custom_call.1} parent=1 // loop_exit
      _
    %5894 = vsyncpa [#allocation4], 1
    %s5895 = scalar_lea.sflag [#allocation4], 1
    %5896 = vsyncpa %s5895, 1
    %5897 = vsyncpa [#allocation7], 1
    %s5898 = scalar_lea.sflag [#allocation7], 1
    %5899 = vsyncpa %s5898, 1
    %5900 = vsyncpa [#allocation10], 1
    %5901 = vsyncpa [#allocation13], 1
    %5902 = vsyncpa [#allocation16], 1
    %5903 = vsyncpa [#allocation19], 1
    %5904 = vsyncpa [#allocation22], 1
    %5905 = vsyncpa [#allocation5], 1
    %s5906 = scalar_lea.sflag [#allocation5], 1
    %5907 = vsyncpa %s5906, 1

</llo_original>
